<compile_context>
chip_gen: v5e
topology: v5e:2x2
jax: 0.10.0
libtpu: 0.0.40
codegen_flags: <defaults>
</compile_context>

<pallas_src>
import jax
import jax.numpy as jnp
from jax import lax
from jax.experimental import pallas as pl
from jax.experimental.pallas import tpu as pltpu

# ---------------- small deterministic config ----------------
BATCH = 2
FEATURE_CHANNEL = 4
SIGNAL_LENGTH = 16
HIDDEN_SIZE = 16
NUM_LAYERS = 2
OUTPUT_CHANNEL_CF = 2
OUTPUT_CHANNEL = 3
NUM_CLASS = 2  # -> Sigmoid head (Softmax branch for num_class > 2 not exercised)

_VMEM = pl.BlockSpec(memory_space=pltpu.MemorySpace.VMEM)

# ---------------- slab row offsets (shared by prepare_params and the kernel) --
# bf16 "recurrent" slab: the only weights sitting on the serial h->h chain.
R_WHH0 = 0
R_WHH1 = 2 * HIDDEN_SIZE
REC_SLAB_ROWS = 4 * HIDDEN_SIZE                  # multiple of 16 (bf16 packing)

# f32 slab: input projections, combined biases, head weights (all lane-padded
# to the 8H = 128 gate width so the whole thing is one lane-dense DMA).
assert FEATURE_CHANNEL <= 8
R_WIH0 = 0                                       # (C, 8H)
R_WIH1 = 8                                       # (2H, 8H)
R_B0 = R_WIH1 + 2 * HIDDEN_SIZE                  # (1, 8H)
R_B1 = R_B0 + 1                                  # (1, 8H)
R_WCF = R_B1 + 1                                 # (Kcf, 2H)
R_WFC = R_WCF + OUTPUT_CHANNEL_CF                # (Kcf, L)
R_BCF = R_WFC + OUTPUT_CHANNEL_CF                # (Kcf, 1)  column at lane 0
R_BFC = R_BCF + OUTPUT_CHANNEL_CF                # (1, Kcf)  row
R_WREG = R_BFC + 1                               # (Kreg, 2H)
R_BREG = R_WREG + OUTPUT_CHANNEL                 # (Kreg, 1) column at lane 0
LIN_SLAB_ROWS = ((R_BREG + OUTPUT_CHANNEL + 7) // 8) * 8


# ---------------- fused Pallas kernel ----------------
def _fused_forward_kernel(x_ref, rec_ref, lin_ref, cf_ref, reg_ref,
                          g_ref, seq_ref):
    """Whole LSTMClassifier_Reg forward.

    x_ref:   (B, C, L)        raw module input (no wrapper transpose)
    rec_ref: (64, 8H) bf16    [whh0 ; whh1], block-diagonal over [h_fwd|h_bwd]
    lin_ref: (56, 8H) f32     wih0.T, wih1.T, biases, head weights (lane-padded)
    cf_ref:  (B, Kcf, Kcf)    classification output
    reg_ref: (B, Kreg, L)     regression output
    g_ref:   (L*B, 8H) f32    scratch: direction-selected gate inputs
    seq_ref: (L*B, 2H) f32    scratch: sequence-ordered layer output (l-major)
    """
    f32 = jnp.float32
    B, C, L = x_ref.shape
    G = g_ref.shape[-1]             # 8H (packed gate width == 128 lanes)
    H2 = seq_ref.shape[-1]          # 2H
    H = H2 // 2
    KCF = cf_ref.shape[1]
    KREG = reg_ref.shape[1]

    # fwd lanes within each 2H-wide gate block of [i_f,i_b,f_f,f_b,g_f,g_b,o_f,o_b]
    fwd_mask = (lax.broadcasted_iota(jnp.int32, (1, G), 1) % H2) < H

    # ---- carve the two parameter slabs (static views, no extra DMAs) ----
    wih0 = lin_ref[R_WIH0:R_WIH0 + C, :]             # (C, G)   f32
    wih1 = lin_ref[R_WIH1:R_WIH1 + H2, :]            # (2H, G)  f32
    b0 = lin_ref[R_B0:R_B0 + 1, :]                   # (1, G)
    b1 = lin_ref[R_B1:R_B1 + 1, :]                   # (1, G)
    whh0 = rec_ref[R_WHH0:R_WHH0 + H2, :]            # (2H, G)  bf16
    whh1 = rec_ref[R_WHH1:R_WHH1 + H2, :]            # (2H, G)  bf16

    def run_layer(gx_rows, whh):
        """gx_rows: list of L (B, G) pre-activation blocks (input proj + bias),
        time-ordered.  Writes the sequence-ordered layer output to seq_ref."""
        # Direction-select prologue (no dependence on the recurrent state, so
        # it sits off the serial chain; the scratch bounds vreg live ranges).
        for t in range(L):
            g_ref[t * B:(t + 1) * B, :] = jnp.where(
                fwd_mask, gx_rows[t], gx_rows[L - 1 - t])
        hc = jnp.zeros((B, H2), f32)      # [h_fwd | h_bwd]
        cc = jnp.zeros((B, H2), f32)      # [c_fwd | c_bwd]
        for t in range(L):                # fully unrolled recurrence
            gates = g_ref[t * B:(t + 1) * B, :] + jnp.dot(
                hc.astype(jnp.bfloat16), whh, preferred_element_type=f32)
            sg = jax.nn.sigmoid(gates)    # one EUP push over the packed gates
            th = jnp.tanh(gates)          # one EUP push over the packed gates
            i_g = sg[:, 0 * H2:1 * H2]    # [i_f | i_b]
            f_g = sg[:, 1 * H2:2 * H2]    # [f_f | f_b]
            g_g = th[:, 2 * H2:3 * H2]    # [g_f | g_b]
            o_g = sg[:, 3 * H2:4 * H2]    # [o_f | o_b]
            cc = f_g * cc + i_g * g_g
            hc = o_g * jnp.tanh(cc)
            # Both direction halves go straight to their final sequence
            # positions (fwd half -> t, bwd half -> L-1-t): no re-interleave.
            seq_ref[t * B:(t + 1) * B, 0:H] = hc[:, 0:H]
            seq_ref[(L - 1 - t) * B:(L - t) * B, H:H2] = hc[:, H:H2]

    # ---- layer 0: input projection folds the (B,C,L)->(L,B,C) transpose ----
    gxb = [jnp.einsum('cl,cg->lg', x_ref[b], wih0, preferred_element_type=f32)
           for b in range(B)]                                   # B x (L, G)
    gx0 = [jnp.concatenate([gxb[b][t:t + 1, :] for b in range(B)], axis=0) + b0
           for t in range(L)]                                   # L x (B, G)
    run_layer(gx0, whh0)

    # ---- layer 1: one hoisted matmul over all timesteps & both directions ----
    gx1 = jnp.dot(seq_ref[...], wih1, preferred_element_type=f32) + b1  # (L*B, G)
    run_layer([gx1[t * B:(t + 1) * B, :] for t in range(L)], whh1)

    # ---- heads: read the sequence-ordered layer-2 output from the scratch ----
    wcf = lin_ref[R_WCF:R_WCF + KCF, 0:H2]           # (Kcf, 2H)
    wfc = lin_ref[R_WFC:R_WFC + KCF, 0:L]            # (Kcf, L)
    bcf = lin_ref[R_BCF:R_BCF + KCF, 0:1]            # (Kcf, 1)
    bfc = lin_ref[R_BFC:R_BFC + 1, 0:KCF]            # (1, Kcf)
    wreg = lin_ref[R_WREG:R_WREG + KREG, 0:H2]       # (Kreg, 2H)
    breg = lin_ref[R_BREG:R_BREG + KREG, 0:1]        # (Kreg, 1)

    for b in range(B):
        # one strided load per batch element: rows b, b+B, ... (time order)
        sb = seq_ref[pl.ds(b, L, stride=B), :]                       # (L, 2H)
        # Conv1d(2H -> Kcf, kernel_size=1)
        cf1 = jnp.einsum('kc,lc->kl', wcf, sb,
                         preferred_element_type=f32) + bcf           # (Kcf, L)
        # torch.squeeze is a no-op for this config; Linear(L -> Kcf)
        cf = jnp.einsum('kl,jl->kj', cf1, wfc,
                        preferred_element_type=f32) + bfc            # (Kcf, Kcf)
        cf_ref[b] = jax.nn.sigmoid(cf)    # num_class == 2 -> Sigmoid
        # Conv1d(2H -> Kreg, kernel_size=1)
        reg_ref[b] = jnp.einsum('oc,lc->ol', wreg, sb,
                                preferred_element_type=f32) + breg   # (Kreg, L)


# ---------------- parameter packing (done once, outside the forward) --------
def prepare_params(params):
    """Pack all module parameters into two lane-dense VMEM slabs.

    Gate packing (per layer): columns ordered [i_f, i_b, f_f, f_b, g_f, g_b,
    o_f, o_b], each H wide (8H = 128 lanes).  W_hh is block-diagonal over the
    concatenated hidden state [h_fwd | h_bwd] and stored in bf16 (it is the
    only weight on the serial recurrence path).
    """
    H = HIDDEN_SIZE
    H2, G = 2 * H, 8 * H

    def pack_layer(layer):
        wih_f = params[f'w_ih_l{layer}']
        whh_f = params[f'w_hh_l{layer}']
        b_f = params[f'b_ih_l{layer}'] + params[f'b_hh_l{layer}']
        wih_b = params[f'w_ih_l{layer}_reverse']
        whh_b = params[f'w_hh_l{layer}_reverse']
        b_b = params[f'b_ih_l{layer}_reverse'] + params[f'b_hh_l{layer}_reverse']
        wih_rows, b_parts = [], []
        whh_pack = jnp.zeros((H2, G), jnp.float32)
        for k in range(4):  # PyTorch gate order i, f, g, o
            wih_rows += [wih_f[k * H:(k + 1) * H], wih_b[k * H:(k + 1) * H]]
            b_parts += [b_f[k * H:(k + 1) * H], b_b[k * H:(k + 1) * H]]
            whh_pack = whh_pack.at[0:H, k * H2:k * H2 + H].set(
                whh_f[k * H:(k + 1) * H].T)
            whh_pack = whh_pack.at[H:H2, k * H2 + H:(k + 1) * H2].set(
                whh_b[k * H:(k + 1) * H].T)
        wih_t = jnp.concatenate(wih_rows, axis=0).T          # (in_size, G)
        bias = jnp.concatenate(b_parts).reshape(1, G)        # (1, G)
        return wih_t, whh_pack, bias

    wih0_t, whh0, b0 = pack_layer(0)
    wih1_t, whh1, b1 = pack_layer(1)

    rec = jnp.zeros((REC_SLAB_ROWS, G), jnp.bfloat16)
    rec = rec.at[R_WHH0:R_WHH0 + H2, :].set(whh0.astype(jnp.bfloat16))
    rec = rec.at[R_WHH1:R_WHH1 + H2, :].set(whh1.astype(jnp.bfloat16))

    lin = jnp.zeros((LIN_SLAB_ROWS, G), jnp.float32)
    lin = lin.at[R_WIH0:R_WIH0 + FEATURE_CHANNEL, :].set(wih0_t)
    lin = lin.at[R_WIH1:R_WIH1 + H2, :].set(wih1_t)
    lin = lin.at[R_B0, :].set(b0[0])
    lin = lin.at[R_B1, :].set(b1[0])
    lin = lin.at[R_WCF:R_WCF + OUTPUT_CHANNEL_CF, :H2].set(params['w_cf'])
    lin = lin.at[R_WFC:R_WFC + OUTPUT_CHANNEL_CF, :SIGNAL_LENGTH].set(params['w_fc'])
    lin = lin.at[R_BCF:R_BCF + OUTPUT_CHANNEL_CF, 0].set(params['b_cf'])
    lin = lin.at[R_BFC, :OUTPUT_CHANNEL_CF].set(params['b_fc'])
    lin = lin.at[R_WREG:R_WREG + OUTPUT_CHANNEL, :H2].set(params['w_reg'])
    lin = lin.at[R_BREG:R_BREG + OUTPUT_CHANNEL, 0].set(params['b_reg'])
    return rec, lin


# ---------------- forward wrapper (single pallas_call, no XLA glue) ----------
def lstm_classifier_reg_forward(x, packed):
    """x: (B, feature_channel, signal_length) float32."""
    rec_slab, lin_slab = packed
    B, _, L = x.shape
    kcf, kreg = OUTPUT_CHANNEL_CF, OUTPUT_CHANNEL
    # torch.squeeze(out_cf) removes nothing for these (all > 1) dims.
    assert B > 1 and kcf > 1 and L > 1, "shape-changing squeeze unsupported"
    # TODO(synk): Softmax head (num_class > 2) and shape-changing torch.squeeze
    # (output_channel_cf == 1 or batch == 1) variants are not exercised here.
    # Note: for many independent sequences on v7x, add a batch grid axis with
    # dimension_semantics=("parallel",) to use both TensorCores; the single
    # serial recurrence itself cannot be parallelised.
    out_cf, out_reg = pl.pallas_call(
        _fused_forward_kernel,
        out_shape=(jax.ShapeDtypeStruct((B, kcf, kcf), jnp.float32),
                   jax.ShapeDtypeStruct((B, kreg, L), jnp.float32)),
        in_specs=[_VMEM, _VMEM, _VMEM],
        out_specs=(_VMEM, _VMEM),
        scratch_shapes=[
            pltpu.VMEM((L * B, 8 * HIDDEN_SIZE), jnp.float32),  # gate inputs
            pltpu.VMEM((L * B, 2 * HIDDEN_SIZE), jnp.float32),  # layer output
        ],
    )(x, rec_slab, lin_slab)
    return [out_cf, out_reg]


# ---------------- deterministic parameter init (PyTorch layout) -------------
def init_params(key):
    H = HIDDEN_SIZE
    k = 1.0 / float(jnp.sqrt(jnp.float32(H)))

    def u(subkey, shape):
        return jax.random.uniform(subkey, shape, jnp.float32, -k, k)

    keys = iter(jax.random.split(key, 64))
    params = {}
    for layer in range(NUM_LAYERS):
        in_size = FEATURE_CHANNEL if layer == 0 else 2 * H
        for suffix in ('', '_reverse'):
            params[f'w_ih_l{layer}{suffix}'] = u(next(keys), (4 * H, in_size))
            params[f'w_hh_l{layer}{suffix}'] = u(next(keys), (4 * H, H))
            params[f'b_ih_l{layer}{suffix}'] = u(next(keys), (4 * H,))
            params[f'b_hh_l{layer}{suffix}'] = u(next(keys), (4 * H,))
    params['w_cf'] = u(next(keys), (OUTPUT_CHANNEL_CF, 2 * H))  # Conv1d k=1 weight
    params['b_cf'] = u(next(keys), (OUTPUT_CHANNEL_CF,))
    params['w_fc'] = u(next(keys), (OUTPUT_CHANNEL_CF, SIGNAL_LENGTH))
    params['b_fc'] = u(next(keys), (OUTPUT_CHANNEL_CF,))
    params['w_reg'] = u(next(keys), (OUTPUT_CHANNEL, 2 * H))
    params['b_reg'] = u(next(keys), (OUTPUT_CHANNEL,))
    return params


# ---------------- pure-JAX reference (for self-check) -----------------------
def reference_forward(x, params, *, mimic_bf16_recurrence=False):
    """mimic_bf16_recurrence=True rounds W_hh and the recurrent h to bf16
    (what the kernel's single-pass bf16 MXU matmul does) so the comparison
    isolates structural correctness from the intentional precision change."""
    B, _, L = x.shape
    H = HIDDEN_SIZE
    f32 = jnp.float32

    def rnd(a):
        return a.astype(jnp.bfloat16).astype(f32) if mimic_bf16_recurrence else a

    inp = jnp.transpose(x, (0, 2, 1))
    for layer in range(NUM_LAYERS):
        outs = []
        for suffix, rev in (('', False), ('_reverse', True)):
            wih = params[f'w_ih_l{layer}{suffix}']
            whh = rnd(params[f'w_hh_l{layer}{suffix}'])
            b = params[f'b_ih_l{layer}{suffix}'] + params[f'b_hh_l{layer}{suffix}']
            xs = inp[:, ::-1, :] if rev else inp
            h = jnp.zeros((B, H), f32)
            c = jnp.zeros((B, H), f32)
            hs = []
            for t in range(L):
                g = xs[:, t, :] @ wih.T + rnd(h) @ whh.T + b
                i = jax.nn.sigmoid(g[:, :H])
                f = jax.nn.sigmoid(g[:, H:2 * H])
                gg = jnp.tanh(g[:, 2 * H:3 * H])
                o = jax.nn.sigmoid(g[:, 3 * H:])
                c = f * c + i * gg
                h = o * jnp.tanh(c)
                hs.append(h)
            hseq = jnp.stack(hs, axis=1)
            if rev:
                hseq = hseq[:, ::-1, :]
            outs.append(hseq)
        inp = jnp.concatenate(outs, axis=-1)
    cf1 = jnp.einsum('blc,kc->bkl', inp, params['w_cf']) + params['b_cf'][None, :, None]
    cf1 = jnp.squeeze(cf1)
    cf = jax.nn.sigmoid(cf1 @ params['w_fc'].T + params['b_fc'])
    reg = jnp.einsum('blc,oc->bol', inp, params['w_reg']) + params['b_reg'][None, :, None]
    return cf, reg


if __name__ == "__main__":
    key = jax.random.PRNGKey(0)
    kx, kp = jax.random.split(key)
    x = jax.random.normal(kx, (BATCH, FEATURE_CHANNEL, SIGNAL_LENGTH), jnp.float32)
    params = init_params(kp)
    packed = prepare_params(params)   # weight packing hoisted, done once

    fwd = jax.jit(lstm_classifier_reg_forward)
    out_cf, out_reg = jax.block_until_ready(fwd(x, packed))

    assert out_cf.shape == (BATCH, OUTPUT_CHANNEL_CF, OUTPUT_CHANNEL_CF), out_cf.shape
    assert out_reg.shape == (BATCH, OUTPUT_CHANNEL, SIGNAL_LENGTH), out_reg.shape

    # Tight check vs. a reference that mimics the kernel's bf16 recurrent matmul.
    ref_cf_b, ref_reg_b = reference_forward(x, params, mimic_bf16_recurrence=True)
    assert jnp.allclose(out_cf, ref_cf_b, atol=2e-3, rtol=2e-3)
    assert jnp.allclose(out_reg, ref_reg_b, atol=2e-3, rtol=2e-3)

    # Looser sanity check vs. the exact f32 reference (module semantics).
    ref_cf, ref_reg = reference_forward(x, params)
    assert jnp.allclose(out_cf, ref_cf, atol=5e-2, rtol=5e-2)
    assert jnp.allclose(out_reg, ref_reg, atol=5e-2, rtol=5e-2)
    print("KERNEL_OK")
</pallas_src>

<mosaic_0001>
module attributes {stable_mosaic.version = 11 : i64} {
  func.func @_fused_forward_kernel(%arg0: memref<2x4x16xf32, #tpu.memory_space<vmem>>, %arg1: memref<64x128xbf16, #tpu.memory_space<vmem>>, %arg2: memref<56x128xf32, #tpu.memory_space<vmem>>, %arg3: memref<2x2x2xf32, #tpu.memory_space<vmem>>, %arg4: memref<2x3x16xf32, #tpu.memory_space<vmem>>, %arg5: memref<32x128xf32, #tpu.memory_space<vmem>>, %arg6: memref<32x32xf32, #tpu.memory_space<vmem>>) attributes {dimension_semantics = [], scalar_prefetch = 0 : i64, scratch_operands = 2 : i64, tpu.core_type = #tpu.core_type<tc>} {
    %0 = tpu.iota {dimensions = array<i32: 1>} : vector<1x128xi32>
    %c32_i32 = arith.constant 32 : i32
    %c0_i32 = arith.constant 0 : i32
    %1 = arith.cmpi eq, %c32_i32, %c0_i32 : i32
    %c1_i32 = arith.constant 1 : i32
    %2 = arith.select %1, %c1_i32, %c32_i32 : i32
    %3 = vector.broadcast %2 : i32 to vector<1x128xi32>
    %4 = arith.remsi %0, %3 : vector<1x128xi32>
    %c0_i32_0 = arith.constant 0 : i32
    %5 = vector.broadcast %c0_i32_0 : i32 to vector<1x128xi32>
    %6 = arith.cmpi ne, %4, %5 : vector<1x128xi32>
    %c0_i32_1 = arith.constant 0 : i32
    %7 = vector.broadcast %c0_i32_1 : i32 to vector<1x128xi32>
    %8 = arith.cmpi slt, %4, %7 : vector<1x128xi32>
    %c0_i32_2 = arith.constant 0 : i32
    %9 = arith.cmpi slt, %2, %c0_i32_2 : i32
    %10 = vector.broadcast %9 : i1 to vector<1x128xi1>
    %11 = vector.broadcast %10 : vector<1x128xi1> to vector<1x128xi1>
    %12 = arith.xori %8, %11 : vector<1x128xi1>
    %13 = arith.andi %12, %6 : vector<1x128xi1>
    %14 = vector.broadcast %2 : i32 to vector<1x128xi32>
    %15 = arith.addi %4, %14 : vector<1x128xi32>
    %16 = arith.select %13, %15, %4 : vector<1x128xi1>, vector<1x128xi32>
    %c16_i32 = arith.constant 16 : i32
    %17 = vector.broadcast %c16_i32 : i32 to vector<1x128xi32>
    %18 = arith.cmpi slt, %16, %17 : vector<1x128xi32>
    %c0 = arith.constant 0 : index
    %c0_3 = arith.constant 0 : index
    %19 = vector.load %arg2[%c0, %c0_3] : memref<56x128xf32, #tpu.memory_space<vmem>>, vector<4x128xf32>
    %c8 = arith.constant 8 : index
    %c0_4 = arith.constant 0 : index
    %20 = vector.load %arg2[%c8, %c0_4] : memref<56x128xf32, #tpu.memory_space<vmem>>, vector<32x128xf32>
    %c40 = arith.constant 40 : index
    %c0_5 = arith.constant 0 : index
    %21 = vector.load %arg2[%c40, %c0_5] : memref<56x128xf32, #tpu.memory_space<vmem>>, vector<1x128xf32>
    %c41 = arith.constant 41 : index
    %c0_6 = arith.constant 0 : index
    %22 = vector.load %arg2[%c41, %c0_6] : memref<56x128xf32, #tpu.memory_space<vmem>>, vector<1x128xf32>
    %c0_7 = arith.constant 0 : index
    %c0_8 = arith.constant 0 : index
    %23 = vector.load %arg1[%c0_7, %c0_8] : memref<64x128xbf16, #tpu.memory_space<vmem>>, vector<32x128xbf16>
    %c32 = arith.constant 32 : index
    %c0_9 = arith.constant 0 : index
    %24 = vector.load %arg1[%c32, %c0_9] : memref<64x128xbf16, #tpu.memory_space<vmem>>, vector<32x128xbf16>
    %c0_10 = arith.constant 0 : index
    %c0_11 = arith.constant 0 : index
    %c0_12 = arith.constant 0 : index
    %25 = vector.load %arg0[%c0_10, %c0_11, %c0_12] : memref<2x4x16xf32, #tpu.memory_space<vmem>>, vector<1x4x16xf32>
    %26 = vector.shape_cast %25 : vector<1x4x16xf32> to vector<4x16xf32>
    "tpu.trace_start"() <{level = 10 : i32, message = "cl,cg->lg"}> : () -> ()
    %cst = arith.constant dense<0.000000e+00> : vector<16x128xf32>
    %27 = tpu.matmul %26, %19, %cst {dimension_numbers = #tpu.dot_dimension_numbers<[0], [0], [1], [1], [0, 1, 1, 1], [], []>} : vector<4x16xf32>, vector<4x128xf32>, vector<16x128xf32> -> vector<16x128xf32>
    "tpu.trace_stop"() : () -> ()
    %c1 = arith.constant 1 : index
    %c0_13 = arith.constant 0 : index
    %c0_14 = arith.constant 0 : index
    %28 = vector.load %arg0[%c1, %c0_13, %c0_14] : memref<2x4x16xf32, #tpu.memory_space<vmem>>, vector<1x4x16xf32>
    %29 = vector.shape_cast %28 : vector<1x4x16xf32> to vector<4x16xf32>
    "tpu.trace_start"() <{level = 10 : i32, message = "cl,cg->lg"}> : () -> ()
    %cst_15 = arith.constant dense<0.000000e+00> : vector<16x128xf32>
    %30 = tpu.matmul %29, %19, %cst_15 {dimension_numbers = #tpu.dot_dimension_numbers<[0], [0], [1], [1], [0, 1, 1, 1], [], []>} : vector<4x16xf32>, vector<4x128xf32>, vector<16x128xf32> -> vector<16x128xf32>
    "tpu.trace_stop"() : () -> ()
    %31 = vector.extract_strided_slice %27 {offsets = [0, 0], sizes = [1, 128], strides = [1, 1]} : vector<16x128xf32> to vector<1x128xf32>
    %32 = vector.extract_strided_slice %30 {offsets = [0, 0], sizes = [1, 128], strides = [1, 1]} : vector<16x128xf32> to vector<1x128xf32>
    %33 = tpu.concatenate %31, %32 in 0 : vector<1x128xf32>, vector<1x128xf32> -> vector<2x128xf32>
    %34 = vector.broadcast %21 : vector<1x128xf32> to vector<2x128xf32>
    %35 = arith.addf %33, %34 : vector<2x128xf32>
    %36 = vector.extract_strided_slice %27 {offsets = [1, 0], sizes = [1, 128], strides = [1, 1]} : vector<16x128xf32> to vector<1x128xf32>
    %37 = vector.extract_strided_slice %30 {offsets = [1, 0], sizes = [1, 128], strides = [1, 1]} : vector<16x128xf32> to vector<1x128xf32>
    %38 = tpu.concatenate %36, %37 in 0 : vector<1x128xf32>, vector<1x128xf32> -> vector<2x128xf32>
    %39 = vector.broadcast %21 : vector<1x128xf32> to vector<2x128xf32>
    %40 = arith.addf %38, %39 : vector<2x128xf32>
    %41 = vector.extract_strided_slice %27 {offsets = [2, 0], sizes = [1, 128], strides = [1, 1]} : vector<16x128xf32> to vector<1x128xf32>
    %42 = vector.extract_strided_slice %30 {offsets = [2, 0], sizes = [1, 128], strides = [1, 1]} : vector<16x128xf32> to vector<1x128xf32>
    %43 = tpu.concatenate %41, %42 in 0 : vector<1x128xf32>, vector<1x128xf32> -> vector<2x128xf32>
    %44 = vector.broadcast %21 : vector<1x128xf32> to vector<2x128xf32>
    %45 = arith.addf %43, %44 : vector<2x128xf32>
    %46 = vector.extract_strided_slice %27 {offsets = [3, 0], sizes = [1, 128], strides = [1, 1]} : vector<16x128xf32> to vector<1x128xf32>
    %47 = vector.extract_strided_slice %30 {offsets = [3, 0], sizes = [1, 128], strides = [1, 1]} : vector<16x128xf32> to vector<1x128xf32>
    %48 = tpu.concatenate %46, %47 in 0 : vector<1x128xf32>, vector<1x128xf32> -> vector<2x128xf32>
    %49 = vector.broadcast %21 : vector<1x128xf32> to vector<2x128xf32>
    %50 = arith.addf %48, %49 : vector<2x128xf32>
    %51 = vector.extract_strided_slice %27 {offsets = [4, 0], sizes = [1, 128], strides = [1, 1]} : vector<16x128xf32> to vector<1x128xf32>
    %52 = vector.extract_strided_slice %30 {offsets = [4, 0], sizes = [1, 128], strides = [1, 1]} : vector<16x128xf32> to vector<1x128xf32>
    %53 = tpu.concatenate %51, %52 in 0 : vector<1x128xf32>, vector<1x128xf32> -> vector<2x128xf32>
    %54 = vector.broadcast %21 : vector<1x128xf32> to vector<2x128xf32>
    %55 = arith.addf %53, %54 : vector<2x128xf32>
    %56 = vector.extract_strided_slice %27 {offsets = [5, 0], sizes = [1, 128], strides = [1, 1]} : vector<16x128xf32> to vector<1x128xf32>
    %57 = vector.extract_strided_slice %30 {offsets = [5, 0], sizes = [1, 128], strides = [1, 1]} : vector<16x128xf32> to vector<1x128xf32>
    %58 = tpu.concatenate %56, %57 in 0 : vector<1x128xf32>, vector<1x128xf32> -> vector<2x128xf32>
    %59 = vector.broadcast %21 : vector<1x128xf32> to vector<2x128xf32>
    %60 = arith.addf %58, %59 : vector<2x128xf32>
    %61 = vector.extract_strided_slice %27 {offsets = [6, 0], sizes = [1, 128], strides = [1, 1]} : vector<16x128xf32> to vector<1x128xf32>
    %62 = vector.extract_strided_slice %30 {offsets = [6, 0], sizes = [1, 128], strides = [1, 1]} : vector<16x128xf32> to vector<1x128xf32>
    %63 = tpu.concatenate %61, %62 in 0 : vector<1x128xf32>, vector<1x128xf32> -> vector<2x128xf32>
    %64 = vector.broadcast %21 : vector<1x128xf32> to vector<2x128xf32>
    %65 = arith.addf %63, %64 : vector<2x128xf32>
    %66 = vector.extract_strided_slice %27 {offsets = [7, 0], sizes = [1, 128], strides = [1, 1]} : vector<16x128xf32> to vector<1x128xf32>
    %67 = vector.extract_strided_slice %30 {offsets = [7, 0], sizes = [1, 128], strides = [1, 1]} : vector<16x128xf32> to vector<1x128xf32>
    %68 = tpu.concatenate %66, %67 in 0 : vector<1x128xf32>, vector<1x128xf32> -> vector<2x128xf32>
    %69 = vector.broadcast %21 : vector<1x128xf32> to vector<2x128xf32>
    %70 = arith.addf %68, %69 : vector<2x128xf32>
    %71 = vector.extract_strided_slice %27 {offsets = [8, 0], sizes = [1, 128], strides = [1, 1]} : vector<16x128xf32> to vector<1x128xf32>
    %72 = vector.extract_strided_slice %30 {offsets = [8, 0], sizes = [1, 128], strides = [1, 1]} : vector<16x128xf32> to vector<1x128xf32>
    %73 = tpu.concatenate %71, %72 in 0 : vector<1x128xf32>, vector<1x128xf32> -> vector<2x128xf32>
    %74 = vector.broadcast %21 : vector<1x128xf32> to vector<2x128xf32>
    %75 = arith.addf %73, %74 : vector<2x128xf32>
    %76 = vector.extract_strided_slice %27 {offsets = [9, 0], sizes = [1, 128], strides = [1, 1]} : vector<16x128xf32> to vector<1x128xf32>
    %77 = vector.extract_strided_slice %30 {offsets = [9, 0], sizes = [1, 128], strides = [1, 1]} : vector<16x128xf32> to vector<1x128xf32>
    %78 = tpu.concatenate %76, %77 in 0 : vector<1x128xf32>, vector<1x128xf32> -> vector<2x128xf32>
    %79 = vector.broadcast %21 : vector<1x128xf32> to vector<2x128xf32>
    %80 = arith.addf %78, %79 : vector<2x128xf32>
    %81 = vector.extract_strided_slice %27 {offsets = [10, 0], sizes = [1, 128], strides = [1, 1]} : vector<16x128xf32> to vector<1x128xf32>
    %82 = vector.extract_strided_slice %30 {offsets = [10, 0], sizes = [1, 128], strides = [1, 1]} : vector<16x128xf32> to vector<1x128xf32>
    %83 = tpu.concatenate %81, %82 in 0 : vector<1x128xf32>, vector<1x128xf32> -> vector<2x128xf32>
    %84 = vector.broadcast %21 : vector<1x128xf32> to vector<2x128xf32>
    %85 = arith.addf %83, %84 : vector<2x128xf32>
    %86 = vector.extract_strided_slice %27 {offsets = [11, 0], sizes = [1, 128], strides = [1, 1]} : vector<16x128xf32> to vector<1x128xf32>
    %87 = vector.extract_strided_slice %30 {offsets = [11, 0], sizes = [1, 128], strides = [1, 1]} : vector<16x128xf32> to vector<1x128xf32>
    %88 = tpu.concatenate %86, %87 in 0 : vector<1x128xf32>, vector<1x128xf32> -> vector<2x128xf32>
    %89 = vector.broadcast %21 : vector<1x128xf32> to vector<2x128xf32>
    %90 = arith.addf %88, %89 : vector<2x128xf32>
    %91 = vector.extract_strided_slice %27 {offsets = [12, 0], sizes = [1, 128], strides = [1, 1]} : vector<16x128xf32> to vector<1x128xf32>
    %92 = vector.extract_strided_slice %30 {offsets = [12, 0], sizes = [1, 128], strides = [1, 1]} : vector<16x128xf32> to vector<1x128xf32>
    %93 = tpu.concatenate %91, %92 in 0 : vector<1x128xf32>, vector<1x128xf32> -> vector<2x128xf32>
    %94 = vector.broadcast %21 : vector<1x128xf32> to vector<2x128xf32>
    %95 = arith.addf %93, %94 : vector<2x128xf32>
    %96 = vector.extract_strided_slice %27 {offsets = [13, 0], sizes = [1, 128], strides = [1, 1]} : vector<16x128xf32> to vector<1x128xf32>
    %97 = vector.extract_strided_slice %30 {offsets = [13, 0], sizes = [1, 128], strides = [1, 1]} : vector<16x128xf32> to vector<1x128xf32>
    %98 = tpu.concatenate %96, %97 in 0 : vector<1x128xf32>, vector<1x128xf32> -> vector<2x128xf32>
    %99 = vector.broadcast %21 : vector<1x128xf32> to vector<2x128xf32>
    %100 = arith.addf %98, %99 : vector<2x128xf32>
    %101 = vector.extract_strided_slice %27 {offsets = [14, 0], sizes = [1, 128], strides = [1, 1]} : vector<16x128xf32> to vector<1x128xf32>
    %102 = vector.extract_strided_slice %30 {offsets = [14, 0], sizes = [1, 128], strides = [1, 1]} : vector<16x128xf32> to vector<1x128xf32>
    %103 = tpu.concatenate %101, %102 in 0 : vector<1x128xf32>, vector<1x128xf32> -> vector<2x128xf32>
    %104 = vector.broadcast %21 : vector<1x128xf32> to vector<2x128xf32>
    %105 = arith.addf %103, %104 : vector<2x128xf32>
    %106 = vector.extract_strided_slice %27 {offsets = [15, 0], sizes = [1, 128], strides = [1, 1]} : vector<16x128xf32> to vector<1x128xf32>
    %107 = vector.extract_strided_slice %30 {offsets = [15, 0], sizes = [1, 128], strides = [1, 1]} : vector<16x128xf32> to vector<1x128xf32>
    %108 = tpu.concatenate %106, %107 in 0 : vector<1x128xf32>, vector<1x128xf32> -> vector<2x128xf32>
    %109 = vector.broadcast %21 : vector<1x128xf32> to vector<2x128xf32>
    %110 = arith.addf %108, %109 : vector<2x128xf32>
    %111 = vector.shape_cast %18 : vector<1x128xi1> to vector<1x128xi1>
    %112 = vector.broadcast %111 : vector<1x128xi1> to vector<2x128xi1>
    %113 = arith.select %112, %35, %110 : vector<2x128xi1>, vector<2x128xf32>
    %c0_16 = arith.constant 0 : index
    %c0_17 = arith.constant 0 : index
    %114 = vector.load %arg5[%c0_16, %c0_17] : memref<32x128xf32, #tpu.memory_space<vmem>>, vector<2x128xf32>
    tpu.vector_store %arg5[%c0_16, %c0_17], %113 {strides = array<i32>} : memref<32x128xf32, #tpu.memory_space<vmem>>, vector<2x128xf32>,
    %115 = vector.shape_cast %18 : vector<1x128xi1> to vector<1x128xi1>
    %116 = vector.broadcast %115 : vector<1x128xi1> to vector<2x128xi1>
    %117 = arith.select %116, %40, %105 : vector<2x128xi1>, vector<2x128xf32>
    %c2 = arith.constant 2 : index
    %c0_18 = arith.constant 0 : index
    %118 = vector.load %arg5[%c2, %c0_18] : memref<32x128xf32, #tpu.memory_space<vmem>>, vector<2x128xf32>
    tpu.vector_store %arg5[%c2, %c0_18], %117 {strides = array<i32>} : memref<32x128xf32, #tpu.memory_space<vmem>>, vector<2x128xf32>,
    %119 = vector.shape_cast %18 : vector<1x128xi1> to vector<1x128xi1>
    %120 = vector.broadcast %119 : vector<1x128xi1> to vector<2x128xi1>
    %121 = arith.select %120, %45, %100 : vector<2x128xi1>, vector<2x128xf32>
    %c4 = arith.constant 4 : index
    %c0_19 = arith.constant 0 : index
    %122 = vector.load %arg5[%c4, %c0_19] : memref<32x128xf32, #tpu.memory_space<vmem>>, vector<2x128xf32>
    tpu.vector_store %arg5[%c4, %c0_19], %121 {strides = array<i32>} : memref<32x128xf32, #tpu.memory_space<vmem>>, vector<2x128xf32>,
    %123 = vector.shape_cast %18 : vector<1x128xi1> to vector<1x128xi1>
    %124 = vector.broadcast %123 : vector<1x128xi1> to vector<2x128xi1>
    %125 = arith.select %124, %50, %95 : vector<2x128xi1>, vector<2x128xf32>
    %c6 = arith.constant 6 : index
    %c0_20 = arith.constant 0 : index
    %126 = vector.load %arg5[%c6, %c0_20] : memref<32x128xf32, #tpu.memory_space<vmem>>, vector<2x128xf32>
    tpu.vector_store %arg5[%c6, %c0_20], %125 {strides = array<i32>} : memref<32x128xf32, #tpu.memory_space<vmem>>, vector<2x128xf32>,
    %127 = vector.shape_cast %18 : vector<1x128xi1> to vector<1x128xi1>
    %128 = vector.broadcast %127 : vector<1x128xi1> to vector<2x128xi1>
    %129 = arith.select %128, %55, %90 : vector<2x128xi1>, vector<2x128xf32>
    %c8_21 = arith.constant 8 : index
    %c0_22 = arith.constant 0 : index
    %130 = vector.load %arg5[%c8_21, %c0_22] : memref<32x128xf32, #tpu.memory_space<vmem>>, vector<2x128xf32>
    tpu.vector_store %arg5[%c8_21, %c0_22], %129 {strides = array<i32>} : memref<32x128xf32, #tpu.memory_space<vmem>>, vector<2x128xf32>,
    %131 = vector.shape_cast %18 : vector<1x128xi1> to vector<1x128xi1>
    %132 = vector.broadcast %131 : vector<1x128xi1> to vector<2x128xi1>
    %133 = arith.select %132, %60, %85 : vector<2x128xi1>, vector<2x128xf32>
    %c10 = arith.constant 10 : index
    %c0_23 = arith.constant 0 : index
    %134 = vector.load %arg5[%c10, %c0_23] : memref<32x128xf32, #tpu.memory_space<vmem>>, vector<2x128xf32>
    tpu.vector_store %arg5[%c10, %c0_23], %133 {strides = array<i32>} : memref<32x128xf32, #tpu.memory_space<vmem>>, vector<2x128xf32>,
    %135 = vector.shape_cast %18 : vector<1x128xi1> to vector<1x128xi1>
    %136 = vector.broadcast %135 : vector<1x128xi1> to vector<2x128xi1>
    %137 = arith.select %136, %65, %80 : vector<2x128xi1>, vector<2x128xf32>
    %c12 = arith.constant 12 : index
    %c0_24 = arith.constant 0 : index
    %138 = vector.load %arg5[%c12, %c0_24] : memref<32x128xf32, #tpu.memory_space<vmem>>, vector<2x128xf32>
    tpu.vector_store %arg5[%c12, %c0_24], %137 {strides = array<i32>} : memref<32x128xf32, #tpu.memory_space<vmem>>, vector<2x128xf32>,
    %139 = vector.shape_cast %18 : vector<1x128xi1> to vector<1x128xi1>
    %140 = vector.broadcast %139 : vector<1x128xi1> to vector<2x128xi1>
    %141 = arith.select %140, %70, %75 : vector<2x128xi1>, vector<2x128xf32>
    %c14 = arith.constant 14 : index
    %c0_25 = arith.constant 0 : index
    %142 = vector.load %arg5[%c14, %c0_25] : memref<32x128xf32, #tpu.memory_space<vmem>>, vector<2x128xf32>
    tpu.vector_store %arg5[%c14, %c0_25], %141 {strides = array<i32>} : memref<32x128xf32, #tpu.memory_space<vmem>>, vector<2x128xf32>,
    %143 = vector.shape_cast %18 : vector<1x128xi1> to vector<1x128xi1>
    %144 = vector.broadcast %143 : vector<1x128xi1> to vector<2x128xi1>
    %145 = arith.select %144, %75, %70 : vector<2x128xi1>, vector<2x128xf32>
    %c16 = arith.constant 16 : index
    %c0_26 = arith.constant 0 : index
    %146 = vector.load %arg5[%c16, %c0_26] : memref<32x128xf32, #tpu.memory_space<vmem>>, vector<2x128xf32>
    tpu.vector_store %arg5[%c16, %c0_26], %145 {strides = array<i32>} : memref<32x128xf32, #tpu.memory_space<vmem>>, vector<2x128xf32>,
    %147 = vector.shape_cast %18 : vector<1x128xi1> to vector<1x128xi1>
    %148 = vector.broadcast %147 : vector<1x128xi1> to vector<2x128xi1>
    %149 = arith.select %148, %80, %65 : vector<2x128xi1>, vector<2x128xf32>
    %c18 = arith.constant 18 : index
    %c0_27 = arith.constant 0 : index
    %150 = vector.load %arg5[%c18, %c0_27] : memref<32x128xf32, #tpu.memory_space<vmem>>, vector<2x128xf32>
    tpu.vector_store %arg5[%c18, %c0_27], %149 {strides = array<i32>} : memref<32x128xf32, #tpu.memory_space<vmem>>, vector<2x128xf32>,
    %151 = vector.shape_cast %18 : vector<1x128xi1> to vector<1x128xi1>
    %152 = vector.broadcast %151 : vector<1x128xi1> to vector<2x128xi1>
    %153 = arith.select %152, %85, %60 : vector<2x128xi1>, vector<2x128xf32>
    %c20 = arith.constant 20 : index
    %c0_28 = arith.constant 0 : index
    %154 = vector.load %arg5[%c20, %c0_28] : memref<32x128xf32, #tpu.memory_space<vmem>>, vector<2x128xf32>
    tpu.vector_store %arg5[%c20, %c0_28], %153 {strides = array<i32>} : memref<32x128xf32, #tpu.memory_space<vmem>>, vector<2x128xf32>,
    %155 = vector.shape_cast %18 : vector<1x128xi1> to vector<1x128xi1>
    %156 = vector.broadcast %155 : vector<1x128xi1> to vector<2x128xi1>
    %157 = arith.select %156, %90, %55 : vector<2x128xi1>, vector<2x128xf32>
    %c22 = arith.constant 22 : index
    %c0_29 = arith.constant 0 : index
    %158 = vector.load %arg5[%c22, %c0_29] : memref<32x128xf32, #tpu.memory_space<vmem>>, vector<2x128xf32>
    tpu.vector_store %arg5[%c22, %c0_29], %157 {strides = array<i32>} : memref<32x128xf32, #tpu.memory_space<vmem>>, vector<2x128xf32>,
    %159 = vector.shape_cast %18 : vector<1x128xi1> to vector<1x128xi1>
    %160 = vector.broadcast %159 : vector<1x128xi1> to vector<2x128xi1>
    %161 = arith.select %160, %95, %50 : vector<2x128xi1>, vector<2x128xf32>
    %c24 = arith.constant 24 : index
    %c0_30 = arith.constant 0 : index
    %162 = vector.load %arg5[%c24, %c0_30] : memref<32x128xf32, #tpu.memory_space<vmem>>, vector<2x128xf32>
    tpu.vector_store %arg5[%c24, %c0_30], %161 {strides = array<i32>} : memref<32x128xf32, #tpu.memory_space<vmem>>, vector<2x128xf32>,
    %163 = vector.shape_cast %18 : vector<1x128xi1> to vector<1x128xi1>
    %164 = vector.broadcast %163 : vector<1x128xi1> to vector<2x128xi1>
    %165 = arith.select %164, %100, %45 : vector<2x128xi1>, vector<2x128xf32>
    %c26 = arith.constant 26 : index
    %c0_31 = arith.constant 0 : index
    %166 = vector.load %arg5[%c26, %c0_31] : memref<32x128xf32, #tpu.memory_space<vmem>>, vector<2x128xf32>
    tpu.vector_store %arg5[%c26, %c0_31], %165 {strides = array<i32>} : memref<32x128xf32, #tpu.memory_space<vmem>>, vector<2x128xf32>,
    %167 = vector.shape_cast %18 : vector<1x128xi1> to vector<1x128xi1>
    %168 = vector.broadcast %167 : vector<1x128xi1> to vector<2x128xi1>
    %169 = arith.select %168, %105, %40 : vector<2x128xi1>, vector<2x128xf32>
    %c28 = arith.constant 28 : index
    %c0_32 = arith.constant 0 : index
    %170 = vector.load %arg5[%c28, %c0_32] : memref<32x128xf32, #tpu.memory_space<vmem>>, vector<2x128xf32>
    tpu.vector_store %arg5[%c28, %c0_32], %169 {strides = array<i32>} : memref<32x128xf32, #tpu.memory_space<vmem>>, vector<2x128xf32>,
    %171 = vector.shape_cast %18 : vector<1x128xi1> to vector<1x128xi1>
    %172 = vector.broadcast %171 : vector<1x128xi1> to vector<2x128xi1>
    %173 = arith.select %172, %110, %35 : vector<2x128xi1>, vector<2x128xf32>
    %c30 = arith.constant 30 : index
    %c0_33 = arith.constant 0 : index
    %174 = vector.load %arg5[%c30, %c0_33] : memref<32x128xf32, #tpu.memory_space<vmem>>, vector<2x128xf32>
    tpu.vector_store %arg5[%c30, %c0_33], %173 {strides = array<i32>} : memref<32x128xf32, #tpu.memory_space<vmem>>, vector<2x128xf32>,
    %cst_34 = arith.constant 0.000000e+00 : f32
    %175 = vector.broadcast %cst_34 : f32 to vector<2x32xf32>
    %cst_35 = arith.constant 0.000000e+00 : f32
    %176 = vector.broadcast %cst_35 : f32 to vector<2x32xf32>
    %c0_36 = arith.constant 0 : index
    %c0_37 = arith.constant 0 : index
    %177 = vector.load %arg5[%c0_36, %c0_37] : memref<32x128xf32, #tpu.memory_space<vmem>>, vector<2x128xf32>
    %178 = arith.truncf %175 : vector<2x32xf32> to vector<2x32xbf16>
    %cst_38 = arith.constant dense<0.000000e+00> : vector<2x128xf32>
    %179 = tpu.matmul %178, %23, %cst_38 {dimension_numbers = #tpu.dot_dimension_numbers<[1], [0], [0], [1], [0, 0, 1, 1], [], []>} : vector<2x32xbf16>, vector<32x128xbf16>, vector<2x128xf32> -> vector<2x128xf32>
    %180 = arith.addf %177, %179 : vector<2x128xf32>
    %181 = arith.negf %180 : vector<2x128xf32>
    %182 = math.exp %181 : vector<2x128xf32>
    %cst_39 = arith.constant 1.000000e+00 : f32
    %183 = vector.broadcast %cst_39 : f32 to vector<2x128xf32>
    %184 = arith.addf %183, %182 : vector<2x128xf32>
    %185 = arith.divf %183, %184 : vector<2x128xf32>
    %186 = math.tanh %180 : vector<2x128xf32>
    %187 = vector.extract_strided_slice %185 {offsets = [0, 0], sizes = [2, 32], strides = [1, 1]} : vector<2x128xf32> to vector<2x32xf32>
    %188 = vector.extract_strided_slice %185 {offsets = [0, 32], sizes = [2, 32], strides = [1, 1]} : vector<2x128xf32> to vector<2x32xf32>
    %189 = vector.extract_strided_slice %186 {offsets = [0, 64], sizes = [2, 32], strides = [1, 1]} : vector<2x128xf32> to vector<2x32xf32>
    %190 = vector.extract_strided_slice %185 {offsets = [0, 96], sizes = [2, 32], strides = [1, 1]} : vector<2x128xf32> to vector<2x32xf32>
    %191 = arith.mulf %188, %176 : vector<2x32xf32>
    %192 = arith.mulf %187, %189 : vector<2x32xf32>
    %193 = arith.addf %191, %192 : vector<2x32xf32>
    %194 = math.tanh %193 : vector<2x32xf32>
    %195 = arith.mulf %190, %194 : vector<2x32xf32>
    %196 = vector.extract_strided_slice %195 {offsets = [0, 0], sizes = [2, 16], strides = [1, 1]} : vector<2x32xf32> to vector<2x16xf32>
    %c0_40 = arith.constant 0 : index
    %c0_41 = arith.constant 0 : index
    %197 = vector.load %arg6[%c0_40, %c0_41] : memref<32x32xf32, #tpu.memory_space<vmem>>, vector<2x16xf32>
    tpu.vector_store %arg6[%c0_40, %c0_41], %196 {strides = array<i32>} : memref<32x32xf32, #tpu.memory_space<vmem>>, vector<2x16xf32>,
    %198 = vector.extract_strided_slice %195 {offsets = [0, 16], sizes = [2, 16], strides = [1, 1]} : vector<2x32xf32> to vector<2x16xf32>
    %c30_42 = arith.constant 30 : index
    %c16_43 = arith.constant 16 : index
    %199 = vector.load %arg6[%c30_42, %c16_43] : memref<32x32xf32, #tpu.memory_space<vmem>>, vector<2x16xf32>
    tpu.vector_store %arg6[%c30_42, %c16_43], %198 {strides = array<i32>} : memref<32x32xf32, #tpu.memory_space<vmem>>, vector<2x16xf32>,
    %c2_44 = arith.constant 2 : index
    %c0_45 = arith.constant 0 : index
    %200 = vector.load %arg5[%c2_44, %c0_45] : memref<32x128xf32, #tpu.memory_space<vmem>>, vector<2x128xf32>
    %201 = arith.truncf %195 : vector<2x32xf32> to vector<2x32xbf16>
    %cst_46 = arith.constant dense<0.000000e+00> : vector<2x128xf32>
    %202 = tpu.matmul %201, %23, %cst_46 {dimension_numbers = #tpu.dot_dimension_numbers<[1], [0], [0], [1], [0, 0, 1, 1], [], []>} : vector<2x32xbf16>, vector<32x128xbf16>, vector<2x128xf32> -> vector<2x128xf32>
    %203 = arith.addf %200, %202 : vector<2x128xf32>
    %204 = arith.negf %203 : vector<2x128xf32>
    %205 = math.exp %204 : vector<2x128xf32>
    %cst_47 = arith.constant 1.000000e+00 : f32
    %206 = vector.broadcast %cst_47 : f32 to vector<2x128xf32>
    %207 = arith.addf %206, %205 : vector<2x128xf32>
    %208 = arith.divf %206, %207 : vector<2x128xf32>
    %209 = math.tanh %203 : vector<2x128xf32>
    %210 = vector.extract_strided_slice %208 {offsets = [0, 0], sizes = [2, 32], strides = [1, 1]} : vector<2x128xf32> to vector<2x32xf32>
    %211 = vector.extract_strided_slice %208 {offsets = [0, 32], sizes = [2, 32], strides = [1, 1]} : vector<2x128xf32> to vector<2x32xf32>
    %212 = vector.extract_strided_slice %209 {offsets = [0, 64], sizes = [2, 32], strides = [1, 1]} : vector<2x128xf32> to vector<2x32xf32>
    %213 = vector.extract_strided_slice %208 {offsets = [0, 96], sizes = [2, 32], strides = [1, 1]} : vector<2x128xf32> to vector<2x32xf32>
    %214 = arith.mulf %211, %193 : vector<2x32xf32>
    %215 = arith.mulf %210, %212 : vector<2x32xf32>
    %216 = arith.addf %214, %215 : vector<2x32xf32>
    %217 = math.tanh %216 : vector<2x32xf32>
    %218 = arith.mulf %213, %217 : vector<2x32xf32>
    %219 = vector.extract_strided_slice %218 {offsets = [0, 0], sizes = [2, 16], strides = [1, 1]} : vector<2x32xf32> to vector<2x16xf32>
    %c2_48 = arith.constant 2 : index
    %c0_49 = arith.constant 0 : index
    %220 = vector.load %arg6[%c2_48, %c0_49] : memref<32x32xf32, #tpu.memory_space<vmem>>, vector<2x16xf32>
    tpu.vector_store %arg6[%c2_48, %c0_49], %219 {strides = array<i32>} : memref<32x32xf32, #tpu.memory_space<vmem>>, vector<2x16xf32>,
    %221 = vector.extract_strided_slice %218 {offsets = [0, 16], sizes = [2, 16], strides = [1, 1]} : vector<2x32xf32> to vector<2x16xf32>
    %c28_50 = arith.constant 28 : index
    %c16_51 = arith.constant 16 : index
    %222 = vector.load %arg6[%c28_50, %c16_51] : memref<32x32xf32, #tpu.memory_space<vmem>>, vector<2x16xf32>
    tpu.vector_store %arg6[%c28_50, %c16_51], %221 {strides = array<i32>} : memref<32x32xf32, #tpu.memory_space<vmem>>, vector<2x16xf32>,
    %c4_52 = arith.constant 4 : index
    %c0_53 = arith.constant 0 : index
    %223 = vector.load %arg5[%c4_52, %c0_53] : memref<32x128xf32, #tpu.memory_space<vmem>>, vector<2x128xf32>
    %224 = arith.truncf %218 : vector<2x32xf32> to vector<2x32xbf16>
    %cst_54 = arith.constant dense<0.000000e+00> : vector<2x128xf32>
    %225 = tpu.matmul %224, %23, %cst_54 {dimension_numbers = #tpu.dot_dimension_numbers<[1], [0], [0], [1], [0, 0, 1, 1], [], []>} : vector<2x32xbf16>, vector<32x128xbf16>, vector<2x128xf32> -> vector<2x128xf32>
    %226 = arith.addf %223, %225 : vector<2x128xf32>
    %227 = arith.negf %226 : vector<2x128xf32>
    %228 = math.exp %227 : vector<2x128xf32>
    %cst_55 = arith.constant 1.000000e+00 : f32
    %229 = vector.broadcast %cst_55 : f32 to vector<2x128xf32>
    %230 = arith.addf %229, %228 : vector<2x128xf32>
    %231 = arith.divf %229, %230 : vector<2x128xf32>
    %232 = math.tanh %226 : vector<2x128xf32>
    %233 = vector.extract_strided_slice %231 {offsets = [0, 0], sizes = [2, 32], strides = [1, 1]} : vector<2x128xf32> to vector<2x32xf32>
    %234 = vector.extract_strided_slice %231 {offsets = [0, 32], sizes = [2, 32], strides = [1, 1]} : vector<2x128xf32> to vector<2x32xf32>
    %235 = vector.extract_strided_slice %232 {offsets = [0, 64], sizes = [2, 32], strides = [1, 1]} : vector<2x128xf32> to vector<2x32xf32>
    %236 = vector.extract_strided_slice %231 {offsets = [0, 96], sizes = [2, 32], strides = [1, 1]} : vector<2x128xf32> to vector<2x32xf32>
    %237 = arith.mulf %234, %216 : vector<2x32xf32>
    %238 = arith.mulf %233, %235 : vector<2x32xf32>
    %239 = arith.addf %237, %238 : vector<2x32xf32>
    %240 = math.tanh %239 : vector<2x32xf32>
    %241 = arith.mulf %236, %240 : vector<2x32xf32>
    %242 = vector.extract_strided_slice %241 {offsets = [0, 0], sizes = [2, 16], strides = [1, 1]} : vector<2x32xf32> to vector<2x16xf32>
    %c4_56 = arith.constant 4 : index
    %c0_57 = arith.constant 0 : index
    %243 = vector.load %arg6[%c4_56, %c0_57] : memref<32x32xf32, #tpu.memory_space<vmem>>, vector<2x16xf32>
    tpu.vector_store %arg6[%c4_56, %c0_57], %242 {strides = array<i32>} : memref<32x32xf32, #tpu.memory_space<vmem>>, vector<2x16xf32>,
    %244 = vector.extract_strided_slice %241 {offsets = [0, 16], sizes = [2, 16], strides = [1, 1]} : vector<2x32xf32> to vector<2x16xf32>
    %c26_58 = arith.constant 26 : index
    %c16_59 = arith.constant 16 : index
    %245 = vector.load %arg6[%c26_58, %c16_59] : memref<32x32xf32, #tpu.memory_space<vmem>>, vector<2x16xf32>
    tpu.vector_store %arg6[%c26_58, %c16_59], %244 {strides = array<i32>} : memref<32x32xf32, #tpu.memory_space<vmem>>, vector<2x16xf32>,
    %c6_60 = arith.constant 6 : index
    %c0_61 = arith.constant 0 : index
    %246 = vector.load %arg5[%c6_60, %c0_61] : memref<32x128xf32, #tpu.memory_space<vmem>>, vector<2x128xf32>
    %247 = arith.truncf %241 : vector<2x32xf32> to vector<2x32xbf16>
    %cst_62 = arith.constant dense<0.000000e+00> : vector<2x128xf32>
    %248 = tpu.matmul %247, %23, %cst_62 {dimension_numbers = #tpu.dot_dimension_numbers<[1], [0], [0], [1], [0, 0, 1, 1], [], []>} : vector<2x32xbf16>, vector<32x128xbf16>, vector<2x128xf32> -> vector<2x128xf32>
    %249 = arith.addf %246, %248 : vector<2x128xf32>
    %250 = arith.negf %249 : vector<2x128xf32>
    %251 = math.exp %250 : vector<2x128xf32>
    %cst_63 = arith.constant 1.000000e+00 : f32
    %252 = vector.broadcast %cst_63 : f32 to vector<2x128xf32>
    %253 = arith.addf %252, %251 : vector<2x128xf32>
    %254 = arith.divf %252, %253 : vector<2x128xf32>
    %255 = math.tanh %249 : vector<2x128xf32>
    %256 = vector.extract_strided_slice %254 {offsets = [0, 0], sizes = [2, 32], strides = [1, 1]} : vector<2x128xf32> to vector<2x32xf32>
    %257 = vector.extract_strided_slice %254 {offsets = [0, 32], sizes = [2, 32], strides = [1, 1]} : vector<2x128xf32> to vector<2x32xf32>
    %258 = vector.extract_strided_slice %255 {offsets = [0, 64], sizes = [2, 32], strides = [1, 1]} : vector<2x128xf32> to vector<2x32xf32>
    %259 = vector.extract_strided_slice %254 {offsets = [0, 96], sizes = [2, 32], strides = [1, 1]} : vector<2x128xf32> to vector<2x32xf32>
    %260 = arith.mulf %257, %239 : vector<2x32xf32>
    %261 = arith.mulf %256, %258 : vector<2x32xf32>
    %262 = arith.addf %260, %261 : vector<2x32xf32>
    %263 = math.tanh %262 : vector<2x32xf32>
    %264 = arith.mulf %259, %263 : vector<2x32xf32>
    %265 = vector.extract_strided_slice %264 {offsets = [0, 0], sizes = [2, 16], strides = [1, 1]} : vector<2x32xf32> to vector<2x16xf32>
    %c6_64 = arith.constant 6 : index
    %c0_65 = arith.constant 0 : index
    %266 = vector.load %arg6[%c6_64, %c0_65] : memref<32x32xf32, #tpu.memory_space<vmem>>, vector<2x16xf32>
    tpu.vector_store %arg6[%c6_64, %c0_65], %265 {strides = array<i32>} : memref<32x32xf32, #tpu.memory_space<vmem>>, vector<2x16xf32>,
    %267 = vector.extract_strided_slice %264 {offsets = [0, 16], sizes = [2, 16], strides = [1, 1]} : vector<2x32xf32> to vector<2x16xf32>
    %c24_66 = arith.constant 24 : index
    %c16_67 = arith.constant 16 : index
    %268 = vector.load %arg6[%c24_66, %c16_67] : memref<32x32xf32, #tpu.memory_space<vmem>>, vector<2x16xf32>
    tpu.vector_store %arg6[%c24_66, %c16_67], %267 {strides = array<i32>} : memref<32x32xf32, #tpu.memory_space<vmem>>, vector<2x16xf32>,
    %c8_68 = arith.constant 8 : index
    %c0_69 = arith.constant 0 : index
    %269 = vector.load %arg5[%c8_68, %c0_69] : memref<32x128xf32, #tpu.memory_space<vmem>>, vector<2x128xf32>
    %270 = arith.truncf %264 : vector<2x32xf32> to vector<2x32xbf16>
    %cst_70 = arith.constant dense<0.000000e+00> : vector<2x128xf32>
    %271 = tpu.matmul %270, %23, %cst_70 {dimension_numbers = #tpu.dot_dimension_numbers<[1], [0], [0], [1], [0, 0, 1, 1], [], []>} : vector<2x32xbf16>, vector<32x128xbf16>, vector<2x128xf32> -> vector<2x128xf32>
    %272 = arith.addf %269, %271 : vector<2x128xf32>
    %273 = arith.negf %272 : vector<2x128xf32>
    %274 = math.exp %273 : vector<2x128xf32>
    %cst_71 = arith.constant 1.000000e+00 : f32
    %275 = vector.broadcast %cst_71 : f32 to vector<2x128xf32>
    %276 = arith.addf %275, %274 : vector<2x128xf32>
    %277 = arith.divf %275, %276 : vector<2x128xf32>
    %278 = math.tanh %272 : vector<2x128xf32>
    %279 = vector.extract_strided_slice %277 {offsets = [0, 0], sizes = [2, 32], strides = [1, 1]} : vector<2x128xf32> to vector<2x32xf32>
    %280 = vector.extract_strided_slice %277 {offsets = [0, 32], sizes = [2, 32], strides = [1, 1]} : vector<2x128xf32> to vector<2x32xf32>
    %281 = vector.extract_strided_slice %278 {offsets = [0, 64], sizes = [2, 32], strides = [1, 1]} : vector<2x128xf32> to vector<2x32xf32>
    %282 = vector.extract_strided_slice %277 {offsets = [0, 96], sizes = [2, 32], strides = [1, 1]} : vector<2x128xf32> to vector<2x32xf32>
    %283 = arith.mulf %280, %262 : vector<2x32xf32>
    %284 = arith.mulf %279, %281 : vector<2x32xf32>
    %285 = arith.addf %283, %284 : vector<2x32xf32>
    %286 = math.tanh %285 : vector<2x32xf32>
    %287 = arith.mulf %282, %286 : vector<2x32xf32>
    %288 = vector.extract_strided_slice %287 {offsets = [0, 0], sizes = [2, 16], strides = [1, 1]} : vector<2x32xf32> to vector<2x16xf32>
    %c8_72 = arith.constant 8 : index
    %c0_73 = arith.constant 0 : index
    %289 = vector.load %arg6[%c8_72, %c0_73] : memref<32x32xf32, #tpu.memory_space<vmem>>, vector<2x16xf32>
    tpu.vector_store %arg6[%c8_72, %c0_73], %288 {strides = array<i32>} : memref<32x32xf32, #tpu.memory_space<vmem>>, vector<2x16xf32>,
    %290 = vector.extract_strided_slice %287 {offsets = [0, 16], sizes = [2, 16], strides = [1, 1]} : vector<2x32xf32> to vector<2x16xf32>
    %c22_74 = arith.constant 22 : index
    %c16_75 = arith.constant 16 : index
    %291 = vector.load %arg6[%c22_74, %c16_75] : memref<32x32xf32, #tpu.memory_space<vmem>>, vector<2x16xf32>
    tpu.vector_store %arg6[%c22_74, %c16_75], %290 {strides = array<i32>} : memref<32x32xf32, #tpu.memory_space<vmem>>, vector<2x16xf32>,
    %c10_76 = arith.constant 10 : index
    %c0_77 = arith.constant 0 : index
    %292 = vector.load %arg5[%c10_76, %c0_77] : memref<32x128xf32, #tpu.memory_space<vmem>>, vector<2x128xf32>
    %293 = arith.truncf %287 : vector<2x32xf32> to vector<2x32xbf16>
    %cst_78 = arith.constant dense<0.000000e+00> : vector<2x128xf32>
    %294 = tpu.matmul %293, %23, %cst_78 {dimension_numbers = #tpu.dot_dimension_numbers<[1], [0], [0], [1], [0, 0, 1, 1], [], []>} : vector<2x32xbf16>, vector<32x128xbf16>, vector<2x128xf32> -> vector<2x128xf32>
    %295 = arith.addf %292, %294 : vector<2x128xf32>
    %296 = arith.negf %295 : vector<2x128xf32>
    %297 = math.exp %296 : vector<2x128xf32>
    %cst_79 = arith.constant 1.000000e+00 : f32
    %298 = vector.broadcast %cst_79 : f32 to vector<2x128xf32>
    %299 = arith.addf %298, %297 : vector<2x128xf32>
    %300 = arith.divf %298, %299 : vector<2x128xf32>
    %301 = math.tanh %295 : vector<2x128xf32>
    %302 = vector.extract_strided_slice %300 {offsets = [0, 0], sizes = [2, 32], strides = [1, 1]} : vector<2x128xf32> to vector<2x32xf32>
    %303 = vector.extract_strided_slice %300 {offsets = [0, 32], sizes = [2, 32], strides = [1, 1]} : vector<2x128xf32> to vector<2x32xf32>
    %304 = vector.extract_strided_slice %301 {offsets = [0, 64], sizes = [2, 32], strides = [1, 1]} : vector<2x128xf32> to vector<2x32xf32>
    %305 = vector.extract_strided_slice %300 {offsets = [0, 96], sizes = [2, 32], strides = [1, 1]} : vector<2x128xf32> to vector<2x32xf32>
    %306 = arith.mulf %303, %285 : vector<2x32xf32>
    %307 = arith.mulf %302, %304 : vector<2x32xf32>
    %308 = arith.addf %306, %307 : vector<2x32xf32>
    %309 = math.tanh %308 : vector<2x32xf32>
    %310 = arith.mulf %305, %309 : vector<2x32xf32>
    %311 = vector.extract_strided_slice %310 {offsets = [0, 0], sizes = [2, 16], strides = [1, 1]} : vector<2x32xf32> to vector<2x16xf32>
    %c10_80 = arith.constant 10 : index
    %c0_81 = arith.constant 0 : index
    %312 = vector.load %arg6[%c10_80, %c0_81] : memref<32x32xf32, #tpu.memory_space<vmem>>, vector<2x16xf32>
    tpu.vector_store %arg6[%c10_80, %c0_81], %311 {strides = array<i32>} : memref<32x32xf32, #tpu.memory_space<vmem>>, vector<2x16xf32>,
    %313 = vector.extract_strided_slice %310 {offsets = [0, 16], sizes = [2, 16], strides = [1, 1]} : vector<2x32xf32> to vector<2x16xf32>
    %c20_82 = arith.constant 20 : index
    %c16_83 = arith.constant 16 : index
    %314 = vector.load %arg6[%c20_82, %c16_83] : memref<32x32xf32, #tpu.memory_space<vmem>>, vector<2x16xf32>
    tpu.vector_store %arg6[%c20_82, %c16_83], %313 {strides = array<i32>} : memref<32x32xf32, #tpu.memory_space<vmem>>, vector<2x16xf32>,
    %c12_84 = arith.constant 12 : index
    %c0_85 = arith.constant 0 : index
    %315 = vector.load %arg5[%c12_84, %c0_85] : memref<32x128xf32, #tpu.memory_space<vmem>>, vector<2x128xf32>
    %316 = arith.truncf %310 : vector<2x32xf32> to vector<2x32xbf16>
    %cst_86 = arith.constant dense<0.000000e+00> : vector<2x128xf32>
    %317 = tpu.matmul %316, %23, %cst_86 {dimension_numbers = #tpu.dot_dimension_numbers<[1], [0], [0], [1], [0, 0, 1, 1], [], []>} : vector<2x32xbf16>, vector<32x128xbf16>, vector<2x128xf32> -> vector<2x128xf32>
    %318 = arith.addf %315, %317 : vector<2x128xf32>
    %319 = arith.negf %318 : vector<2x128xf32>
    %320 = math.exp %319 : vector<2x128xf32>
    %cst_87 = arith.constant 1.000000e+00 : f32
    %321 = vector.broadcast %cst_87 : f32 to vector<2x128xf32>
    %322 = arith.addf %321, %320 : vector<2x128xf32>
    %323 = arith.divf %321, %322 : vector<2x128xf32>
    %324 = math.tanh %318 : vector<2x128xf32>
    %325 = vector.extract_strided_slice %323 {offsets = [0, 0], sizes = [2, 32], strides = [1, 1]} : vector<2x128xf32> to vector<2x32xf32>
    %326 = vector.extract_strided_slice %323 {offsets = [0, 32], sizes = [2, 32], strides = [1, 1]} : vector<2x128xf32> to vector<2x32xf32>
    %327 = vector.extract_strided_slice %324 {offsets = [0, 64], sizes = [2, 32], strides = [1, 1]} : vector<2x128xf32> to vector<2x32xf32>
    %328 = vector.extract_strided_slice %323 {offsets = [0, 96], sizes = [2, 32], strides = [1, 1]} : vector<2x128xf32> to vector<2x32xf32>
    %329 = arith.mulf %326, %308 : vector<2x32xf32>
    %330 = arith.mulf %325, %327 : vector<2x32xf32>
    %331 = arith.addf %329, %330 : vector<2x32xf32>
    %332 = math.tanh %331 : vector<2x32xf32>
    %333 = arith.mulf %328, %332 : vector<2x32xf32>
    %334 = vector.extract_strided_slice %333 {offsets = [0, 0], sizes = [2, 16], strides = [1, 1]} : vector<2x32xf32> to vector<2x16xf32>
    %c12_88 = arith.constant 12 : index
    %c0_89 = arith.constant 0 : index
    %335 = vector.load %arg6[%c12_88, %c0_89] : memref<32x32xf32, #tpu.memory_space<vmem>>, vector<2x16xf32>
    tpu.vector_store %arg6[%c12_88, %c0_89], %334 {strides = array<i32>} : memref<32x32xf32, #tpu.memory_space<vmem>>, vector<2x16xf32>,
    %336 = vector.extract_strided_slice %333 {offsets = [0, 16], sizes = [2, 16], strides = [1, 1]} : vector<2x32xf32> to vector<2x16xf32>
    %c18_90 = arith.constant 18 : index
    %c16_91 = arith.constant 16 : index
    %337 = vector.load %arg6[%c18_90, %c16_91] : memref<32x32xf32, #tpu.memory_space<vmem>>, vector<2x16xf32>
    tpu.vector_store %arg6[%c18_90, %c16_91], %336 {strides = array<i32>} : memref<32x32xf32, #tpu.memory_space<vmem>>, vector<2x16xf32>,
    %c14_92 = arith.constant 14 : index
    %c0_93 = arith.constant 0 : index
    %338 = vector.load %arg5[%c14_92, %c0_93] : memref<32x128xf32, #tpu.memory_space<vmem>>, vector<2x128xf32>
    %339 = arith.truncf %333 : vector<2x32xf32> to vector<2x32xbf16>
    %cst_94 = arith.constant dense<0.000000e+00> : vector<2x128xf32>
    %340 = tpu.matmul %339, %23, %cst_94 {dimension_numbers = #tpu.dot_dimension_numbers<[1], [0], [0], [1], [0, 0, 1, 1], [], []>} : vector<2x32xbf16>, vector<32x128xbf16>, vector<2x128xf32> -> vector<2x128xf32>
    %341 = arith.addf %338, %340 : vector<2x128xf32>
    %342 = arith.negf %341 : vector<2x128xf32>
    %343 = math.exp %342 : vector<2x128xf32>
    %cst_95 = arith.constant 1.000000e+00 : f32
    %344 = vector.broadcast %cst_95 : f32 to vector<2x128xf32>
    %345 = arith.addf %344, %343 : vector<2x128xf32>
    %346 = arith.divf %344, %345 : vector<2x128xf32>
    %347 = math.tanh %341 : vector<2x128xf32>
    %348 = vector.extract_strided_slice %346 {offsets = [0, 0], sizes = [2, 32], strides = [1, 1]} : vector<2x128xf32> to vector<2x32xf32>
    %349 = vector.extract_strided_slice %346 {offsets = [0, 32], sizes = [2, 32], strides = [1, 1]} : vector<2x128xf32> to vector<2x32xf32>
    %350 = vector.extract_strided_slice %347 {offsets = [0, 64], sizes = [2, 32], strides = [1, 1]} : vector<2x128xf32> to vector<2x32xf32>
    %351 = vector.extract_strided_slice %346 {offsets = [0, 96], sizes = [2, 32], strides = [1, 1]} : vector<2x128xf32> to vector<2x32xf32>
    %352 = arith.mulf %349, %331 : vector<2x32xf32>
    %353 = arith.mulf %348, %350 : vector<2x32xf32>
    %354 = arith.addf %352, %353 : vector<2x32xf32>
    %355 = math.tanh %354 : vector<2x32xf32>
    %356 = arith.mulf %351, %355 : vector<2x32xf32>
    %357 = vector.extract_strided_slice %356 {offsets = [0, 0], sizes = [2, 16], strides = [1, 1]} : vector<2x32xf32> to vector<2x16xf32>
    %c14_96 = arith.constant 14 : index
    %c0_97 = arith.constant 0 : index
    %358 = vector.load %arg6[%c14_96, %c0_97] : memref<32x32xf32, #tpu.memory_space<vmem>>, vector<2x16xf32>
    tpu.vector_store %arg6[%c14_96, %c0_97], %357 {strides = array<i32>} : memref<32x32xf32, #tpu.memory_space<vmem>>, vector<2x16xf32>,
    %359 = vector.extract_strided_slice %356 {offsets = [0, 16], sizes = [2, 16], strides = [1, 1]} : vector<2x32xf32> to vector<2x16xf32>
    %c16_98 = arith.constant 16 : index
    %c16_99 = arith.constant 16 : index
    %360 = vector.load %arg6[%c16_98, %c16_99] : memref<32x32xf32, #tpu.memory_space<vmem>>, vector<2x16xf32>
    tpu.vector_store %arg6[%c16_98, %c16_99], %359 {strides = array<i32>} : memref<32x32xf32, #tpu.memory_space<vmem>>, vector<2x16xf32>,
    %c16_100 = arith.constant 16 : index
    %c0_101 = arith.constant 0 : index
    %361 = vector.load %arg5[%c16_100, %c0_101] : memref<32x128xf32, #tpu.memory_space<vmem>>, vector<2x128xf32>
    %362 = arith.truncf %356 : vector<2x32xf32> to vector<2x32xbf16>
    %cst_102 = arith.constant dense<0.000000e+00> : vector<2x128xf32>
    %363 = tpu.matmul %362, %23, %cst_102 {dimension_numbers = #tpu.dot_dimension_numbers<[1], [0], [0], [1], [0, 0, 1, 1], [], []>} : vector<2x32xbf16>, vector<32x128xbf16>, vector<2x128xf32> -> vector<2x128xf32>
    %364 = arith.addf %361, %363 : vector<2x128xf32>
    %365 = arith.negf %364 : vector<2x128xf32>
    %366 = math.exp %365 : vector<2x128xf32>
    %cst_103 = arith.constant 1.000000e+00 : f32
    %367 = vector.broadcast %cst_103 : f32 to vector<2x128xf32>
    %368 = arith.addf %367, %366 : vector<2x128xf32>
    %369 = arith.divf %367, %368 : vector<2x128xf32>
    %370 = math.tanh %364 : vector<2x128xf32>
    %371 = vector.extract_strided_slice %369 {offsets = [0, 0], sizes = [2, 32], strides = [1, 1]} : vector<2x128xf32> to vector<2x32xf32>
    %372 = vector.extract_strided_slice %369 {offsets = [0, 32], sizes = [2, 32], strides = [1, 1]} : vector<2x128xf32> to vector<2x32xf32>
    %373 = vector.extract_strided_slice %370 {offsets = [0, 64], sizes = [2, 32], strides = [1, 1]} : vector<2x128xf32> to vector<2x32xf32>
    %374 = vector.extract_strided_slice %369 {offsets = [0, 96], sizes = [2, 32], strides = [1, 1]} : vector<2x128xf32> to vector<2x32xf32>
    %375 = arith.mulf %372, %354 : vector<2x32xf32>
    %376 = arith.mulf %371, %373 : vector<2x32xf32>
    %377 = arith.addf %375, %376 : vector<2x32xf32>
    %378 = math.tanh %377 : vector<2x32xf32>
    %379 = arith.mulf %374, %378 : vector<2x32xf32>
    %380 = vector.extract_strided_slice %379 {offsets = [0, 0], sizes = [2, 16], strides = [1, 1]} : vector<2x32xf32> to vector<2x16xf32>
    %c16_104 = arith.constant 16 : index
    %c0_105 = arith.constant 0 : index
    %381 = vector.load %arg6[%c16_104, %c0_105] : memref<32x32xf32, #tpu.memory_space<vmem>>, vector<2x16xf32>
    tpu.vector_store %arg6[%c16_104, %c0_105], %380 {strides = array<i32>} : memref<32x32xf32, #tpu.memory_space<vmem>>, vector<2x16xf32>,
    %382 = vector.extract_strided_slice %379 {offsets = [0, 16], sizes = [2, 16], strides = [1, 1]} : vector<2x32xf32> to vector<2x16xf32>
    %c14_106 = arith.constant 14 : index
    %c16_107 = arith.constant 16 : index
    %383 = vector.load %arg6[%c14_106, %c16_107] : memref<32x32xf32, #tpu.memory_space<vmem>>, vector<2x16xf32>
    tpu.vector_store %arg6[%c14_106, %c16_107], %382 {strides = array<i32>} : memref<32x32xf32, #tpu.memory_space<vmem>>, vector<2x16xf32>,
    %c18_108 = arith.constant 18 : index
    %c0_109 = arith.constant 0 : index
    %384 = vector.load %arg5[%c18_108, %c0_109] : memref<32x128xf32, #tpu.memory_space<vmem>>, vector<2x128xf32>
    %385 = arith.truncf %379 : vector<2x32xf32> to vector<2x32xbf16>
    %cst_110 = arith.constant dense<0.000000e+00> : vector<2x128xf32>
    %386 = tpu.matmul %385, %23, %cst_110 {dimension_numbers = #tpu.dot_dimension_numbers<[1], [0], [0], [1], [0, 0, 1, 1], [], []>} : vector<2x32xbf16>, vector<32x128xbf16>, vector<2x128xf32> -> vector<2x128xf32>
    %387 = arith.addf %384, %386 : vector<2x128xf32>
    %388 = arith.negf %387 : vector<2x128xf32>
    %389 = math.exp %388 : vector<2x128xf32>
    %cst_111 = arith.constant 1.000000e+00 : f32
    %390 = vector.broadcast %cst_111 : f32 to vector<2x128xf32>
    %391 = arith.addf %390, %389 : vector<2x128xf32>
    %392 = arith.divf %390, %391 : vector<2x128xf32>
    %393 = math.tanh %387 : vector<2x128xf32>
    %394 = vector.extract_strided_slice %392 {offsets = [0, 0], sizes = [2, 32], strides = [1, 1]} : vector<2x128xf32> to vector<2x32xf32>
    %395 = vector.extract_strided_slice %392 {offsets = [0, 32], sizes = [2, 32], strides = [1, 1]} : vector<2x128xf32> to vector<2x32xf32>
    %396 = vector.extract_strided_slice %393 {offsets = [0, 64], sizes = [2, 32], strides = [1, 1]} : vector<2x128xf32> to vector<2x32xf32>
    %397 = vector.extract_strided_slice %392 {offsets = [0, 96], sizes = [2, 32], strides = [1, 1]} : vector<2x128xf32> to vector<2x32xf32>
    %398 = arith.mulf %395, %377 : vector<2x32xf32>
    %399 = arith.mulf %394, %396 : vector<2x32xf32>
    %400 = arith.addf %398, %399 : vector<2x32xf32>
    %401 = math.tanh %400 : vector<2x32xf32>
    %402 = arith.mulf %397, %401 : vector<2x32xf32>
    %403 = vector.extract_strided_slice %402 {offsets = [0, 0], sizes = [2, 16], strides = [1, 1]} : vector<2x32xf32> to vector<2x16xf32>
    %c18_112 = arith.constant 18 : index
    %c0_113 = arith.constant 0 : index
    %404 = vector.load %arg6[%c18_112, %c0_113] : memref<32x32xf32, #tpu.memory_space<vmem>>, vector<2x16xf32>
    tpu.vector_store %arg6[%c18_112, %c0_113], %403 {strides = array<i32>} : memref<32x32xf32, #tpu.memory_space<vmem>>, vector<2x16xf32>,
    %405 = vector.extract_strided_slice %402 {offsets = [0, 16], sizes = [2, 16], strides = [1, 1]} : vector<2x32xf32> to vector<2x16xf32>
    %c12_114 = arith.constant 12 : index
    %c16_115 = arith.constant 16 : index
    %406 = vector.load %arg6[%c12_114, %c16_115] : memref<32x32xf32, #tpu.memory_space<vmem>>, vector<2x16xf32>
    tpu.vector_store %arg6[%c12_114, %c16_115], %405 {strides = array<i32>} : memref<32x32xf32, #tpu.memory_space<vmem>>, vector<2x16xf32>,
    %c20_116 = arith.constant 20 : index
    %c0_117 = arith.constant 0 : index
    %407 = vector.load %arg5[%c20_116, %c0_117] : memref<32x128xf32, #tpu.memory_space<vmem>>, vector<2x128xf32>
    %408 = arith.truncf %402 : vector<2x32xf32> to vector<2x32xbf16>
    %cst_118 = arith.constant dense<0.000000e+00> : vector<2x128xf32>
    %409 = tpu.matmul %408, %23, %cst_118 {dimension_numbers = #tpu.dot_dimension_numbers<[1], [0], [0], [1], [0, 0, 1, 1], [], []>} : vector<2x32xbf16>, vector<32x128xbf16>, vector<2x128xf32> -> vector<2x128xf32>
    %410 = arith.addf %407, %409 : vector<2x128xf32>
    %411 = arith.negf %410 : vector<2x128xf32>
    %412 = math.exp %411 : vector<2x128xf32>
    %cst_119 = arith.constant 1.000000e+00 : f32
    %413 = vector.broadcast %cst_119 : f32 to vector<2x128xf32>
    %414 = arith.addf %413, %412 : vector<2x128xf32>
    %415 = arith.divf %413, %414 : vector<2x128xf32>
    %416 = math.tanh %410 : vector<2x128xf32>
    %417 = vector.extract_strided_slice %415 {offsets = [0, 0], sizes = [2, 32], strides = [1, 1]} : vector<2x128xf32> to vector<2x32xf32>
    %418 = vector.extract_strided_slice %415 {offsets = [0, 32], sizes = [2, 32], strides = [1, 1]} : vector<2x128xf32> to vector<2x32xf32>
    %419 = vector.extract_strided_slice %416 {offsets = [0, 64], sizes = [2, 32], strides = [1, 1]} : vector<2x128xf32> to vector<2x32xf32>
    %420 = vector.extract_strided_slice %415 {offsets = [0, 96], sizes = [2, 32], strides = [1, 1]} : vector<2x128xf32> to vector<2x32xf32>
    %421 = arith.mulf %418, %400 : vector<2x32xf32>
    %422 = arith.mulf %417, %419 : vector<2x32xf32>
    %423 = arith.addf %421, %422 : vector<2x32xf32>
    %424 = math.tanh %423 : vector<2x32xf32>
    %425 = arith.mulf %420, %424 : vector<2x32xf32>
    %426 = vector.extract_strided_slice %425 {offsets = [0, 0], sizes = [2, 16], strides = [1, 1]} : vector<2x32xf32> to vector<2x16xf32>
    %c20_120 = arith.constant 20 : index
    %c0_121 = arith.constant 0 : index
    %427 = vector.load %arg6[%c20_120, %c0_121] : memref<32x32xf32, #tpu.memory_space<vmem>>, vector<2x16xf32>
    tpu.vector_store %arg6[%c20_120, %c0_121], %426 {strides = array<i32>} : memref<32x32xf32, #tpu.memory_space<vmem>>, vector<2x16xf32>,
    %428 = vector.extract_strided_slice %425 {offsets = [0, 16], sizes = [2, 16], strides = [1, 1]} : vector<2x32xf32> to vector<2x16xf32>
    %c10_122 = arith.constant 10 : index
    %c16_123 = arith.constant 16 : index
    %429 = vector.load %arg6[%c10_122, %c16_123] : memref<32x32xf32, #tpu.memory_space<vmem>>, vector<2x16xf32>
    tpu.vector_store %arg6[%c10_122, %c16_123], %428 {strides = array<i32>} : memref<32x32xf32, #tpu.memory_space<vmem>>, vector<2x16xf32>,
    %c22_124 = arith.constant 22 : index
    %c0_125 = arith.constant 0 : index
    %430 = vector.load %arg5[%c22_124, %c0_125] : memref<32x128xf32, #tpu.memory_space<vmem>>, vector<2x128xf32>
    %431 = arith.truncf %425 : vector<2x32xf32> to vector<2x32xbf16>
    %cst_126 = arith.constant dense<0.000000e+00> : vector<2x128xf32>
    %432 = tpu.matmul %431, %23, %cst_126 {dimension_numbers = #tpu.dot_dimension_numbers<[1], [0], [0], [1], [0, 0, 1, 1], [], []>} : vector<2x32xbf16>, vector<32x128xbf16>, vector<2x128xf32> -> vector<2x128xf32>
    %433 = arith.addf %430, %432 : vector<2x128xf32>
    %434 = arith.negf %433 : vector<2x128xf32>
    %435 = math.exp %434 : vector<2x128xf32>
    %cst_127 = arith.constant 1.000000e+00 : f32
    %436 = vector.broadcast %cst_127 : f32 to vector<2x128xf32>
    %437 = arith.addf %436, %435 : vector<2x128xf32>
    %438 = arith.divf %436, %437 : vector<2x128xf32>
    %439 = math.tanh %433 : vector<2x128xf32>
    %440 = vector.extract_strided_slice %438 {offsets = [0, 0], sizes = [2, 32], strides = [1, 1]} : vector<2x128xf32> to vector<2x32xf32>
    %441 = vector.extract_strided_slice %438 {offsets = [0, 32], sizes = [2, 32], strides = [1, 1]} : vector<2x128xf32> to vector<2x32xf32>
    %442 = vector.extract_strided_slice %439 {offsets = [0, 64], sizes = [2, 32], strides = [1, 1]} : vector<2x128xf32> to vector<2x32xf32>
    %443 = vector.extract_strided_slice %438 {offsets = [0, 96], sizes = [2, 32], strides = [1, 1]} : vector<2x128xf32> to vector<2x32xf32>
    %444 = arith.mulf %441, %423 : vector<2x32xf32>
    %445 = arith.mulf %440, %442 : vector<2x32xf32>
    %446 = arith.addf %444, %445 : vector<2x32xf32>
    %447 = math.tanh %446 : vector<2x32xf32>
    %448 = arith.mulf %443, %447 : vector<2x32xf32>
    %449 = vector.extract_strided_slice %448 {offsets = [0, 0], sizes = [2, 16], strides = [1, 1]} : vector<2x32xf32> to vector<2x16xf32>
    %c22_128 = arith.constant 22 : index
    %c0_129 = arith.constant 0 : index
    %450 = vector.load %arg6[%c22_128, %c0_129] : memref<32x32xf32, #tpu.memory_space<vmem>>, vector<2x16xf32>
    tpu.vector_store %arg6[%c22_128, %c0_129], %449 {strides = array<i32>} : memref<32x32xf32, #tpu.memory_space<vmem>>, vector<2x16xf32>,
    %451 = vector.extract_strided_slice %448 {offsets = [0, 16], sizes = [2, 16], strides = [1, 1]} : vector<2x32xf32> to vector<2x16xf32>
    %c8_130 = arith.constant 8 : index
    %c16_131 = arith.constant 16 : index
    %452 = vector.load %arg6[%c8_130, %c16_131] : memref<32x32xf32, #tpu.memory_space<vmem>>, vector<2x16xf32>
    tpu.vector_store %arg6[%c8_130, %c16_131], %451 {strides = array<i32>} : memref<32x32xf32, #tpu.memory_space<vmem>>, vector<2x16xf32>,
    %c24_132 = arith.constant 24 : index
    %c0_133 = arith.constant 0 : index
    %453 = vector.load %arg5[%c24_132, %c0_133] : memref<32x128xf32, #tpu.memory_space<vmem>>, vector<2x128xf32>
    %454 = arith.truncf %448 : vector<2x32xf32> to vector<2x32xbf16>
    %cst_134 = arith.constant dense<0.000000e+00> : vector<2x128xf32>
    %455 = tpu.matmul %454, %23, %cst_134 {dimension_numbers = #tpu.dot_dimension_numbers<[1], [0], [0], [1], [0, 0, 1, 1], [], []>} : vector<2x32xbf16>, vector<32x128xbf16>, vector<2x128xf32> -> vector<2x128xf32>
    %456 = arith.addf %453, %455 : vector<2x128xf32>
    %457 = arith.negf %456 : vector<2x128xf32>
    %458 = math.exp %457 : vector<2x128xf32>
    %cst_135 = arith.constant 1.000000e+00 : f32
    %459 = vector.broadcast %cst_135 : f32 to vector<2x128xf32>
    %460 = arith.addf %459, %458 : vector<2x128xf32>
    %461 = arith.divf %459, %460 : vector<2x128xf32>
    %462 = math.tanh %456 : vector<2x128xf32>
    %463 = vector.extract_strided_slice %461 {offsets = [0, 0], sizes = [2, 32], strides = [1, 1]} : vector<2x128xf32> to vector<2x32xf32>
    %464 = vector.extract_strided_slice %461 {offsets = [0, 32], sizes = [2, 32], strides = [1, 1]} : vector<2x128xf32> to vector<2x32xf32>
    %465 = vector.extract_strided_slice %462 {offsets = [0, 64], sizes = [2, 32], strides = [1, 1]} : vector<2x128xf32> to vector<2x32xf32>
    %466 = vector.extract_strided_slice %461 {offsets = [0, 96], sizes = [2, 32], strides = [1, 1]} : vector<2x128xf32> to vector<2x32xf32>
    %467 = arith.mulf %464, %446 : vector<2x32xf32>
    %468 = arith.mulf %463, %465 : vector<2x32xf32>
    %469 = arith.addf %467, %468 : vector<2x32xf32>
    %470 = math.tanh %469 : vector<2x32xf32>
    %471 = arith.mulf %466, %470 : vector<2x32xf32>
    %472 = vector.extract_strided_slice %471 {offsets = [0, 0], sizes = [2, 16], strides = [1, 1]} : vector<2x32xf32> to vector<2x16xf32>
    %c24_136 = arith.constant 24 : index
    %c0_137 = arith.constant 0 : index
    %473 = vector.load %arg6[%c24_136, %c0_137] : memref<32x32xf32, #tpu.memory_space<vmem>>, vector<2x16xf32>
    tpu.vector_store %arg6[%c24_136, %c0_137], %472 {strides = array<i32>} : memref<32x32xf32, #tpu.memory_space<vmem>>, vector<2x16xf32>,
    %474 = vector.extract_strided_slice %471 {offsets = [0, 16], sizes = [2, 16], strides = [1, 1]} : vector<2x32xf32> to vector<2x16xf32>
    %c6_138 = arith.constant 6 : index
    %c16_139 = arith.constant 16 : index
    %475 = vector.load %arg6[%c6_138, %c16_139] : memref<32x32xf32, #tpu.memory_space<vmem>>, vector<2x16xf32>
    tpu.vector_store %arg6[%c6_138, %c16_139], %474 {strides = array<i32>} : memref<32x32xf32, #tpu.memory_space<vmem>>, vector<2x16xf32>,
    %c26_140 = arith.constant 26 : index
    %c0_141 = arith.constant 0 : index
    %476 = vector.load %arg5[%c26_140, %c0_141] : memref<32x128xf32, #tpu.memory_space<vmem>>, vector<2x128xf32>
    %477 = arith.truncf %471 : vector<2x32xf32> to vector<2x32xbf16>
    %cst_142 = arith.constant dense<0.000000e+00> : vector<2x128xf32>
    %478 = tpu.matmul %477, %23, %cst_142 {dimension_numbers = #tpu.dot_dimension_numbers<[1], [0], [0], [1], [0, 0, 1, 1], [], []>} : vector<2x32xbf16>, vector<32x128xbf16>, vector<2x128xf32> -> vector<2x128xf32>
    %479 = arith.addf %476, %478 : vector<2x128xf32>
    %480 = arith.negf %479 : vector<2x128xf32>
    %481 = math.exp %480 : vector<2x128xf32>
    %cst_143 = arith.constant 1.000000e+00 : f32
    %482 = vector.broadcast %cst_143 : f32 to vector<2x128xf32>
    %483 = arith.addf %482, %481 : vector<2x128xf32>
    %484 = arith.divf %482, %483 : vector<2x128xf32>
    %485 = math.tanh %479 : vector<2x128xf32>
    %486 = vector.extract_strided_slice %484 {offsets = [0, 0], sizes = [2, 32], strides = [1, 1]} : vector<2x128xf32> to vector<2x32xf32>
    %487 = vector.extract_strided_slice %484 {offsets = [0, 32], sizes = [2, 32], strides = [1, 1]} : vector<2x128xf32> to vector<2x32xf32>
    %488 = vector.extract_strided_slice %485 {offsets = [0, 64], sizes = [2, 32], strides = [1, 1]} : vector<2x128xf32> to vector<2x32xf32>
    %489 = vector.extract_strided_slice %484 {offsets = [0, 96], sizes = [2, 32], strides = [1, 1]} : vector<2x128xf32> to vector<2x32xf32>
    %490 = arith.mulf %487, %469 : vector<2x32xf32>
    %491 = arith.mulf %486, %488 : vector<2x32xf32>
    %492 = arith.addf %490, %491 : vector<2x32xf32>
    %493 = math.tanh %492 : vector<2x32xf32>
    %494 = arith.mulf %489, %493 : vector<2x32xf32>
    %495 = vector.extract_strided_slice %494 {offsets = [0, 0], sizes = [2, 16], strides = [1, 1]} : vector<2x32xf32> to vector<2x16xf32>
    %c26_144 = arith.constant 26 : index
    %c0_145 = arith.constant 0 : index
    %496 = vector.load %arg6[%c26_144, %c0_145] : memref<32x32xf32, #tpu.memory_space<vmem>>, vector<2x16xf32>
    tpu.vector_store %arg6[%c26_144, %c0_145], %495 {strides = array<i32>} : memref<32x32xf32, #tpu.memory_space<vmem>>, vector<2x16xf32>,
    %497 = vector.extract_strided_slice %494 {offsets = [0, 16], sizes = [2, 16], strides = [1, 1]} : vector<2x32xf32> to vector<2x16xf32>
    %c4_146 = arith.constant 4 : index
    %c16_147 = arith.constant 16 : index
    %498 = vector.load %arg6[%c4_146, %c16_147] : memref<32x32xf32, #tpu.memory_space<vmem>>, vector<2x16xf32>
    tpu.vector_store %arg6[%c4_146, %c16_147], %497 {strides = array<i32>} : memref<32x32xf32, #tpu.memory_space<vmem>>, vector<2x16xf32>,
    %c28_148 = arith.constant 28 : index
    %c0_149 = arith.constant 0 : index
    %499 = vector.load %arg5[%c28_148, %c0_149] : memref<32x128xf32, #tpu.memory_space<vmem>>, vector<2x128xf32>
    %500 = arith.truncf %494 : vector<2x32xf32> to vector<2x32xbf16>
    %cst_150 = arith.constant dense<0.000000e+00> : vector<2x128xf32>
    %501 = tpu.matmul %500, %23, %cst_150 {dimension_numbers = #tpu.dot_dimension_numbers<[1], [0], [0], [1], [0, 0, 1, 1], [], []>} : vector<2x32xbf16>, vector<32x128xbf16>, vector<2x128xf32> -> vector<2x128xf32>
    %502 = arith.addf %499, %501 : vector<2x128xf32>
    %503 = arith.negf %502 : vector<2x128xf32>
    %504 = math.exp %503 : vector<2x128xf32>
    %cst_151 = arith.constant 1.000000e+00 : f32
    %505 = vector.broadcast %cst_151 : f32 to vector<2x128xf32>
    %506 = arith.addf %505, %504 : vector<2x128xf32>
    %507 = arith.divf %505, %506 : vector<2x128xf32>
    %508 = math.tanh %502 : vector<2x128xf32>
    %509 = vector.extract_strided_slice %507 {offsets = [0, 0], sizes = [2, 32], strides = [1, 1]} : vector<2x128xf32> to vector<2x32xf32>
    %510 = vector.extract_strided_slice %507 {offsets = [0, 32], sizes = [2, 32], strides = [1, 1]} : vector<2x128xf32> to vector<2x32xf32>
    %511 = vector.extract_strided_slice %508 {offsets = [0, 64], sizes = [2, 32], strides = [1, 1]} : vector<2x128xf32> to vector<2x32xf32>
    %512 = vector.extract_strided_slice %507 {offsets = [0, 96], sizes = [2, 32], strides = [1, 1]} : vector<2x128xf32> to vector<2x32xf32>
    %513 = arith.mulf %510, %492 : vector<2x32xf32>
    %514 = arith.mulf %509, %511 : vector<2x32xf32>
    %515 = arith.addf %513, %514 : vector<2x32xf32>
    %516 = math.tanh %515 : vector<2x32xf32>
    %517 = arith.mulf %512, %516 : vector<2x32xf32>
    %518 = vector.extract_strided_slice %517 {offsets = [0, 0], sizes = [2, 16], strides = [1, 1]} : vector<2x32xf32> to vector<2x16xf32>
    %c28_152 = arith.constant 28 : index
    %c0_153 = arith.constant 0 : index
    %519 = vector.load %arg6[%c28_152, %c0_153] : memref<32x32xf32, #tpu.memory_space<vmem>>, vector<2x16xf32>
    tpu.vector_store %arg6[%c28_152, %c0_153], %518 {strides = array<i32>} : memref<32x32xf32, #tpu.memory_space<vmem>>, vector<2x16xf32>,
    %520 = vector.extract_strided_slice %517 {offsets = [0, 16], sizes = [2, 16], strides = [1, 1]} : vector<2x32xf32> to vector<2x16xf32>
    %c2_154 = arith.constant 2 : index
    %c16_155 = arith.constant 16 : index
    %521 = vector.load %arg6[%c2_154, %c16_155] : memref<32x32xf32, #tpu.memory_space<vmem>>, vector<2x16xf32>
    tpu.vector_store %arg6[%c2_154, %c16_155], %520 {strides = array<i32>} : memref<32x32xf32, #tpu.memory_space<vmem>>, vector<2x16xf32>,
    %c30_156 = arith.constant 30 : index
    %c0_157 = arith.constant 0 : index
    %522 = vector.load %arg5[%c30_156, %c0_157] : memref<32x128xf32, #tpu.memory_space<vmem>>, vector<2x128xf32>
    %523 = arith.truncf %517 : vector<2x32xf32> to vector<2x32xbf16>
    %cst_158 = arith.constant dense<0.000000e+00> : vector<2x128xf32>
    %524 = tpu.matmul %523, %23, %cst_158 {dimension_numbers = #tpu.dot_dimension_numbers<[1], [0], [0], [1], [0, 0, 1, 1], [], []>} : vector<2x32xbf16>, vector<32x128xbf16>, vector<2x128xf32> -> vector<2x128xf32>
    %525 = arith.addf %522, %524 : vector<2x128xf32>
    %526 = arith.negf %525 : vector<2x128xf32>
    %527 = math.exp %526 : vector<2x128xf32>
    %cst_159 = arith.constant 1.000000e+00 : f32
    %528 = vector.broadcast %cst_159 : f32 to vector<2x128xf32>
    %529 = arith.addf %528, %527 : vector<2x128xf32>
    %530 = arith.divf %528, %529 : vector<2x128xf32>
    %531 = math.tanh %525 : vector<2x128xf32>
    %532 = vector.extract_strided_slice %530 {offsets = [0, 0], sizes = [2, 32], strides = [1, 1]} : vector<2x128xf32> to vector<2x32xf32>
    %533 = vector.extract_strided_slice %530 {offsets = [0, 32], sizes = [2, 32], strides = [1, 1]} : vector<2x128xf32> to vector<2x32xf32>
    %534 = vector.extract_strided_slice %531 {offsets = [0, 64], sizes = [2, 32], strides = [1, 1]} : vector<2x128xf32> to vector<2x32xf32>
    %535 = vector.extract_strided_slice %530 {offsets = [0, 96], sizes = [2, 32], strides = [1, 1]} : vector<2x128xf32> to vector<2x32xf32>
    %536 = arith.mulf %533, %515 : vector<2x32xf32>
    %537 = arith.mulf %532, %534 : vector<2x32xf32>
    %538 = arith.addf %536, %537 : vector<2x32xf32>
    %539 = math.tanh %538 : vector<2x32xf32>
    %540 = arith.mulf %535, %539 : vector<2x32xf32>
    %541 = vector.extract_strided_slice %540 {offsets = [0, 0], sizes = [2, 16], strides = [1, 1]} : vector<2x32xf32> to vector<2x16xf32>
    %c30_160 = arith.constant 30 : index
    %c0_161 = arith.constant 0 : index
    %542 = vector.load %arg6[%c30_160, %c0_161] : memref<32x32xf32, #tpu.memory_space<vmem>>, vector<2x16xf32>
    tpu.vector_store %arg6[%c30_160, %c0_161], %541 {strides = array<i32>} : memref<32x32xf32, #tpu.memory_space<vmem>>, vector<2x16xf32>,
    %543 = vector.extract_strided_slice %540 {offsets = [0, 16], sizes = [2, 16], strides = [1, 1]} : vector<2x32xf32> to vector<2x16xf32>
    %c0_162 = arith.constant 0 : index
    %c16_163 = arith.constant 16 : index
    %544 = vector.load %arg6[%c0_162, %c16_163] : memref<32x32xf32, #tpu.memory_space<vmem>>, vector<2x16xf32>
    tpu.vector_store %arg6[%c0_162, %c16_163], %543 {strides = array<i32>} : memref<32x32xf32, #tpu.memory_space<vmem>>, vector<2x16xf32>,
    %c0_164 = arith.constant 0 : index
    %c0_165 = arith.constant 0 : index
    %545 = vector.load %arg6[%c0_164, %c0_165] : memref<32x32xf32, #tpu.memory_space<vmem>>, vector<32x32xf32>
    %cst_166 = arith.constant dense<0.000000e+00> : vector<32x128xf32>
    %546 = tpu.matmul %545, %20, %cst_166 {dimension_numbers = #tpu.dot_dimension_numbers<[1], [0], [0], [1], [0, 0, 1, 1], [], []>} : vector<32x32xf32>, vector<32x128xf32>, vector<32x128xf32> -> vector<32x128xf32>
    %547 = vector.broadcast %22 : vector<1x128xf32> to vector<32x128xf32>
    %548 = arith.addf %546, %547 : vector<32x128xf32>
    %549 = vector.extract_strided_slice %548 {offsets = [0, 0], sizes = [2, 128], strides = [1, 1]} : vector<32x128xf32> to vector<2x128xf32>
    %550 = vector.extract_strided_slice %548 {offsets = [2, 0], sizes = [2, 128], strides = [1, 1]} : vector<32x128xf32> to vector<2x128xf32>
    %551 = vector.extract_strided_slice %548 {offsets = [4, 0], sizes = [2, 128], strides = [1, 1]} : vector<32x128xf32> to vector<2x128xf32>
    %552 = vector.extract_strided_slice %548 {offsets = [6, 0], sizes = [2, 128], strides = [1, 1]} : vector<32x128xf32> to vector<2x128xf32>
    %553 = vector.extract_strided_slice %548 {offsets = [8, 0], sizes = [2, 128], strides = [1, 1]} : vector<32x128xf32> to vector<2x128xf32>
    %554 = vector.extract_strided_slice %548 {offsets = [10, 0], sizes = [2, 128], strides = [1, 1]} : vector<32x128xf32> to vector<2x128xf32>
    %555 = vector.extract_strided_slice %548 {offsets = [12, 0], sizes = [2, 128], strides = [1, 1]} : vector<32x128xf32> to vector<2x128xf32>
    %556 = vector.extract_strided_slice %548 {offsets = [14, 0], sizes = [2, 128], strides = [1, 1]} : vector<32x128xf32> to vector<2x128xf32>
    %557 = vector.extract_strided_slice %548 {offsets = [16, 0], sizes = [2, 128], strides = [1, 1]} : vector<32x128xf32> to vector<2x128xf32>
    %558 = vector.extract_strided_slice %548 {offsets = [18, 0], sizes = [2, 128], strides = [1, 1]} : vector<32x128xf32> to vector<2x128xf32>
    %559 = vector.extract_strided_slice %548 {offsets = [20, 0], sizes = [2, 128], strides = [1, 1]} : vector<32x128xf32> to vector<2x128xf32>
    %560 = vector.extract_strided_slice %548 {offsets = [22, 0], sizes = [2, 128], strides = [1, 1]} : vector<32x128xf32> to vector<2x128xf32>
    %561 = vector.extract_strided_slice %548 {offsets = [24, 0], sizes = [2, 128], strides = [1, 1]} : vector<32x128xf32> to vector<2x128xf32>
    %562 = vector.extract_strided_slice %548 {offsets = [26, 0], sizes = [2, 128], strides = [1, 1]} : vector<32x128xf32> to vector<2x128xf32>
    %563 = vector.extract_strided_slice %548 {offsets = [28, 0], sizes = [2, 128], strides = [1, 1]} : vector<32x128xf32> to vector<2x128xf32>
    %564 = vector.extract_strided_slice %548 {offsets = [30, 0], sizes = [2, 128], strides = [1, 1]} : vector<32x128xf32> to vector<2x128xf32>
    %565 = vector.shape_cast %18 : vector<1x128xi1> to vector<1x128xi1>
    %566 = vector.broadcast %565 : vector<1x128xi1> to vector<2x128xi1>
    %567 = arith.select %566, %549, %564 : vector<2x128xi1>, vector<2x128xf32>
    %c0_167 = arith.constant 0 : index
    %c0_168 = arith.constant 0 : index
    %568 = vector.load %arg5[%c0_167, %c0_168] : memref<32x128xf32, #tpu.memory_space<vmem>>, vector<2x128xf32>
    tpu.vector_store %arg5[%c0_167, %c0_168], %567 {strides = array<i32>} : memref<32x128xf32, #tpu.memory_space<vmem>>, vector<2x128xf32>,
    %569 = vector.shape_cast %18 : vector<1x128xi1> to vector<1x128xi1>
    %570 = vector.broadcast %569 : vector<1x128xi1> to vector<2x128xi1>
    %571 = arith.select %570, %550, %563 : vector<2x128xi1>, vector<2x128xf32>
    %c2_169 = arith.constant 2 : index
    %c0_170 = arith.constant 0 : index
    %572 = vector.load %arg5[%c2_169, %c0_170] : memref<32x128xf32, #tpu.memory_space<vmem>>, vector<2x128xf32>
    tpu.vector_store %arg5[%c2_169, %c0_170], %571 {strides = array<i32>} : memref<32x128xf32, #tpu.memory_space<vmem>>, vector<2x128xf32>,
    %573 = vector.shape_cast %18 : vector<1x128xi1> to vector<1x128xi1>
    %574 = vector.broadcast %573 : vector<1x128xi1> to vector<2x128xi1>
    %575 = arith.select %574, %551, %562 : vector<2x128xi1>, vector<2x128xf32>
    %c4_171 = arith.constant 4 : index
    %c0_172 = arith.constant 0 : index
    %576 = vector.load %arg5[%c4_171, %c0_172] : memref<32x128xf32, #tpu.memory_space<vmem>>, vector<2x128xf32>
    tpu.vector_store %arg5[%c4_171, %c0_172], %575 {strides = array<i32>} : memref<32x128xf32, #tpu.memory_space<vmem>>, vector<2x128xf32>,
    %577 = vector.shape_cast %18 : vector<1x128xi1> to vector<1x128xi1>
    %578 = vector.broadcast %577 : vector<1x128xi1> to vector<2x128xi1>
    %579 = arith.select %578, %552, %561 : vector<2x128xi1>, vector<2x128xf32>
    %c6_173 = arith.constant 6 : index
    %c0_174 = arith.constant 0 : index
    %580 = vector.load %arg5[%c6_173, %c0_174] : memref<32x128xf32, #tpu.memory_space<vmem>>, vector<2x128xf32>
    tpu.vector_store %arg5[%c6_173, %c0_174], %579 {strides = array<i32>} : memref<32x128xf32, #tpu.memory_space<vmem>>, vector<2x128xf32>,
    %581 = vector.shape_cast %18 : vector<1x128xi1> to vector<1x128xi1>
    %582 = vector.broadcast %581 : vector<1x128xi1> to vector<2x128xi1>
    %583 = arith.select %582, %553, %560 : vector<2x128xi1>, vector<2x128xf32>
    %c8_175 = arith.constant 8 : index
    %c0_176 = arith.constant 0 : index
    %584 = vector.load %arg5[%c8_175, %c0_176] : memref<32x128xf32, #tpu.memory_space<vmem>>, vector<2x128xf32>
    tpu.vector_store %arg5[%c8_175, %c0_176], %583 {strides = array<i32>} : memref<32x128xf32, #tpu.memory_space<vmem>>, vector<2x128xf32>,
    %585 = vector.shape_cast %18 : vector<1x128xi1> to vector<1x128xi1>
    %586 = vector.broadcast %585 : vector<1x128xi1> to vector<2x128xi1>
    %587 = arith.select %586, %554, %559 : vector<2x128xi1>, vector<2x128xf32>
    %c10_177 = arith.constant 10 : index
    %c0_178 = arith.constant 0 : index
    %588 = vector.load %arg5[%c10_177, %c0_178] : memref<32x128xf32, #tpu.memory_space<vmem>>, vector<2x128xf32>
    tpu.vector_store %arg5[%c10_177, %c0_178], %587 {strides = array<i32>} : memref<32x128xf32, #tpu.memory_space<vmem>>, vector<2x128xf32>,
    %589 = vector.shape_cast %18 : vector<1x128xi1> to vector<1x128xi1>
    %590 = vector.broadcast %589 : vector<1x128xi1> to vector<2x128xi1>
    %591 = arith.select %590, %555, %558 : vector<2x128xi1>, vector<2x128xf32>
    %c12_179 = arith.constant 12 : index
    %c0_180 = arith.constant 0 : index
    %592 = vector.load %arg5[%c12_179, %c0_180] : memref<32x128xf32, #tpu.memory_space<vmem>>, vector<2x128xf32>
    tpu.vector_store %arg5[%c12_179, %c0_180], %591 {strides = array<i32>} : memref<32x128xf32, #tpu.memory_space<vmem>>, vector<2x128xf32>,
    %593 = vector.shape_cast %18 : vector<1x128xi1> to vector<1x128xi1>
    %594 = vector.broadcast %593 : vector<1x128xi1> to vector<2x128xi1>
    %595 = arith.select %594, %556, %557 : vector<2x128xi1>, vector<2x128xf32>
    %c14_181 = arith.constant 14 : index
    %c0_182 = arith.constant 0 : index
    %596 = vector.load %arg5[%c14_181, %c0_182] : memref<32x128xf32, #tpu.memory_space<vmem>>, vector<2x128xf32>
    tpu.vector_store %arg5[%c14_181, %c0_182], %595 {strides = array<i32>} : memref<32x128xf32, #tpu.memory_space<vmem>>, vector<2x128xf32>,
    %597 = vector.shape_cast %18 : vector<1x128xi1> to vector<1x128xi1>
    %598 = vector.broadcast %597 : vector<1x128xi1> to vector<2x128xi1>
    %599 = arith.select %598, %557, %556 : vector<2x128xi1>, vector<2x128xf32>
    %c16_183 = arith.constant 16 : index
    %c0_184 = arith.constant 0 : index
    %600 = vector.load %arg5[%c16_183, %c0_184] : memref<32x128xf32, #tpu.memory_space<vmem>>, vector<2x128xf32>
    tpu.vector_store %arg5[%c16_183, %c0_184], %599 {strides = array<i32>} : memref<32x128xf32, #tpu.memory_space<vmem>>, vector<2x128xf32>,
    %601 = vector.shape_cast %18 : vector<1x128xi1> to vector<1x128xi1>
    %602 = vector.broadcast %601 : vector<1x128xi1> to vector<2x128xi1>
    %603 = arith.select %602, %558, %555 : vector<2x128xi1>, vector<2x128xf32>
    %c18_185 = arith.constant 18 : index
    %c0_186 = arith.constant 0 : index
    %604 = vector.load %arg5[%c18_185, %c0_186] : memref<32x128xf32, #tpu.memory_space<vmem>>, vector<2x128xf32>
    tpu.vector_store %arg5[%c18_185, %c0_186], %603 {strides = array<i32>} : memref<32x128xf32, #tpu.memory_space<vmem>>, vector<2x128xf32>,
    %605 = vector.shape_cast %18 : vector<1x128xi1> to vector<1x128xi1>
    %606 = vector.broadcast %605 : vector<1x128xi1> to vector<2x128xi1>
    %607 = arith.select %606, %559, %554 : vector<2x128xi1>, vector<2x128xf32>
    %c20_187 = arith.constant 20 : index
    %c0_188 = arith.constant 0 : index
    %608 = vector.load %arg5[%c20_187, %c0_188] : memref<32x128xf32, #tpu.memory_space<vmem>>, vector<2x128xf32>
    tpu.vector_store %arg5[%c20_187, %c0_188], %607 {strides = array<i32>} : memref<32x128xf32, #tpu.memory_space<vmem>>, vector<2x128xf32>,
    %609 = vector.shape_cast %18 : vector<1x128xi1> to vector<1x128xi1>
    %610 = vector.broadcast %609 : vector<1x128xi1> to vector<2x128xi1>
    %611 = arith.select %610, %560, %553 : vector<2x128xi1>, vector<2x128xf32>
    %c22_189 = arith.constant 22 : index
    %c0_190 = arith.constant 0 : index
    %612 = vector.load %arg5[%c22_189, %c0_190] : memref<32x128xf32, #tpu.memory_space<vmem>>, vector<2x128xf32>
    tpu.vector_store %arg5[%c22_189, %c0_190], %611 {strides = array<i32>} : memref<32x128xf32, #tpu.memory_space<vmem>>, vector<2x128xf32>,
    %613 = vector.shape_cast %18 : vector<1x128xi1> to vector<1x128xi1>
    %614 = vector.broadcast %613 : vector<1x128xi1> to vector<2x128xi1>
    %615 = arith.select %614, %561, %552 : vector<2x128xi1>, vector<2x128xf32>
    %c24_191 = arith.constant 24 : index
    %c0_192 = arith.constant 0 : index
    %616 = vector.load %arg5[%c24_191, %c0_192] : memref<32x128xf32, #tpu.memory_space<vmem>>, vector<2x128xf32>
    tpu.vector_store %arg5[%c24_191, %c0_192], %615 {strides = array<i32>} : memref<32x128xf32, #tpu.memory_space<vmem>>, vector<2x128xf32>,
    %617 = vector.shape_cast %18 : vector<1x128xi1> to vector<1x128xi1>
    %618 = vector.broadcast %617 : vector<1x128xi1> to vector<2x128xi1>
    %619 = arith.select %618, %562, %551 : vector<2x128xi1>, vector<2x128xf32>
    %c26_193 = arith.constant 26 : index
    %c0_194 = arith.constant 0 : index
    %620 = vector.load %arg5[%c26_193, %c0_194] : memref<32x128xf32, #tpu.memory_space<vmem>>, vector<2x128xf32>
    tpu.vector_store %arg5[%c26_193, %c0_194], %619 {strides = array<i32>} : memref<32x128xf32, #tpu.memory_space<vmem>>, vector<2x128xf32>,
    %621 = vector.shape_cast %18 : vector<1x128xi1> to vector<1x128xi1>
    %622 = vector.broadcast %621 : vector<1x128xi1> to vector<2x128xi1>
    %623 = arith.select %622, %563, %550 : vector<2x128xi1>, vector<2x128xf32>
    %c28_195 = arith.constant 28 : index
    %c0_196 = arith.constant 0 : index
    %624 = vector.load %arg5[%c28_195, %c0_196] : memref<32x128xf32, #tpu.memory_space<vmem>>, vector<2x128xf32>
    tpu.vector_store %arg5[%c28_195, %c0_196], %623 {strides = array<i32>} : memref<32x128xf32, #tpu.memory_space<vmem>>, vector<2x128xf32>,
    %625 = vector.shape_cast %18 : vector<1x128xi1> to vector<1x128xi1>
    %626 = vector.broadcast %625 : vector<1x128xi1> to vector<2x128xi1>
    %627 = arith.select %626, %564, %549 : vector<2x128xi1>, vector<2x128xf32>
    %c30_197 = arith.constant 30 : index
    %c0_198 = arith.constant 0 : index
    %628 = vector.load %arg5[%c30_197, %c0_198] : memref<32x128xf32, #tpu.memory_space<vmem>>, vector<2x128xf32>
    tpu.vector_store %arg5[%c30_197, %c0_198], %627 {strides = array<i32>} : memref<32x128xf32, #tpu.memory_space<vmem>>, vector<2x128xf32>,
    %cst_199 = arith.constant 0.000000e+00 : f32
    %629 = vector.broadcast %cst_199 : f32 to vector<2x32xf32>
    %cst_200 = arith.constant 0.000000e+00 : f32
    %630 = vector.broadcast %cst_200 : f32 to vector<2x32xf32>
    %c0_201 = arith.constant 0 : index
    %c0_202 = arith.constant 0 : index
    %631 = vector.load %arg5[%c0_201, %c0_202] : memref<32x128xf32, #tpu.memory_space<vmem>>, vector<2x128xf32>
    %632 = arith.truncf %629 : vector<2x32xf32> to vector<2x32xbf16>
    %cst_203 = arith.constant dense<0.000000e+00> : vector<2x128xf32>
    %633 = tpu.matmul %632, %24, %cst_203 {dimension_numbers = #tpu.dot_dimension_numbers<[1], [0], [0], [1], [0, 0, 1, 1], [], []>} : vector<2x32xbf16>, vector<32x128xbf16>, vector<2x128xf32> -> vector<2x128xf32>
    %634 = arith.addf %631, %633 : vector<2x128xf32>
    %635 = arith.negf %634 : vector<2x128xf32>
    %636 = math.exp %635 : vector<2x128xf32>
    %cst_204 = arith.constant 1.000000e+00 : f32
    %637 = vector.broadcast %cst_204 : f32 to vector<2x128xf32>
    %638 = arith.addf %637, %636 : vector<2x128xf32>
    %639 = arith.divf %637, %638 : vector<2x128xf32>
    %640 = math.tanh %634 : vector<2x128xf32>
    %641 = vector.extract_strided_slice %639 {offsets = [0, 0], sizes = [2, 32], strides = [1, 1]} : vector<2x128xf32> to vector<2x32xf32>
    %642 = vector.extract_strided_slice %639 {offsets = [0, 32], sizes = [2, 32], strides = [1, 1]} : vector<2x128xf32> to vector<2x32xf32>
    %643 = vector.extract_strided_slice %640 {offsets = [0, 64], sizes = [2, 32], strides = [1, 1]} : vector<2x128xf32> to vector<2x32xf32>
    %644 = vector.extract_strided_slice %639 {offsets = [0, 96], sizes = [2, 32], strides = [1, 1]} : vector<2x128xf32> to vector<2x32xf32>
    %645 = arith.mulf %642, %630 : vector<2x32xf32>
    %646 = arith.mulf %641, %643 : vector<2x32xf32>
    %647 = arith.addf %645, %646 : vector<2x32xf32>
    %648 = math.tanh %647 : vector<2x32xf32>
    %649 = arith.mulf %644, %648 : vector<2x32xf32>
    %650 = vector.extract_strided_slice %649 {offsets = [0, 0], sizes = [2, 16], strides = [1, 1]} : vector<2x32xf32> to vector<2x16xf32>
    %c0_205 = arith.constant 0 : index
    %c0_206 = arith.constant 0 : index
    %651 = vector.load %arg6[%c0_205, %c0_206] : memref<32x32xf32, #tpu.memory_space<vmem>>, vector<2x16xf32>
    tpu.vector_store %arg6[%c0_205, %c0_206], %650 {strides = array<i32>} : memref<32x32xf32, #tpu.memory_space<vmem>>, vector<2x16xf32>,
    %652 = vector.extract_strided_slice %649 {offsets = [0, 16], sizes = [2, 16], strides = [1, 1]} : vector<2x32xf32> to vector<2x16xf32>
    %c30_207 = arith.constant 30 : index
    %c16_208 = arith.constant 16 : index
    %653 = vector.load %arg6[%c30_207, %c16_208] : memref<32x32xf32, #tpu.memory_space<vmem>>, vector<2x16xf32>
    tpu.vector_store %arg6[%c30_207, %c16_208], %652 {strides = array<i32>} : memref<32x32xf32, #tpu.memory_space<vmem>>, vector<2x16xf32>,
    %c2_209 = arith.constant 2 : index
    %c0_210 = arith.constant 0 : index
    %654 = vector.load %arg5[%c2_209, %c0_210] : memref<32x128xf32, #tpu.memory_space<vmem>>, vector<2x128xf32>
    %655 = arith.truncf %649 : vector<2x32xf32> to vector<2x32xbf16>
    %cst_211 = arith.constant dense<0.000000e+00> : vector<2x128xf32>
    %656 = tpu.matmul %655, %24, %cst_211 {dimension_numbers = #tpu.dot_dimension_numbers<[1], [0], [0], [1], [0, 0, 1, 1], [], []>} : vector<2x32xbf16>, vector<32x128xbf16>, vector<2x128xf32> -> vector<2x128xf32>
    %657 = arith.addf %654, %656 : vector<2x128xf32>
    %658 = arith.negf %657 : vector<2x128xf32>
    %659 = math.exp %658 : vector<2x128xf32>
    %cst_212 = arith.constant 1.000000e+00 : f32
    %660 = vector.broadcast %cst_212 : f32 to vector<2x128xf32>
    %661 = arith.addf %660, %659 : vector<2x128xf32>
    %662 = arith.divf %660, %661 : vector<2x128xf32>
    %663 = math.tanh %657 : vector<2x128xf32>
    %664 = vector.extract_strided_slice %662 {offsets = [0, 0], sizes = [2, 32], strides = [1, 1]} : vector<2x128xf32> to vector<2x32xf32>
    %665 = vector.extract_strided_slice %662 {offsets = [0, 32], sizes = [2, 32], strides = [1, 1]} : vector<2x128xf32> to vector<2x32xf32>
    %666 = vector.extract_strided_slice %663 {offsets = [0, 64], sizes = [2, 32], strides = [1, 1]} : vector<2x128xf32> to vector<2x32xf32>
    %667 = vector.extract_strided_slice %662 {offsets = [0, 96], sizes = [2, 32], strides = [1, 1]} : vector<2x128xf32> to vector<2x32xf32>
    %668 = arith.mulf %665, %647 : vector<2x32xf32>
    %669 = arith.mulf %664, %666 : vector<2x32xf32>
    %670 = arith.addf %668, %669 : vector<2x32xf32>
    %671 = math.tanh %670 : vector<2x32xf32>
    %672 = arith.mulf %667, %671 : vector<2x32xf32>
    %673 = vector.extract_strided_slice %672 {offsets = [0, 0], sizes = [2, 16], strides = [1, 1]} : vector<2x32xf32> to vector<2x16xf32>
    %c2_213 = arith.constant 2 : index
    %c0_214 = arith.constant 0 : index
    %674 = vector.load %arg6[%c2_213, %c0_214] : memref<32x32xf32, #tpu.memory_space<vmem>>, vector<2x16xf32>
    tpu.vector_store %arg6[%c2_213, %c0_214], %673 {strides = array<i32>} : memref<32x32xf32, #tpu.memory_space<vmem>>, vector<2x16xf32>,
    %675 = vector.extract_strided_slice %672 {offsets = [0, 16], sizes = [2, 16], strides = [1, 1]} : vector<2x32xf32> to vector<2x16xf32>
    %c28_215 = arith.constant 28 : index
    %c16_216 = arith.constant 16 : index
    %676 = vector.load %arg6[%c28_215, %c16_216] : memref<32x32xf32, #tpu.memory_space<vmem>>, vector<2x16xf32>
    tpu.vector_store %arg6[%c28_215, %c16_216], %675 {strides = array<i32>} : memref<32x32xf32, #tpu.memory_space<vmem>>, vector<2x16xf32>,
    %c4_217 = arith.constant 4 : index
    %c0_218 = arith.constant 0 : index
    %677 = vector.load %arg5[%c4_217, %c0_218] : memref<32x128xf32, #tpu.memory_space<vmem>>, vector<2x128xf32>
    %678 = arith.truncf %672 : vector<2x32xf32> to vector<2x32xbf16>
    %cst_219 = arith.constant dense<0.000000e+00> : vector<2x128xf32>
    %679 = tpu.matmul %678, %24, %cst_219 {dimension_numbers = #tpu.dot_dimension_numbers<[1], [0], [0], [1], [0, 0, 1, 1], [], []>} : vector<2x32xbf16>, vector<32x128xbf16>, vector<2x128xf32> -> vector<2x128xf32>
    %680 = arith.addf %677, %679 : vector<2x128xf32>
    %681 = arith.negf %680 : vector<2x128xf32>
    %682 = math.exp %681 : vector<2x128xf32>
    %cst_220 = arith.constant 1.000000e+00 : f32
    %683 = vector.broadcast %cst_220 : f32 to vector<2x128xf32>
    %684 = arith.addf %683, %682 : vector<2x128xf32>
    %685 = arith.divf %683, %684 : vector<2x128xf32>
    %686 = math.tanh %680 : vector<2x128xf32>
    %687 = vector.extract_strided_slice %685 {offsets = [0, 0], sizes = [2, 32], strides = [1, 1]} : vector<2x128xf32> to vector<2x32xf32>
    %688 = vector.extract_strided_slice %685 {offsets = [0, 32], sizes = [2, 32], strides = [1, 1]} : vector<2x128xf32> to vector<2x32xf32>
    %689 = vector.extract_strided_slice %686 {offsets = [0, 64], sizes = [2, 32], strides = [1, 1]} : vector<2x128xf32> to vector<2x32xf32>
    %690 = vector.extract_strided_slice %685 {offsets = [0, 96], sizes = [2, 32], strides = [1, 1]} : vector<2x128xf32> to vector<2x32xf32>
    %691 = arith.mulf %688, %670 : vector<2x32xf32>
    %692 = arith.mulf %687, %689 : vector<2x32xf32>
    %693 = arith.addf %691, %692 : vector<2x32xf32>
    %694 = math.tanh %693 : vector<2x32xf32>
    %695 = arith.mulf %690, %694 : vector<2x32xf32>
    %696 = vector.extract_strided_slice %695 {offsets = [0, 0], sizes = [2, 16], strides = [1, 1]} : vector<2x32xf32> to vector<2x16xf32>
    %c4_221 = arith.constant 4 : index
    %c0_222 = arith.constant 0 : index
    %697 = vector.load %arg6[%c4_221, %c0_222] : memref<32x32xf32, #tpu.memory_space<vmem>>, vector<2x16xf32>
    tpu.vector_store %arg6[%c4_221, %c0_222], %696 {strides = array<i32>} : memref<32x32xf32, #tpu.memory_space<vmem>>, vector<2x16xf32>,
    %698 = vector.extract_strided_slice %695 {offsets = [0, 16], sizes = [2, 16], strides = [1, 1]} : vector<2x32xf32> to vector<2x16xf32>
    %c26_223 = arith.constant 26 : index
    %c16_224 = arith.constant 16 : index
    %699 = vector.load %arg6[%c26_223, %c16_224] : memref<32x32xf32, #tpu.memory_space<vmem>>, vector<2x16xf32>
    tpu.vector_store %arg6[%c26_223, %c16_224], %698 {strides = array<i32>} : memref<32x32xf32, #tpu.memory_space<vmem>>, vector<2x16xf32>,
    %c6_225 = arith.constant 6 : index
    %c0_226 = arith.constant 0 : index
    %700 = vector.load %arg5[%c6_225, %c0_226] : memref<32x128xf32, #tpu.memory_space<vmem>>, vector<2x128xf32>
    %701 = arith.truncf %695 : vector<2x32xf32> to vector<2x32xbf16>
    %cst_227 = arith.constant dense<0.000000e+00> : vector<2x128xf32>
    %702 = tpu.matmul %701, %24, %cst_227 {dimension_numbers = #tpu.dot_dimension_numbers<[1], [0], [0], [1], [0, 0, 1, 1], [], []>} : vector<2x32xbf16>, vector<32x128xbf16>, vector<2x128xf32> -> vector<2x128xf32>
    %703 = arith.addf %700, %702 : vector<2x128xf32>
    %704 = arith.negf %703 : vector<2x128xf32>
    %705 = math.exp %704 : vector<2x128xf32>
    %cst_228 = arith.constant 1.000000e+00 : f32
    %706 = vector.broadcast %cst_228 : f32 to vector<2x128xf32>
    %707 = arith.addf %706, %705 : vector<2x128xf32>
    %708 = arith.divf %706, %707 : vector<2x128xf32>
    %709 = math.tanh %703 : vector<2x128xf32>
    %710 = vector.extract_strided_slice %708 {offsets = [0, 0], sizes = [2, 32], strides = [1, 1]} : vector<2x128xf32> to vector<2x32xf32>
    %711 = vector.extract_strided_slice %708 {offsets = [0, 32], sizes = [2, 32], strides = [1, 1]} : vector<2x128xf32> to vector<2x32xf32>
    %712 = vector.extract_strided_slice %709 {offsets = [0, 64], sizes = [2, 32], strides = [1, 1]} : vector<2x128xf32> to vector<2x32xf32>
    %713 = vector.extract_strided_slice %708 {offsets = [0, 96], sizes = [2, 32], strides = [1, 1]} : vector<2x128xf32> to vector<2x32xf32>
    %714 = arith.mulf %711, %693 : vector<2x32xf32>
    %715 = arith.mulf %710, %712 : vector<2x32xf32>
    %716 = arith.addf %714, %715 : vector<2x32xf32>
    %717 = math.tanh %716 : vector<2x32xf32>
    %718 = arith.mulf %713, %717 : vector<2x32xf32>
    %719 = vector.extract_strided_slice %718 {offsets = [0, 0], sizes = [2, 16], strides = [1, 1]} : vector<2x32xf32> to vector<2x16xf32>
    %c6_229 = arith.constant 6 : index
    %c0_230 = arith.constant 0 : index
    %720 = vector.load %arg6[%c6_229, %c0_230] : memref<32x32xf32, #tpu.memory_space<vmem>>, vector<2x16xf32>
    tpu.vector_store %arg6[%c6_229, %c0_230], %719 {strides = array<i32>} : memref<32x32xf32, #tpu.memory_space<vmem>>, vector<2x16xf32>,
    %721 = vector.extract_strided_slice %718 {offsets = [0, 16], sizes = [2, 16], strides = [1, 1]} : vector<2x32xf32> to vector<2x16xf32>
    %c24_231 = arith.constant 24 : index
    %c16_232 = arith.constant 16 : index
    %722 = vector.load %arg6[%c24_231, %c16_232] : memref<32x32xf32, #tpu.memory_space<vmem>>, vector<2x16xf32>
    tpu.vector_store %arg6[%c24_231, %c16_232], %721 {strides = array<i32>} : memref<32x32xf32, #tpu.memory_space<vmem>>, vector<2x16xf32>,
    %c8_233 = arith.constant 8 : index
    %c0_234 = arith.constant 0 : index
    %723 = vector.load %arg5[%c8_233, %c0_234] : memref<32x128xf32, #tpu.memory_space<vmem>>, vector<2x128xf32>
    %724 = arith.truncf %718 : vector<2x32xf32> to vector<2x32xbf16>
    %cst_235 = arith.constant dense<0.000000e+00> : vector<2x128xf32>
    %725 = tpu.matmul %724, %24, %cst_235 {dimension_numbers = #tpu.dot_dimension_numbers<[1], [0], [0], [1], [0, 0, 1, 1], [], []>} : vector<2x32xbf16>, vector<32x128xbf16>, vector<2x128xf32> -> vector<2x128xf32>
    %726 = arith.addf %723, %725 : vector<2x128xf32>
    %727 = arith.negf %726 : vector<2x128xf32>
    %728 = math.exp %727 : vector<2x128xf32>
    %cst_236 = arith.constant 1.000000e+00 : f32
    %729 = vector.broadcast %cst_236 : f32 to vector<2x128xf32>
    %730 = arith.addf %729, %728 : vector<2x128xf32>
    %731 = arith.divf %729, %730 : vector<2x128xf32>
    %732 = math.tanh %726 : vector<2x128xf32>
    %733 = vector.extract_strided_slice %731 {offsets = [0, 0], sizes = [2, 32], strides = [1, 1]} : vector<2x128xf32> to vector<2x32xf32>
    %734 = vector.extract_strided_slice %731 {offsets = [0, 32], sizes = [2, 32], strides = [1, 1]} : vector<2x128xf32> to vector<2x32xf32>
    %735 = vector.extract_strided_slice %732 {offsets = [0, 64], sizes = [2, 32], strides = [1, 1]} : vector<2x128xf32> to vector<2x32xf32>
    %736 = vector.extract_strided_slice %731 {offsets = [0, 96], sizes = [2, 32], strides = [1, 1]} : vector<2x128xf32> to vector<2x32xf32>
    %737 = arith.mulf %734, %716 : vector<2x32xf32>
    %738 = arith.mulf %733, %735 : vector<2x32xf32>
    %739 = arith.addf %737, %738 : vector<2x32xf32>
    %740 = math.tanh %739 : vector<2x32xf32>
    %741 = arith.mulf %736, %740 : vector<2x32xf32>
    %742 = vector.extract_strided_slice %741 {offsets = [0, 0], sizes = [2, 16], strides = [1, 1]} : vector<2x32xf32> to vector<2x16xf32>
    %c8_237 = arith.constant 8 : index
    %c0_238 = arith.constant 0 : index
    %743 = vector.load %arg6[%c8_237, %c0_238] : memref<32x32xf32, #tpu.memory_space<vmem>>, vector<2x16xf32>
    tpu.vector_store %arg6[%c8_237, %c0_238], %742 {strides = array<i32>} : memref<32x32xf32, #tpu.memory_space<vmem>>, vector<2x16xf32>,
    %744 = vector.extract_strided_slice %741 {offsets = [0, 16], sizes = [2, 16], strides = [1, 1]} : vector<2x32xf32> to vector<2x16xf32>
    %c22_239 = arith.constant 22 : index
    %c16_240 = arith.constant 16 : index
    %745 = vector.load %arg6[%c22_239, %c16_240] : memref<32x32xf32, #tpu.memory_space<vmem>>, vector<2x16xf32>
    tpu.vector_store %arg6[%c22_239, %c16_240], %744 {strides = array<i32>} : memref<32x32xf32, #tpu.memory_space<vmem>>, vector<2x16xf32>,
    %c10_241 = arith.constant 10 : index
    %c0_242 = arith.constant 0 : index
    %746 = vector.load %arg5[%c10_241, %c0_242] : memref<32x128xf32, #tpu.memory_space<vmem>>, vector<2x128xf32>
    %747 = arith.truncf %741 : vector<2x32xf32> to vector<2x32xbf16>
    %cst_243 = arith.constant dense<0.000000e+00> : vector<2x128xf32>
    %748 = tpu.matmul %747, %24, %cst_243 {dimension_numbers = #tpu.dot_dimension_numbers<[1], [0], [0], [1], [0, 0, 1, 1], [], []>} : vector<2x32xbf16>, vector<32x128xbf16>, vector<2x128xf32> -> vector<2x128xf32>
    %749 = arith.addf %746, %748 : vector<2x128xf32>
    %750 = arith.negf %749 : vector<2x128xf32>
    %751 = math.exp %750 : vector<2x128xf32>
    %cst_244 = arith.constant 1.000000e+00 : f32
    %752 = vector.broadcast %cst_244 : f32 to vector<2x128xf32>
    %753 = arith.addf %752, %751 : vector<2x128xf32>
    %754 = arith.divf %752, %753 : vector<2x128xf32>
    %755 = math.tanh %749 : vector<2x128xf32>
    %756 = vector.extract_strided_slice %754 {offsets = [0, 0], sizes = [2, 32], strides = [1, 1]} : vector<2x128xf32> to vector<2x32xf32>
    %757 = vector.extract_strided_slice %754 {offsets = [0, 32], sizes = [2, 32], strides = [1, 1]} : vector<2x128xf32> to vector<2x32xf32>
    %758 = vector.extract_strided_slice %755 {offsets = [0, 64], sizes = [2, 32], strides = [1, 1]} : vector<2x128xf32> to vector<2x32xf32>
    %759 = vector.extract_strided_slice %754 {offsets = [0, 96], sizes = [2, 32], strides = [1, 1]} : vector<2x128xf32> to vector<2x32xf32>
    %760 = arith.mulf %757, %739 : vector<2x32xf32>
    %761 = arith.mulf %756, %758 : vector<2x32xf32>
    %762 = arith.addf %760, %761 : vector<2x32xf32>
    %763 = math.tanh %762 : vector<2x32xf32>
    %764 = arith.mulf %759, %763 : vector<2x32xf32>
    %765 = vector.extract_strided_slice %764 {offsets = [0, 0], sizes = [2, 16], strides = [1, 1]} : vector<2x32xf32> to vector<2x16xf32>
    %c10_245 = arith.constant 10 : index
    %c0_246 = arith.constant 0 : index
    %766 = vector.load %arg6[%c10_245, %c0_246] : memref<32x32xf32, #tpu.memory_space<vmem>>, vector<2x16xf32>
    tpu.vector_store %arg6[%c10_245, %c0_246], %765 {strides = array<i32>} : memref<32x32xf32, #tpu.memory_space<vmem>>, vector<2x16xf32>,
    %767 = vector.extract_strided_slice %764 {offsets = [0, 16], sizes = [2, 16], strides = [1, 1]} : vector<2x32xf32> to vector<2x16xf32>
    %c20_247 = arith.constant 20 : index
    %c16_248 = arith.constant 16 : index
    %768 = vector.load %arg6[%c20_247, %c16_248] : memref<32x32xf32, #tpu.memory_space<vmem>>, vector<2x16xf32>
    tpu.vector_store %arg6[%c20_247, %c16_248], %767 {strides = array<i32>} : memref<32x32xf32, #tpu.memory_space<vmem>>, vector<2x16xf32>,
    %c12_249 = arith.constant 12 : index
    %c0_250 = arith.constant 0 : index
    %769 = vector.load %arg5[%c12_249, %c0_250] : memref<32x128xf32, #tpu.memory_space<vmem>>, vector<2x128xf32>
    %770 = arith.truncf %764 : vector<2x32xf32> to vector<2x32xbf16>
    %cst_251 = arith.constant dense<0.000000e+00> : vector<2x128xf32>
    %771 = tpu.matmul %770, %24, %cst_251 {dimension_numbers = #tpu.dot_dimension_numbers<[1], [0], [0], [1], [0, 0, 1, 1], [], []>} : vector<2x32xbf16>, vector<32x128xbf16>, vector<2x128xf32> -> vector<2x128xf32>
    %772 = arith.addf %769, %771 : vector<2x128xf32>
    %773 = arith.negf %772 : vector<2x128xf32>
    %774 = math.exp %773 : vector<2x128xf32>
    %cst_252 = arith.constant 1.000000e+00 : f32
    %775 = vector.broadcast %cst_252 : f32 to vector<2x128xf32>
    %776 = arith.addf %775, %774 : vector<2x128xf32>
    %777 = arith.divf %775, %776 : vector<2x128xf32>
    %778 = math.tanh %772 : vector<2x128xf32>
    %779 = vector.extract_strided_slice %777 {offsets = [0, 0], sizes = [2, 32], strides = [1, 1]} : vector<2x128xf32> to vector<2x32xf32>
    %780 = vector.extract_strided_slice %777 {offsets = [0, 32], sizes = [2, 32], strides = [1, 1]} : vector<2x128xf32> to vector<2x32xf32>
    %781 = vector.extract_strided_slice %778 {offsets = [0, 64], sizes = [2, 32], strides = [1, 1]} : vector<2x128xf32> to vector<2x32xf32>
    %782 = vector.extract_strided_slice %777 {offsets = [0, 96], sizes = [2, 32], strides = [1, 1]} : vector<2x128xf32> to vector<2x32xf32>
    %783 = arith.mulf %780, %762 : vector<2x32xf32>
    %784 = arith.mulf %779, %781 : vector<2x32xf32>
    %785 = arith.addf %783, %784 : vector<2x32xf32>
    %786 = math.tanh %785 : vector<2x32xf32>
    %787 = arith.mulf %782, %786 : vector<2x32xf32>
    %788 = vector.extract_strided_slice %787 {offsets = [0, 0], sizes = [2, 16], strides = [1, 1]} : vector<2x32xf32> to vector<2x16xf32>
    %c12_253 = arith.constant 12 : index
    %c0_254 = arith.constant 0 : index
    %789 = vector.load %arg6[%c12_253, %c0_254] : memref<32x32xf32, #tpu.memory_space<vmem>>, vector<2x16xf32>
    tpu.vector_store %arg6[%c12_253, %c0_254], %788 {strides = array<i32>} : memref<32x32xf32, #tpu.memory_space<vmem>>, vector<2x16xf32>,
    %790 = vector.extract_strided_slice %787 {offsets = [0, 16], sizes = [2, 16], strides = [1, 1]} : vector<2x32xf32> to vector<2x16xf32>
    %c18_255 = arith.constant 18 : index
    %c16_256 = arith.constant 16 : index
    %791 = vector.load %arg6[%c18_255, %c16_256] : memref<32x32xf32, #tpu.memory_space<vmem>>, vector<2x16xf32>
    tpu.vector_store %arg6[%c18_255, %c16_256], %790 {strides = array<i32>} : memref<32x32xf32, #tpu.memory_space<vmem>>, vector<2x16xf32>,
    %c14_257 = arith.constant 14 : index
    %c0_258 = arith.constant 0 : index
    %792 = vector.load %arg5[%c14_257, %c0_258] : memref<32x128xf32, #tpu.memory_space<vmem>>, vector<2x128xf32>
    %793 = arith.truncf %787 : vector<2x32xf32> to vector<2x32xbf16>
    %cst_259 = arith.constant dense<0.000000e+00> : vector<2x128xf32>
    %794 = tpu.matmul %793, %24, %cst_259 {dimension_numbers = #tpu.dot_dimension_numbers<[1], [0], [0], [1], [0, 0, 1, 1], [], []>} : vector<2x32xbf16>, vector<32x128xbf16>, vector<2x128xf32> -> vector<2x128xf32>
    %795 = arith.addf %792, %794 : vector<2x128xf32>
    %796 = arith.negf %795 : vector<2x128xf32>
    %797 = math.exp %796 : vector<2x128xf32>
    %cst_260 = arith.constant 1.000000e+00 : f32
    %798 = vector.broadcast %cst_260 : f32 to vector<2x128xf32>
    %799 = arith.addf %798, %797 : vector<2x128xf32>
    %800 = arith.divf %798, %799 : vector<2x128xf32>
    %801 = math.tanh %795 : vector<2x128xf32>
    %802 = vector.extract_strided_slice %800 {offsets = [0, 0], sizes = [2, 32], strides = [1, 1]} : vector<2x128xf32> to vector<2x32xf32>
    %803 = vector.extract_strided_slice %800 {offsets = [0, 32], sizes = [2, 32], strides = [1, 1]} : vector<2x128xf32> to vector<2x32xf32>
    %804 = vector.extract_strided_slice %801 {offsets = [0, 64], sizes = [2, 32], strides = [1, 1]} : vector<2x128xf32> to vector<2x32xf32>
    %805 = vector.extract_strided_slice %800 {offsets = [0, 96], sizes = [2, 32], strides = [1, 1]} : vector<2x128xf32> to vector<2x32xf32>
    %806 = arith.mulf %803, %785 : vector<2x32xf32>
    %807 = arith.mulf %802, %804 : vector<2x32xf32>
    %808 = arith.addf %806, %807 : vector<2x32xf32>
    %809 = math.tanh %808 : vector<2x32xf32>
    %810 = arith.mulf %805, %809 : vector<2x32xf32>
    %811 = vector.extract_strided_slice %810 {offsets = [0, 0], sizes = [2, 16], strides = [1, 1]} : vector<2x32xf32> to vector<2x16xf32>
    %c14_261 = arith.constant 14 : index
    %c0_262 = arith.constant 0 : index
    %812 = vector.load %arg6[%c14_261, %c0_262] : memref<32x32xf32, #tpu.memory_space<vmem>>, vector<2x16xf32>
    tpu.vector_store %arg6[%c14_261, %c0_262], %811 {strides = array<i32>} : memref<32x32xf32, #tpu.memory_space<vmem>>, vector<2x16xf32>,
    %813 = vector.extract_strided_slice %810 {offsets = [0, 16], sizes = [2, 16], strides = [1, 1]} : vector<2x32xf32> to vector<2x16xf32>
    %c16_263 = arith.constant 16 : index
    %c16_264 = arith.constant 16 : index
    %814 = vector.load %arg6[%c16_263, %c16_264] : memref<32x32xf32, #tpu.memory_space<vmem>>, vector<2x16xf32>
    tpu.vector_store %arg6[%c16_263, %c16_264], %813 {strides = array<i32>} : memref<32x32xf32, #tpu.memory_space<vmem>>, vector<2x16xf32>,
    %c16_265 = arith.constant 16 : index
    %c0_266 = arith.constant 0 : index
    %815 = vector.load %arg5[%c16_265, %c0_266] : memref<32x128xf32, #tpu.memory_space<vmem>>, vector<2x128xf32>
    %816 = arith.truncf %810 : vector<2x32xf32> to vector<2x32xbf16>
    %cst_267 = arith.constant dense<0.000000e+00> : vector<2x128xf32>
    %817 = tpu.matmul %816, %24, %cst_267 {dimension_numbers = #tpu.dot_dimension_numbers<[1], [0], [0], [1], [0, 0, 1, 1], [], []>} : vector<2x32xbf16>, vector<32x128xbf16>, vector<2x128xf32> -> vector<2x128xf32>
    %818 = arith.addf %815, %817 : vector<2x128xf32>
    %819 = arith.negf %818 : vector<2x128xf32>
    %820 = math.exp %819 : vector<2x128xf32>
    %cst_268 = arith.constant 1.000000e+00 : f32
    %821 = vector.broadcast %cst_268 : f32 to vector<2x128xf32>
    %822 = arith.addf %821, %820 : vector<2x128xf32>
    %823 = arith.divf %821, %822 : vector<2x128xf32>
    %824 = math.tanh %818 : vector<2x128xf32>
    %825 = vector.extract_strided_slice %823 {offsets = [0, 0], sizes = [2, 32], strides = [1, 1]} : vector<2x128xf32> to vector<2x32xf32>
    %826 = vector.extract_strided_slice %823 {offsets = [0, 32], sizes = [2, 32], strides = [1, 1]} : vector<2x128xf32> to vector<2x32xf32>
    %827 = vector.extract_strided_slice %824 {offsets = [0, 64], sizes = [2, 32], strides = [1, 1]} : vector<2x128xf32> to vector<2x32xf32>
    %828 = vector.extract_strided_slice %823 {offsets = [0, 96], sizes = [2, 32], strides = [1, 1]} : vector<2x128xf32> to vector<2x32xf32>
    %829 = arith.mulf %826, %808 : vector<2x32xf32>
    %830 = arith.mulf %825, %827 : vector<2x32xf32>
    %831 = arith.addf %829, %830 : vector<2x32xf32>
    %832 = math.tanh %831 : vector<2x32xf32>
    %833 = arith.mulf %828, %832 : vector<2x32xf32>
    %834 = vector.extract_strided_slice %833 {offsets = [0, 0], sizes = [2, 16], strides = [1, 1]} : vector<2x32xf32> to vector<2x16xf32>
    %c16_269 = arith.constant 16 : index
    %c0_270 = arith.constant 0 : index
    %835 = vector.load %arg6[%c16_269, %c0_270] : memref<32x32xf32, #tpu.memory_space<vmem>>, vector<2x16xf32>
    tpu.vector_store %arg6[%c16_269, %c0_270], %834 {strides = array<i32>} : memref<32x32xf32, #tpu.memory_space<vmem>>, vector<2x16xf32>,
    %836 = vector.extract_strided_slice %833 {offsets = [0, 16], sizes = [2, 16], strides = [1, 1]} : vector<2x32xf32> to vector<2x16xf32>
    %c14_271 = arith.constant 14 : index
    %c16_272 = arith.constant 16 : index
    %837 = vector.load %arg6[%c14_271, %c16_272] : memref<32x32xf32, #tpu.memory_space<vmem>>, vector<2x16xf32>
    tpu.vector_store %arg6[%c14_271, %c16_272], %836 {strides = array<i32>} : memref<32x32xf32, #tpu.memory_space<vmem>>, vector<2x16xf32>,
    %c18_273 = arith.constant 18 : index
    %c0_274 = arith.constant 0 : index
    %838 = vector.load %arg5[%c18_273, %c0_274] : memref<32x128xf32, #tpu.memory_space<vmem>>, vector<2x128xf32>
    %839 = arith.truncf %833 : vector<2x32xf32> to vector<2x32xbf16>
    %cst_275 = arith.constant dense<0.000000e+00> : vector<2x128xf32>
    %840 = tpu.matmul %839, %24, %cst_275 {dimension_numbers = #tpu.dot_dimension_numbers<[1], [0], [0], [1], [0, 0, 1, 1], [], []>} : vector<2x32xbf16>, vector<32x128xbf16>, vector<2x128xf32> -> vector<2x128xf32>
    %841 = arith.addf %838, %840 : vector<2x128xf32>
    %842 = arith.negf %841 : vector<2x128xf32>
    %843 = math.exp %842 : vector<2x128xf32>
    %cst_276 = arith.constant 1.000000e+00 : f32
    %844 = vector.broadcast %cst_276 : f32 to vector<2x128xf32>
    %845 = arith.addf %844, %843 : vector<2x128xf32>
    %846 = arith.divf %844, %845 : vector<2x128xf32>
    %847 = math.tanh %841 : vector<2x128xf32>
    %848 = vector.extract_strided_slice %846 {offsets = [0, 0], sizes = [2, 32], strides = [1, 1]} : vector<2x128xf32> to vector<2x32xf32>
    %849 = vector.extract_strided_slice %846 {offsets = [0, 32], sizes = [2, 32], strides = [1, 1]} : vector<2x128xf32> to vector<2x32xf32>
    %850 = vector.extract_strided_slice %847 {offsets = [0, 64], sizes = [2, 32], strides = [1, 1]} : vector<2x128xf32> to vector<2x32xf32>
    %851 = vector.extract_strided_slice %846 {offsets = [0, 96], sizes = [2, 32], strides = [1, 1]} : vector<2x128xf32> to vector<2x32xf32>
    %852 = arith.mulf %849, %831 : vector<2x32xf32>
    %853 = arith.mulf %848, %850 : vector<2x32xf32>
    %854 = arith.addf %852, %853 : vector<2x32xf32>
    %855 = math.tanh %854 : vector<2x32xf32>
    %856 = arith.mulf %851, %855 : vector<2x32xf32>
    %857 = vector.extract_strided_slice %856 {offsets = [0, 0], sizes = [2, 16], strides = [1, 1]} : vector<2x32xf32> to vector<2x16xf32>
    %c18_277 = arith.constant 18 : index
    %c0_278 = arith.constant 0 : index
    %858 = vector.load %arg6[%c18_277, %c0_278] : memref<32x32xf32, #tpu.memory_space<vmem>>, vector<2x16xf32>
    tpu.vector_store %arg6[%c18_277, %c0_278], %857 {strides = array<i32>} : memref<32x32xf32, #tpu.memory_space<vmem>>, vector<2x16xf32>,
    %859 = vector.extract_strided_slice %856 {offsets = [0, 16], sizes = [2, 16], strides = [1, 1]} : vector<2x32xf32> to vector<2x16xf32>
    %c12_279 = arith.constant 12 : index
    %c16_280 = arith.constant 16 : index
    %860 = vector.load %arg6[%c12_279, %c16_280] : memref<32x32xf32, #tpu.memory_space<vmem>>, vector<2x16xf32>
    tpu.vector_store %arg6[%c12_279, %c16_280], %859 {strides = array<i32>} : memref<32x32xf32, #tpu.memory_space<vmem>>, vector<2x16xf32>,
    %c20_281 = arith.constant 20 : index
    %c0_282 = arith.constant 0 : index
    %861 = vector.load %arg5[%c20_281, %c0_282] : memref<32x128xf32, #tpu.memory_space<vmem>>, vector<2x128xf32>
    %862 = arith.truncf %856 : vector<2x32xf32> to vector<2x32xbf16>
    %cst_283 = arith.constant dense<0.000000e+00> : vector<2x128xf32>
    %863 = tpu.matmul %862, %24, %cst_283 {dimension_numbers = #tpu.dot_dimension_numbers<[1], [0], [0], [1], [0, 0, 1, 1], [], []>} : vector<2x32xbf16>, vector<32x128xbf16>, vector<2x128xf32> -> vector<2x128xf32>
    %864 = arith.addf %861, %863 : vector<2x128xf32>
    %865 = arith.negf %864 : vector<2x128xf32>
    %866 = math.exp %865 : vector<2x128xf32>
    %cst_284 = arith.constant 1.000000e+00 : f32
    %867 = vector.broadcast %cst_284 : f32 to vector<2x128xf32>
    %868 = arith.addf %867, %866 : vector<2x128xf32>
    %869 = arith.divf %867, %868 : vector<2x128xf32>
    %870 = math.tanh %864 : vector<2x128xf32>
    %871 = vector.extract_strided_slice %869 {offsets = [0, 0], sizes = [2, 32], strides = [1, 1]} : vector<2x128xf32> to vector<2x32xf32>
    %872 = vector.extract_strided_slice %869 {offsets = [0, 32], sizes = [2, 32], strides = [1, 1]} : vector<2x128xf32> to vector<2x32xf32>
    %873 = vector.extract_strided_slice %870 {offsets = [0, 64], sizes = [2, 32], strides = [1, 1]} : vector<2x128xf32> to vector<2x32xf32>
    %874 = vector.extract_strided_slice %869 {offsets = [0, 96], sizes = [2, 32], strides = [1, 1]} : vector<2x128xf32> to vector<2x32xf32>
    %875 = arith.mulf %872, %854 : vector<2x32xf32>
    %876 = arith.mulf %871, %873 : vector<2x32xf32>
    %877 = arith.addf %875, %876 : vector<2x32xf32>
    %878 = math.tanh %877 : vector<2x32xf32>
    %879 = arith.mulf %874, %878 : vector<2x32xf32>
    %880 = vector.extract_strided_slice %879 {offsets = [0, 0], sizes = [2, 16], strides = [1, 1]} : vector<2x32xf32> to vector<2x16xf32>
    %c20_285 = arith.constant 20 : index
    %c0_286 = arith.constant 0 : index
    %881 = vector.load %arg6[%c20_285, %c0_286] : memref<32x32xf32, #tpu.memory_space<vmem>>, vector<2x16xf32>
    tpu.vector_store %arg6[%c20_285, %c0_286], %880 {strides = array<i32>} : memref<32x32xf32, #tpu.memory_space<vmem>>, vector<2x16xf32>,
    %882 = vector.extract_strided_slice %879 {offsets = [0, 16], sizes = [2, 16], strides = [1, 1]} : vector<2x32xf32> to vector<2x16xf32>
    %c10_287 = arith.constant 10 : index
    %c16_288 = arith.constant 16 : index
    %883 = vector.load %arg6[%c10_287, %c16_288] : memref<32x32xf32, #tpu.memory_space<vmem>>, vector<2x16xf32>
    tpu.vector_store %arg6[%c10_287, %c16_288], %882 {strides = array<i32>} : memref<32x32xf32, #tpu.memory_space<vmem>>, vector<2x16xf32>,
    %c22_289 = arith.constant 22 : index
    %c0_290 = arith.constant 0 : index
    %884 = vector.load %arg5[%c22_289, %c0_290] : memref<32x128xf32, #tpu.memory_space<vmem>>, vector<2x128xf32>
    %885 = arith.truncf %879 : vector<2x32xf32> to vector<2x32xbf16>
    %cst_291 = arith.constant dense<0.000000e+00> : vector<2x128xf32>
    %886 = tpu.matmul %885, %24, %cst_291 {dimension_numbers = #tpu.dot_dimension_numbers<[1], [0], [0], [1], [0, 0, 1, 1], [], []>} : vector<2x32xbf16>, vector<32x128xbf16>, vector<2x128xf32> -> vector<2x128xf32>
    %887 = arith.addf %884, %886 : vector<2x128xf32>
    %888 = arith.negf %887 : vector<2x128xf32>
    %889 = math.exp %888 : vector<2x128xf32>
    %cst_292 = arith.constant 1.000000e+00 : f32
    %890 = vector.broadcast %cst_292 : f32 to vector<2x128xf32>
    %891 = arith.addf %890, %889 : vector<2x128xf32>
    %892 = arith.divf %890, %891 : vector<2x128xf32>
    %893 = math.tanh %887 : vector<2x128xf32>
    %894 = vector.extract_strided_slice %892 {offsets = [0, 0], sizes = [2, 32], strides = [1, 1]} : vector<2x128xf32> to vector<2x32xf32>
    %895 = vector.extract_strided_slice %892 {offsets = [0, 32], sizes = [2, 32], strides = [1, 1]} : vector<2x128xf32> to vector<2x32xf32>
    %896 = vector.extract_strided_slice %893 {offsets = [0, 64], sizes = [2, 32], strides = [1, 1]} : vector<2x128xf32> to vector<2x32xf32>
    %897 = vector.extract_strided_slice %892 {offsets = [0, 96], sizes = [2, 32], strides = [1, 1]} : vector<2x128xf32> to vector<2x32xf32>
    %898 = arith.mulf %895, %877 : vector<2x32xf32>
    %899 = arith.mulf %894, %896 : vector<2x32xf32>
    %900 = arith.addf %898, %899 : vector<2x32xf32>
    %901 = math.tanh %900 : vector<2x32xf32>
    %902 = arith.mulf %897, %901 : vector<2x32xf32>
    %903 = vector.extract_strided_slice %902 {offsets = [0, 0], sizes = [2, 16], strides = [1, 1]} : vector<2x32xf32> to vector<2x16xf32>
    %c22_293 = arith.constant 22 : index
    %c0_294 = arith.constant 0 : index
    %904 = vector.load %arg6[%c22_293, %c0_294] : memref<32x32xf32, #tpu.memory_space<vmem>>, vector<2x16xf32>
    tpu.vector_store %arg6[%c22_293, %c0_294], %903 {strides = array<i32>} : memref<32x32xf32, #tpu.memory_space<vmem>>, vector<2x16xf32>,
    %905 = vector.extract_strided_slice %902 {offsets = [0, 16], sizes = [2, 16], strides = [1, 1]} : vector<2x32xf32> to vector<2x16xf32>
    %c8_295 = arith.constant 8 : index
    %c16_296 = arith.constant 16 : index
    %906 = vector.load %arg6[%c8_295, %c16_296] : memref<32x32xf32, #tpu.memory_space<vmem>>, vector<2x16xf32>
    tpu.vector_store %arg6[%c8_295, %c16_296], %905 {strides = array<i32>} : memref<32x32xf32, #tpu.memory_space<vmem>>, vector<2x16xf32>,
    %c24_297 = arith.constant 24 : index
    %c0_298 = arith.constant 0 : index
    %907 = vector.load %arg5[%c24_297, %c0_298] : memref<32x128xf32, #tpu.memory_space<vmem>>, vector<2x128xf32>
    %908 = arith.truncf %902 : vector<2x32xf32> to vector<2x32xbf16>
    %cst_299 = arith.constant dense<0.000000e+00> : vector<2x128xf32>
    %909 = tpu.matmul %908, %24, %cst_299 {dimension_numbers = #tpu.dot_dimension_numbers<[1], [0], [0], [1], [0, 0, 1, 1], [], []>} : vector<2x32xbf16>, vector<32x128xbf16>, vector<2x128xf32> -> vector<2x128xf32>
    %910 = arith.addf %907, %909 : vector<2x128xf32>
    %911 = arith.negf %910 : vector<2x128xf32>
    %912 = math.exp %911 : vector<2x128xf32>
    %cst_300 = arith.constant 1.000000e+00 : f32
    %913 = vector.broadcast %cst_300 : f32 to vector<2x128xf32>
    %914 = arith.addf %913, %912 : vector<2x128xf32>
    %915 = arith.divf %913, %914 : vector<2x128xf32>
    %916 = math.tanh %910 : vector<2x128xf32>
    %917 = vector.extract_strided_slice %915 {offsets = [0, 0], sizes = [2, 32], strides = [1, 1]} : vector<2x128xf32> to vector<2x32xf32>
    %918 = vector.extract_strided_slice %915 {offsets = [0, 32], sizes = [2, 32], strides = [1, 1]} : vector<2x128xf32> to vector<2x32xf32>
    %919 = vector.extract_strided_slice %916 {offsets = [0, 64], sizes = [2, 32], strides = [1, 1]} : vector<2x128xf32> to vector<2x32xf32>
    %920 = vector.extract_strided_slice %915 {offsets = [0, 96], sizes = [2, 32], strides = [1, 1]} : vector<2x128xf32> to vector<2x32xf32>
    %921 = arith.mulf %918, %900 : vector<2x32xf32>
    %922 = arith.mulf %917, %919 : vector<2x32xf32>
    %923 = arith.addf %921, %922 : vector<2x32xf32>
    %924 = math.tanh %923 : vector<2x32xf32>
    %925 = arith.mulf %920, %924 : vector<2x32xf32>
    %926 = vector.extract_strided_slice %925 {offsets = [0, 0], sizes = [2, 16], strides = [1, 1]} : vector<2x32xf32> to vector<2x16xf32>
    %c24_301 = arith.constant 24 : index
    %c0_302 = arith.constant 0 : index
    %927 = vector.load %arg6[%c24_301, %c0_302] : memref<32x32xf32, #tpu.memory_space<vmem>>, vector<2x16xf32>
    tpu.vector_store %arg6[%c24_301, %c0_302], %926 {strides = array<i32>} : memref<32x32xf32, #tpu.memory_space<vmem>>, vector<2x16xf32>,
    %928 = vector.extract_strided_slice %925 {offsets = [0, 16], sizes = [2, 16], strides = [1, 1]} : vector<2x32xf32> to vector<2x16xf32>
    %c6_303 = arith.constant 6 : index
    %c16_304 = arith.constant 16 : index
    %929 = vector.load %arg6[%c6_303, %c16_304] : memref<32x32xf32, #tpu.memory_space<vmem>>, vector<2x16xf32>
    tpu.vector_store %arg6[%c6_303, %c16_304], %928 {strides = array<i32>} : memref<32x32xf32, #tpu.memory_space<vmem>>, vector<2x16xf32>,
    %c26_305 = arith.constant 26 : index
    %c0_306 = arith.constant 0 : index
    %930 = vector.load %arg5[%c26_305, %c0_306] : memref<32x128xf32, #tpu.memory_space<vmem>>, vector<2x128xf32>
    %931 = arith.truncf %925 : vector<2x32xf32> to vector<2x32xbf16>
    %cst_307 = arith.constant dense<0.000000e+00> : vector<2x128xf32>
    %932 = tpu.matmul %931, %24, %cst_307 {dimension_numbers = #tpu.dot_dimension_numbers<[1], [0], [0], [1], [0, 0, 1, 1], [], []>} : vector<2x32xbf16>, vector<32x128xbf16>, vector<2x128xf32> -> vector<2x128xf32>
    %933 = arith.addf %930, %932 : vector<2x128xf32>
    %934 = arith.negf %933 : vector<2x128xf32>
    %935 = math.exp %934 : vector<2x128xf32>
    %cst_308 = arith.constant 1.000000e+00 : f32
    %936 = vector.broadcast %cst_308 : f32 to vector<2x128xf32>
    %937 = arith.addf %936, %935 : vector<2x128xf32>
    %938 = arith.divf %936, %937 : vector<2x128xf32>
    %939 = math.tanh %933 : vector<2x128xf32>
    %940 = vector.extract_strided_slice %938 {offsets = [0, 0], sizes = [2, 32], strides = [1, 1]} : vector<2x128xf32> to vector<2x32xf32>
    %941 = vector.extract_strided_slice %938 {offsets = [0, 32], sizes = [2, 32], strides = [1, 1]} : vector<2x128xf32> to vector<2x32xf32>
    %942 = vector.extract_strided_slice %939 {offsets = [0, 64], sizes = [2, 32], strides = [1, 1]} : vector<2x128xf32> to vector<2x32xf32>
    %943 = vector.extract_strided_slice %938 {offsets = [0, 96], sizes = [2, 32], strides = [1, 1]} : vector<2x128xf32> to vector<2x32xf32>
    %944 = arith.mulf %941, %923 : vector<2x32xf32>
    %945 = arith.mulf %940, %942 : vector<2x32xf32>
    %946 = arith.addf %944, %945 : vector<2x32xf32>
    %947 = math.tanh %946 : vector<2x32xf32>
    %948 = arith.mulf %943, %947 : vector<2x32xf32>
    %949 = vector.extract_strided_slice %948 {offsets = [0, 0], sizes = [2, 16], strides = [1, 1]} : vector<2x32xf32> to vector<2x16xf32>
    %c26_309 = arith.constant 26 : index
    %c0_310 = arith.constant 0 : index
    %950 = vector.load %arg6[%c26_309, %c0_310] : memref<32x32xf32, #tpu.memory_space<vmem>>, vector<2x16xf32>
    tpu.vector_store %arg6[%c26_309, %c0_310], %949 {strides = array<i32>} : memref<32x32xf32, #tpu.memory_space<vmem>>, vector<2x16xf32>,
    %951 = vector.extract_strided_slice %948 {offsets = [0, 16], sizes = [2, 16], strides = [1, 1]} : vector<2x32xf32> to vector<2x16xf32>
    %c4_311 = arith.constant 4 : index
    %c16_312 = arith.constant 16 : index
    %952 = vector.load %arg6[%c4_311, %c16_312] : memref<32x32xf32, #tpu.memory_space<vmem>>, vector<2x16xf32>
    tpu.vector_store %arg6[%c4_311, %c16_312], %951 {strides = array<i32>} : memref<32x32xf32, #tpu.memory_space<vmem>>, vector<2x16xf32>,
    %c28_313 = arith.constant 28 : index
    %c0_314 = arith.constant 0 : index
    %953 = vector.load %arg5[%c28_313, %c0_314] : memref<32x128xf32, #tpu.memory_space<vmem>>, vector<2x128xf32>
    %954 = arith.truncf %948 : vector<2x32xf32> to vector<2x32xbf16>
    %cst_315 = arith.constant dense<0.000000e+00> : vector<2x128xf32>
    %955 = tpu.matmul %954, %24, %cst_315 {dimension_numbers = #tpu.dot_dimension_numbers<[1], [0], [0], [1], [0, 0, 1, 1], [], []>} : vector<2x32xbf16>, vector<32x128xbf16>, vector<2x128xf32> -> vector<2x128xf32>
    %956 = arith.addf %953, %955 : vector<2x128xf32>
    %957 = arith.negf %956 : vector<2x128xf32>
    %958 = math.exp %957 : vector<2x128xf32>
    %cst_316 = arith.constant 1.000000e+00 : f32
    %959 = vector.broadcast %cst_316 : f32 to vector<2x128xf32>
    %960 = arith.addf %959, %958 : vector<2x128xf32>
    %961 = arith.divf %959, %960 : vector<2x128xf32>
    %962 = math.tanh %956 : vector<2x128xf32>
    %963 = vector.extract_strided_slice %961 {offsets = [0, 0], sizes = [2, 32], strides = [1, 1]} : vector<2x128xf32> to vector<2x32xf32>
    %964 = vector.extract_strided_slice %961 {offsets = [0, 32], sizes = [2, 32], strides = [1, 1]} : vector<2x128xf32> to vector<2x32xf32>
    %965 = vector.extract_strided_slice %962 {offsets = [0, 64], sizes = [2, 32], strides = [1, 1]} : vector<2x128xf32> to vector<2x32xf32>
    %966 = vector.extract_strided_slice %961 {offsets = [0, 96], sizes = [2, 32], strides = [1, 1]} : vector<2x128xf32> to vector<2x32xf32>
    %967 = arith.mulf %964, %946 : vector<2x32xf32>
    %968 = arith.mulf %963, %965 : vector<2x32xf32>
    %969 = arith.addf %967, %968 : vector<2x32xf32>
    %970 = math.tanh %969 : vector<2x32xf32>
    %971 = arith.mulf %966, %970 : vector<2x32xf32>
    %972 = vector.extract_strided_slice %971 {offsets = [0, 0], sizes = [2, 16], strides = [1, 1]} : vector<2x32xf32> to vector<2x16xf32>
    %c28_317 = arith.constant 28 : index
    %c0_318 = arith.constant 0 : index
    %973 = vector.load %arg6[%c28_317, %c0_318] : memref<32x32xf32, #tpu.memory_space<vmem>>, vector<2x16xf32>
    tpu.vector_store %arg6[%c28_317, %c0_318], %972 {strides = array<i32>} : memref<32x32xf32, #tpu.memory_space<vmem>>, vector<2x16xf32>,
    %974 = vector.extract_strided_slice %971 {offsets = [0, 16], sizes = [2, 16], strides = [1, 1]} : vector<2x32xf32> to vector<2x16xf32>
    %c2_319 = arith.constant 2 : index
    %c16_320 = arith.constant 16 : index
    %975 = vector.load %arg6[%c2_319, %c16_320] : memref<32x32xf32, #tpu.memory_space<vmem>>, vector<2x16xf32>
    tpu.vector_store %arg6[%c2_319, %c16_320], %974 {strides = array<i32>} : memref<32x32xf32, #tpu.memory_space<vmem>>, vector<2x16xf32>,
    %c30_321 = arith.constant 30 : index
    %c0_322 = arith.constant 0 : index
    %976 = vector.load %arg5[%c30_321, %c0_322] : memref<32x128xf32, #tpu.memory_space<vmem>>, vector<2x128xf32>
    %977 = arith.truncf %971 : vector<2x32xf32> to vector<2x32xbf16>
    %cst_323 = arith.constant dense<0.000000e+00> : vector<2x128xf32>
    %978 = tpu.matmul %977, %24, %cst_323 {dimension_numbers = #tpu.dot_dimension_numbers<[1], [0], [0], [1], [0, 0, 1, 1], [], []>} : vector<2x32xbf16>, vector<32x128xbf16>, vector<2x128xf32> -> vector<2x128xf32>
    %979 = arith.addf %976, %978 : vector<2x128xf32>
    %980 = arith.negf %979 : vector<2x128xf32>
    %981 = math.exp %980 : vector<2x128xf32>
    %cst_324 = arith.constant 1.000000e+00 : f32
    %982 = vector.broadcast %cst_324 : f32 to vector<2x128xf32>
    %983 = arith.addf %982, %981 : vector<2x128xf32>
    %984 = arith.divf %982, %983 : vector<2x128xf32>
    %985 = math.tanh %979 : vector<2x128xf32>
    %986 = vector.extract_strided_slice %984 {offsets = [0, 0], sizes = [2, 32], strides = [1, 1]} : vector<2x128xf32> to vector<2x32xf32>
    %987 = vector.extract_strided_slice %984 {offsets = [0, 32], sizes = [2, 32], strides = [1, 1]} : vector<2x128xf32> to vector<2x32xf32>
    %988 = vector.extract_strided_slice %985 {offsets = [0, 64], sizes = [2, 32], strides = [1, 1]} : vector<2x128xf32> to vector<2x32xf32>
    %989 = vector.extract_strided_slice %984 {offsets = [0, 96], sizes = [2, 32], strides = [1, 1]} : vector<2x128xf32> to vector<2x32xf32>
    %990 = arith.mulf %987, %969 : vector<2x32xf32>
    %991 = arith.mulf %986, %988 : vector<2x32xf32>
    %992 = arith.addf %990, %991 : vector<2x32xf32>
    %993 = math.tanh %992 : vector<2x32xf32>
    %994 = arith.mulf %989, %993 : vector<2x32xf32>
    %995 = vector.extract_strided_slice %994 {offsets = [0, 0], sizes = [2, 16], strides = [1, 1]} : vector<2x32xf32> to vector<2x16xf32>
    %c30_325 = arith.constant 30 : index
    %c0_326 = arith.constant 0 : index
    %996 = vector.load %arg6[%c30_325, %c0_326] : memref<32x32xf32, #tpu.memory_space<vmem>>, vector<2x16xf32>
    tpu.vector_store %arg6[%c30_325, %c0_326], %995 {strides = array<i32>} : memref<32x32xf32, #tpu.memory_space<vmem>>, vector<2x16xf32>,
    %997 = vector.extract_strided_slice %994 {offsets = [0, 16], sizes = [2, 16], strides = [1, 1]} : vector<2x32xf32> to vector<2x16xf32>
    %c0_327 = arith.constant 0 : index
    %c16_328 = arith.constant 16 : index
    %998 = vector.load %arg6[%c0_327, %c16_328] : memref<32x32xf32, #tpu.memory_space<vmem>>, vector<2x16xf32>
    tpu.vector_store %arg6[%c0_327, %c16_328], %997 {strides = array<i32>} : memref<32x32xf32, #tpu.memory_space<vmem>>, vector<2x16xf32>,
    %c42 = arith.constant 42 : index
    %c0_329 = arith.constant 0 : index
    %999 = vector.load %arg2[%c42, %c0_329] : memref<56x128xf32, #tpu.memory_space<vmem>>, vector<2x32xf32>
    %c44 = arith.constant 44 : index
    %c0_330 = arith.constant 0 : index
    %1000 = vector.load %arg2[%c44, %c0_330] : memref<56x128xf32, #tpu.memory_space<vmem>>, vector<2x16xf32>
    %c46 = arith.constant 46 : index
    %c0_331 = arith.constant 0 : index
    %1001 = vector.load %arg2[%c46, %c0_331] : memref<56x128xf32, #tpu.memory_space<vmem>>, vector<2x1xf32>
    %c48 = arith.constant 48 : index
    %c0_332 = arith.constant 0 : index
    %1002 = vector.load %arg2[%c48, %c0_332] : memref<56x128xf32, #tpu.memory_space<vmem>>, vector<1x2xf32>
    %c49 = arith.constant 49 : index
    %c0_333 = arith.constant 0 : index
    %1003 = vector.load %arg2[%c49, %c0_333] : memref<56x128xf32, #tpu.memory_space<vmem>>, vector<3x32xf32>
    %c52 = arith.constant 52 : index
    %c0_334 = arith.constant 0 : index
    %1004 = vector.load %arg2[%c52, %c0_334] : memref<56x128xf32, #tpu.memory_space<vmem>>, vector<3x1xf32>
    %c0_335 = arith.constant 0 : index
    %c0_336 = arith.constant 0 : index
    %1005 = tpu.strided_load %arg6[%c0_335, %c0_336] {strides = array<i32: 2, 1>} : memref<32x32xf32, #tpu.memory_space<vmem>>, vector<16x32xf32>
    "tpu.trace_start"() <{level = 10 : i32, message = "kc,lc->kl"}> : () -> ()
    %cst_337 = arith.constant dense<0.000000e+00> : vector<2x16xf32>
    %1006 = tpu.matmul %999, %1005, %cst_337 {dimension_numbers = #tpu.dot_dimension_numbers<[1], [1], [0], [0], [0, 0, 1, 0], [], []>} : vector<2x32xf32>, vector<16x32xf32>, vector<2x16xf32> -> vector<2x16xf32>
    "tpu.trace_stop"() : () -> ()
    %1007 = vector.broadcast %1001 : vector<2x1xf32> to vector<2x16xf32>
    %1008 = arith.addf %1006, %1007 : vector<2x16xf32>
    "tpu.trace_start"() <{level = 10 : i32, message = "kl,jl->kj"}> : () -> ()
    %cst_338 = arith.constant dense<0.000000e+00> : vector<2x2xf32>
    %1009 = tpu.matmul %1008, %1000, %cst_338 {dimension_numbers = #tpu.dot_dimension_numbers<[1], [1], [0], [0], [0, 0, 1, 0], [], []>} : vector<2x16xf32>, vector<2x16xf32>, vector<2x2xf32> -> vector<2x2xf32>
    "tpu.trace_stop"() : () -> ()
    %1010 = vector.broadcast %1002 : vector<1x2xf32> to vector<2x2xf32>
    %1011 = arith.addf %1009, %1010 : vector<2x2xf32>
    %1012 = arith.negf %1011 : vector<2x2xf32>
    %1013 = math.exp %1012 : vector<2x2xf32>
    %cst_339 = arith.constant 1.000000e+00 : f32
    %1014 = vector.broadcast %cst_339 : f32 to vector<2x2xf32>
    %1015 = arith.addf %1014, %1013 : vector<2x2xf32>
    %1016 = arith.divf %1014, %1015 : vector<2x2xf32>
    %c0_340 = arith.constant 0 : index
    %c0_341 = arith.constant 0 : index
    %c0_342 = arith.constant 0 : index
    %1017 = vector.load %arg3[%c0_340, %c0_341, %c0_342] : memref<2x2x2xf32, #tpu.memory_space<vmem>>, vector<1x2x2xf32>
    %1018 = vector.shape_cast %1017 : vector<1x2x2xf32> to vector<2x2xf32>
    %1019 = vector.shape_cast %1016 : vector<2x2xf32> to vector<1x2x2xf32>
    tpu.vector_store %arg3[%c0_340, %c0_341, %c0_342], %1019 {strides = array<i32>} : memref<2x2x2xf32, #tpu.memory_space<vmem>>, vector<1x2x2xf32>,
    "tpu.trace_start"() <{level = 10 : i32, message = "oc,lc->ol"}> : () -> ()
    %cst_343 = arith.constant dense<0.000000e+00> : vector<3x16xf32>
    %1020 = tpu.matmul %1003, %1005, %cst_343 {dimension_numbers = #tpu.dot_dimension_numbers<[1], [1], [0], [0], [0, 0, 1, 0], [], []>} : vector<3x32xf32>, vector<16x32xf32>, vector<3x16xf32> -> vector<3x16xf32>
    "tpu.trace_stop"() : () -> ()
    %1021 = vector.broadcast %1004 : vector<3x1xf32> to vector<3x16xf32>
    %1022 = arith.addf %1020, %1021 : vector<3x16xf32>
    %c0_344 = arith.constant 0 : index
    %c0_345 = arith.constant 0 : index
    %c0_346 = arith.constant 0 : index
    %1023 = vector.load %arg4[%c0_344, %c0_345, %c0_346] : memref<2x3x16xf32, #tpu.memory_space<vmem>>, vector<1x3x16xf32>
    %1024 = vector.shape_cast %1023 : vector<1x3x16xf32> to vector<3x16xf32>
    %1025 = vector.shape_cast %1022 : vector<3x16xf32> to vector<1x3x16xf32>
    tpu.vector_store %arg4[%c0_344, %c0_345, %c0_346], %1025 {strides = array<i32>} : memref<2x3x16xf32, #tpu.memory_space<vmem>>, vector<1x3x16xf32>,
    %c1_347 = arith.constant 1 : index
    %c0_348 = arith.constant 0 : index
    %1026 = tpu.strided_load %arg6[%c1_347, %c0_348] {strides = array<i32: 2, 1>} : memref<32x32xf32, #tpu.memory_space<vmem>>, vector<16x32xf32>
    "tpu.trace_start"() <{level = 10 : i32, message = "kc,lc->kl"}> : () -> ()
    %cst_349 = arith.constant dense<0.000000e+00> : vector<2x16xf32>
    %1027 = tpu.matmul %999, %1026, %cst_349 {dimension_numbers = #tpu.dot_dimension_numbers<[1], [1], [0], [0], [0, 0, 1, 0], [], []>} : vector<2x32xf32>, vector<16x32xf32>, vector<2x16xf32> -> vector<2x16xf32>
    "tpu.trace_stop"() : () -> ()
    %1028 = vector.broadcast %1001 : vector<2x1xf32> to vector<2x16xf32>
    %1029 = arith.addf %1027, %1028 : vector<2x16xf32>
    "tpu.trace_start"() <{level = 10 : i32, message = "kl,jl->kj"}> : () -> ()
    %cst_350 = arith.constant dense<0.000000e+00> : vector<2x2xf32>
    %1030 = tpu.matmul %1029, %1000, %cst_350 {dimension_numbers = #tpu.dot_dimension_numbers<[1], [1], [0], [0], [0, 0, 1, 0], [], []>} : vector<2x16xf32>, vector<2x16xf32>, vector<2x2xf32> -> vector<2x2xf32>
    "tpu.trace_stop"() : () -> ()
    %1031 = vector.broadcast %1002 : vector<1x2xf32> to vector<2x2xf32>
    %1032 = arith.addf %1030, %1031 : vector<2x2xf32>
    %1033 = arith.negf %1032 : vector<2x2xf32>
    %1034 = math.exp %1033 : vector<2x2xf32>
    %cst_351 = arith.constant 1.000000e+00 : f32
    %1035 = vector.broadcast %cst_351 : f32 to vector<2x2xf32>
    %1036 = arith.addf %1035, %1034 : vector<2x2xf32>
    %1037 = arith.divf %1035, %1036 : vector<2x2xf32>
    %c1_352 = arith.constant 1 : index
    %c0_353 = arith.constant 0 : index
    %c0_354 = arith.constant 0 : index
    %1038 = vector.load %arg3[%c1_352, %c0_353, %c0_354] : memref<2x2x2xf32, #tpu.memory_space<vmem>>, vector<1x2x2xf32>
    %1039 = vector.shape_cast %1038 : vector<1x2x2xf32> to vector<2x2xf32>
    %1040 = vector.shape_cast %1037 : vector<2x2xf32> to vector<1x2x2xf32>
    tpu.vector_store %arg3[%c1_352, %c0_353, %c0_354], %1040 {strides = array<i32>} : memref<2x2x2xf32, #tpu.memory_space<vmem>>, vector<1x2x2xf32>,
    "tpu.trace_start"() <{level = 10 : i32, message = "oc,lc->ol"}> : () -> ()
    %cst_355 = arith.constant dense<0.000000e+00> : vector<3x16xf32>
    %1041 = tpu.matmul %1003, %1026, %cst_355 {dimension_numbers = #tpu.dot_dimension_numbers<[1], [1], [0], [0], [0, 0, 1, 0], [], []>} : vector<3x32xf32>, vector<16x32xf32>, vector<3x16xf32> -> vector<3x16xf32>
    "tpu.trace_stop"() : () -> ()
    %1042 = vector.broadcast %1004 : vector<3x1xf32> to vector<3x16xf32>
    %1043 = arith.addf %1041, %1042 : vector<3x16xf32>
    %c1_356 = arith.constant 1 : index
    %c0_357 = arith.constant 0 : index
    %c0_358 = arith.constant 0 : index
    %1044 = vector.load %arg4[%c1_356, %c0_357, %c0_358] : memref<2x3x16xf32, #tpu.memory_space<vmem>>, vector<1x3x16xf32>
    %1045 = vector.shape_cast %1044 : vector<1x3x16xf32> to vector<3x16xf32>
    %1046 = vector.shape_cast %1043 : vector<3x16xf32> to vector<1x3x16xf32>
    tpu.vector_store %arg4[%c1_356, %c0_357, %c0_358], %1046 {strides = array<i32>} : memref<2x3x16xf32, #tpu.memory_space<vmem>>, vector<1x3x16xf32>,
    return
  }
}

</mosaic_0001>

<llo_original>
// kernel: lstm_classifier_reg_forward.1
$region0: #{lstm_classifier_reg_forward.1}
  #allocation0 [shape = 'u32[]', space=smem, size = 0x4, offset = 0x4, fixed_abs, tag = 'smem constant byte address 0x4 - core index']
  #allocation1 [shape = 'u32[72,128]{1,0:T(1,128)}', space=vmem, size = 0x9000, scoped, tag = 'internal scratch']
  #allocation2 [shape = 'f32[32,128]{1,0:T(8,128)}', space=vmem, size = 0x4000, scoped, tag = 'scratch operand']
  #allocation3 [shape = 'f32[32,32]{1,0:T(8,128)}', space=vmem, size = 0x4000, scoped, tag = 'scratch operand']
  %s0 = inlined_call_operand.hbm [shape: f32[2,4,16], index: 0, kind: input, shape index: {}]
  %s1 = inlined_call_operand.hbm [shape: bf16[64,128], index: 1, kind: input, shape index: {}]
  %s2 = inlined_call_operand.hbm [shape: f32[56,128], index: 2, kind: input, shape index: {}]
  %s3 = inlined_call_operand.hbm [shape: f32[2,2,2], index: 3, kind: output, shape index: {0}]
  %s4 = inlined_call_operand.vmem [shape: f32[2,3,16], index: 4, kind: output, shape index: {1}]
  %5 = xla_tuple %s3, %s4
  %s6 = sld [smem:[#allocation0]]
  $region42: #{lstm_classifier_reg_forward.1} parent=0
    _
  %s8 = ssub.s32 1, %s6
  %s9 = scalar_select 0, %s8, %s6
  $region1: #{lstm_classifier_reg_forward.1} parent=0
    #allocation4 [shape = 'u8[4096]{0}', space=vmem, size = 0x1000, scoped, tag = 'input window, operand 0, single buffered']
    #allocation5 [shape = 's32[1]{0}', space=sflag, size = 0x4, scoped, tag = 'scoped memory for lstm_classifier_reg_forward.1']
    #allocation6 [shape = 's32[1]{0}', space=sflag, size = 0x4, scoped, tag = 'scoped memory for lstm_classifier_reg_forward.1']
    #allocation7 [shape = 'u8[16384]{0}', space=vmem, size = 0x4000, scoped, tag = 'input window, operand 1, single buffered']
    #allocation8 [shape = 's32[1]{0}', space=sflag, size = 0x4, scoped, tag = 'scoped memory for lstm_classifier_reg_forward.1']
    #allocation9 [shape = 'u8[28672]{0}', space=vmem, size = 0x7000, scoped, tag = 'input window, operand 2, single buffered']
    #allocation10 [shape = 'u8[2048]{0}', space=vmem, size = 0x800, scoped, tag = 'output window, operand 0, single buffered']
    %10 = vsyncpa [#allocation5], 0
    %11 = vsyncpa [#allocation8], 0
    %12 = vsyncpa [#allocation6], 0
    // Predicated region
    $region2: #{lstm_classifier_reg_forward.1} parent=1 // pred_check
      _
    $region3: #{lstm_classifier_reg_forward.1} parent=1 // pred_check_branch
      %14 = sbr.rel (0) target = $region5
    $region4: #{lstm_classifier_reg_forward.1} parent=1 // pred_region
      %16 = vsyncadd [#allocation5], 0
      %s17 = sshll.u32 %s0, 4
      %s18 = int_to_ptr.hbm [resolvable:$true] %s17
      %s19 = sshll.u32 [#allocation4], 4
      %s20 = int_to_ptr.vmem [resolvable:$true] %s19
      %25 = dma.hbm_to_vmem [thread:$0]  %s18, 128, %s20, [#allocation5], 64, 64, 4
    $region5: #{lstm_classifier_reg_forward.1} parent=1 // pred_fallthru
      _
    // Predicated region
    $region6: #{lstm_classifier_reg_forward.1} parent=1 // pred_check
      _
    $region7: #{lstm_classifier_reg_forward.1} parent=1 // pred_check_branch
      %27 = sbr.rel (0) target = $region9
    $region8: #{lstm_classifier_reg_forward.1} parent=1 // pred_region
      %29 = vsyncadd [#allocation8], 0
      %s30 = sshll.u32 %s1, 4
      %s31 = int_to_ptr.hbm [resolvable:$true] %s30
      %s32 = sshll.u32 [#allocation7], 4
      %s33 = int_to_ptr.vmem [resolvable:$true] %s32
      %38 = dma.hbm_to_vmem [thread:$0]  %s31, 512, %s33, [#allocation8], 64, 64, 4
    $region9: #{lstm_classifier_reg_forward.1} parent=1 // pred_fallthru
      _
    // Predicated region
    $region10: #{lstm_classifier_reg_forward.1} parent=1 // pred_check
      _
    $region11: #{lstm_classifier_reg_forward.1} parent=1 // pred_check_branch
      %40 = sbr.rel (0) target = $region13
    $region12: #{lstm_classifier_reg_forward.1} parent=1 // pred_region
      %42 = vsyncadd [#allocation8], 0
      %s43 = sshll.u32 %s2, 4
      %s44 = int_to_ptr.hbm [resolvable:$true] %s43
      %s45 = sshll.u32 [#allocation9], 4
      %s46 = int_to_ptr.vmem [resolvable:$true] %s45
      %51 = dma.hbm_to_vmem [thread:$0]  %s44, 896, %s46, [#allocation8], 128, 128, 8
    $region13: #{lstm_classifier_reg_forward.1} parent=1 // pred_fallthru
      _
    // Predicated region
    $region14: #{lstm_classifier_reg_forward.1} parent=1 // pred_check
      _
    $region15: #{lstm_classifier_reg_forward.1} parent=1 // pred_check_branch
      %53 = sbr.rel (0) target = $region17
    $region16: #{lstm_classifier_reg_forward.1} parent=1 // pred_region
      %55 = dma.done [#allocation5], 128
    $region17: #{lstm_classifier_reg_forward.1} parent=1 // pred_fallthru
      _
    // Predicated region
    $region18: #{lstm_classifier_reg_forward.1} parent=1 // pred_check
      _
    $region19: #{lstm_classifier_reg_forward.1} parent=1 // pred_check_branch
      %57 = sbr.rel (0) target = $region21
    $region20: #{lstm_classifier_reg_forward.1} parent=1 // pred_region
      %59 = dma.done [#allocation8], 512
    $region21: #{lstm_classifier_reg_forward.1} parent=1 // pred_fallthru
      _
    // Predicated region
    $region22: #{lstm_classifier_reg_forward.1} parent=1 // pred_check
      _
    $region23: #{lstm_classifier_reg_forward.1} parent=1 // pred_check_branch
      %61 = sbr.rel (0) target = $region25
    $region24: #{lstm_classifier_reg_forward.1} parent=1 // pred_region
      %63 = dma.done [#allocation8], 896
    $region25: #{lstm_classifier_reg_forward.1} parent=1 // pred_fallthru
      _
    %v65 = vlaneseq
    %v66 = vand.u32 %v65, 127
    %vm67 = vcmp.lt.s32.totalorder %v66, 0
    %v68 = vsub.s32 0, %v66
    %v69 = vsel %vm67, %v68, %v66
    %v70 = vshrl.u32 %v69, 5
    %v71 = vand.u32 %v69, 31
    %v72 = vsub.s32 0, %v71
    %v73 = vsel %vm67, %v72, %v71
    %vm74 = vcmp.ne.s32.totalorder %v73, 0
    %vm75 = vcmp.lt.s32.totalorder %v73, 0
    %vm76 = vmand %vm75, %vm74
    %v77 = vadd.s32 %v73, 32
    %v78 = vsel %vm76, %v77, %v73
    %vm79 = vcmp.lt.s32.totalorder %v78, 16
    %v80 = vld [vmem:[#allocation9] sm:$0xf]
    %v81 = vld [vmem:[#allocation9 + $0x8] sm:$0xff]
    %v82 = vld [vmem:[#allocation9 + $0x10] sm:$0xff]
    %v83 = vld [vmem:[#allocation9 + $0x18] sm:$0xff]
    %v84 = vld [vmem:[#allocation9 + $0x20] sm:$0xff]
    %v85 = vld [vmem:[#allocation9 + $0x28] sm:$0x1]
    %v86 = vld [vmem:[#allocation9 + $0x29] sm:$0x1]
    %v87 = vld [vmem:[#allocation7] sm:$0xf]
    %v88 = vld [vmem:[#allocation7 + $0x4] sm:$0xf]
    %v89 = vld [vmem:[#allocation7 + $0x8] sm:$0xf]
    %v90 = vld [vmem:[#allocation7 + $0xc] sm:$0xf]
    %v91 = vld [vmem:[#allocation7 + $0x10] sm:$0xf]
    %v92 = vld [vmem:[#allocation7 + $0x14] sm:$0xf]
    %v93 = vld [vmem:[#allocation7 + $0x18] sm:$0xf]
    %v94 = vld [vmem:[#allocation7 + $0x1c] sm:$0xf]
    %v95 = vld [vmem:[#allocation4] sm:$0xf]
    %96 = vxpose.xlu0.b32.start [1/16] %v95, 128
    %97 = vxpose.xlu0.b32.cont [2/16] 0.0, 128
    %98 = vxpose.xlu0.b32.cont [3/16] 0.0, 128
    %99 = vxpose.xlu0.b32.cont [4/16] 0.0, 128
    %100 = vxpose.xlu0.b32.cont [5/16] 0.0, 128
    %101 = vxpose.xlu0.b32.cont [6/16] 0.0, 128
    %102 = vxpose.xlu0.b32.cont [7/16] 0.0, 128
    %103 = vxpose.xlu0.b32.cont [8/16] 0.0, 128
    %104 = vxpose.xlu0.b32.cont [9/16] 0.0, 128
    %105 = vxpose.xlu0.b32.cont [10/16] 0.0, 128
    %106 = vxpose.xlu0.b32.cont [11/16] 0.0, 128
    %107 = vxpose.xlu0.b32.cont [12/16] 0.0, 128
    %108 = vxpose.xlu0.b32.cont [13/16] 0.0, 128
    %109 = vxpose.xlu0.b32.cont [14/16] 0.0, 128
    %110 = vxpose.xlu0.b32.cont [15/16] 0.0, 128
    %111 = vxpose.xlu0.b32.end [16/16] 0.0, 128
    %v112 = vpop.trf.xlu0
    %v113 = vpop.trf.xlu0
    %v114 = vpop.trf.xlu0
    %v115 = vpop.trf.xlu0
    %v116 = vpop.trf.xlu0
    %v117 = vpop.trf.xlu0
    %v118 = vpop.trf.xlu0
    %v119 = vpop.trf.xlu0
    %v120 = vpop.trf.xlu0
    %v121 = vpop.trf.xlu0
    %v122 = vpop.trf.xlu0
    %v123 = vpop.trf.xlu0
    %v124 = vpop.trf.xlu0
    %v125 = vpop.trf.xlu0
    %v126 = vpop.trf.xlu0
    %v127 = vpop.trf.xlu0
    %vm128 = vcmask 31744
    %v130 = vsel %vm128, %v112, 0
    %v133 = vsel %vm128, %v113, 0
    %vm135 = vcmask 1043456
    %v137 = vsel %vm135, %v80, 0
    %139 = vmatpush.msra.mxu0 0.0
    %140 = vmatpush.msra.mxu0 0.0
    %141 = vmatpush.msra.mxu0 0.0
    %142 = vmatpush.msra.mxu0 0.0
    %143 = vmatpush.msra.mxu0 0.0
    %144 = vmatpush.msra.mxu0 0.0
    %145 = vmatpush.msra.mxu0 0.0
    %146 = vmatpush.msra.mxu0 0.0
    %147 = vmatpush.msra.mxu0 0.0
    %148 = vmatpush.msra.mxu0 0.0
    %149 = vmatpush.msra.mxu0 0.0
    %150 = vmatpush.msra.mxu0 0.0
    %151 = vmatpush.msra.mxu0 0.0
    %152 = vmatpush.msra.mxu0 0.0
    %153 = vmatpush.msra.mxu0 0.0
    %154 = vmatpush.msra.mxu0 %v137
    %155 = vmatmul.f32.gmra.mxu0 %v130
    %v156 = vpop.f32.mrf.mxu0
    %v157 = vadd.f32 0.0, %v156
    %158 = vmatmul.f32.gmra.mxu0 %v133
    %v159 = vpop.f32.mrf.mxu0
    %v160 = vadd.f32 0.0, %v159
    %161 = vdwg.mxu0
    %s162 = scalar_lea.vmem [#allocation4], 4
    %v163 = vld [vmem:[%s162] sm:$0xf]
    %164 = vxpose.xlu0.b32.start [1/16] %v163, 128
    %165 = vxpose.xlu0.b32.cont [2/16] 0.0, 128
    %166 = vxpose.xlu0.b32.cont [3/16] 0.0, 128
    %167 = vxpose.xlu0.b32.cont [4/16] 0.0, 128
    %168 = vxpose.xlu0.b32.cont [5/16] 0.0, 128
    %169 = vxpose.xlu0.b32.cont [6/16] 0.0, 128
    %170 = vxpose.xlu0.b32.cont [7/16] 0.0, 128
    %171 = vxpose.xlu0.b32.cont [8/16] 0.0, 128
    %172 = vxpose.xlu0.b32.cont [9/16] 0.0, 128
    %173 = vxpose.xlu0.b32.cont [10/16] 0.0, 128
    %174 = vxpose.xlu0.b32.cont [11/16] 0.0, 128
    %175 = vxpose.xlu0.b32.cont [12/16] 0.0, 128
    %176 = vxpose.xlu0.b32.cont [13/16] 0.0, 128
    %177 = vxpose.xlu0.b32.cont [14/16] 0.0, 128
    %178 = vxpose.xlu0.b32.cont [15/16] 0.0, 128
    %179 = vxpose.xlu0.b32.end [16/16] 0.0, 128
    %v180 = vpop.trf.xlu0
    %v181 = vpop.trf.xlu0
    %v182 = vpop.trf.xlu0
    %v183 = vpop.trf.xlu0
    %v184 = vpop.trf.xlu0
    %v185 = vpop.trf.xlu0
    %v186 = vpop.trf.xlu0
    %v187 = vpop.trf.xlu0
    %v188 = vpop.trf.xlu0
    %v189 = vpop.trf.xlu0
    %v190 = vpop.trf.xlu0
    %v191 = vpop.trf.xlu0
    %v192 = vpop.trf.xlu0
    %v193 = vpop.trf.xlu0
    %v194 = vpop.trf.xlu0
    %v195 = vpop.trf.xlu0
    %v197 = vsel %vm128, %v180, 0
    %v200 = vsel %vm128, %v181, 0
    %202 = vmatpush.msra.mxu0 0.0
    %203 = vmatpush.msra.mxu0 0.0
    %204 = vmatpush.msra.mxu0 0.0
    %205 = vmatpush.msra.mxu0 0.0
    %206 = vmatpush.msra.mxu0 0.0
    %207 = vmatpush.msra.mxu0 0.0
    %208 = vmatpush.msra.mxu0 0.0
    %209 = vmatpush.msra.mxu0 0.0
    %210 = vmatpush.msra.mxu0 0.0
    %211 = vmatpush.msra.mxu0 0.0
    %212 = vmatpush.msra.mxu0 0.0
    %213 = vmatpush.msra.mxu0 0.0
    %214 = vmatpush.msra.mxu0 0.0
    %215 = vmatpush.msra.mxu0 0.0
    %216 = vmatpush.msra.mxu0 0.0
    %217 = vmatpush.msra.mxu0 %v137
    %218 = vmatmul.f32.gmra.mxu0 %v197
    %v219 = vpop.f32.mrf.mxu0
    %v220 = vadd.f32 0.0, %v219
    %221 = vmatmul.f32.gmra.mxu0 %v200
    %v222 = vpop.f32.mrf.mxu0
    %v223 = vadd.f32 0.0, %v222
    %224 = vdwg.mxu0
    %v226 = vrot.slane %v220, 7
    %vm228 = vcmask 1040384
    %v229 = vsel %vm228, %v157, %v226
    %v230 = vperm.slane %v85, 0
    %v231 = vadd.f32 %v229, %v230
    %v233 = vrot.slane %v157, 1
    %v235 = vsel %vm228, %v233, %v220
    %v236 = vadd.f32 %v235, %v230
    %v237 = vrot.slane %v157, 2
    %v239 = vrot.slane %v220, 1
    %v241 = vsel %vm228, %v237, %v239
    %v242 = vadd.f32 %v241, %v230
    %v243 = vrot.slane %v157, 3
    %v245 = vrot.slane %v220, 2
    %v247 = vsel %vm228, %v243, %v245
    %v248 = vadd.f32 %v247, %v230
    %v249 = vrot.slane %v157, 4
    %v251 = vrot.slane %v220, 3
    %v253 = vsel %vm228, %v249, %v251
    %v254 = vadd.f32 %v253, %v230
    %v255 = vrot.slane %v157, 5
    %v257 = vrot.slane %v220, 4
    %v259 = vsel %vm228, %v255, %v257
    %v260 = vadd.f32 %v259, %v230
    %v261 = vrot.slane %v157, 6
    %v263 = vrot.slane %v220, 5
    %v265 = vsel %vm228, %v261, %v263
    %v266 = vadd.f32 %v265, %v230
    %v267 = vrot.slane %v157, 7
    %v269 = vrot.slane %v220, 6
    %v271 = vsel %vm228, %v267, %v269
    %v272 = vadd.f32 %v271, %v230
    %v274 = vrot.slane %v223, 7
    %v276 = vsel %vm228, %v160, %v274
    %v277 = vadd.f32 %v276, %v230
    %v279 = vrot.slane %v160, 1
    %v281 = vsel %vm228, %v279, %v223
    %v282 = vadd.f32 %v281, %v230
    %v283 = vrot.slane %v160, 2
    %v285 = vrot.slane %v223, 1
    %v287 = vsel %vm228, %v283, %v285
    %v288 = vadd.f32 %v287, %v230
    %v289 = vrot.slane %v160, 3
    %v291 = vrot.slane %v223, 2
    %v293 = vsel %vm228, %v289, %v291
    %v294 = vadd.f32 %v293, %v230
    %v295 = vrot.slane %v160, 4
    %v297 = vrot.slane %v223, 3
    %v299 = vsel %vm228, %v295, %v297
    %v300 = vadd.f32 %v299, %v230
    %v301 = vrot.slane %v160, 5
    %v303 = vrot.slane %v223, 4
    %v305 = vsel %vm228, %v301, %v303
    %v306 = vadd.f32 %v305, %v230
    %v307 = vrot.slane %v160, 6
    %v309 = vrot.slane %v223, 5
    %v311 = vsel %vm228, %v307, %v309
    %v312 = vadd.f32 %v311, %v230
    %v313 = vrot.slane %v160, 7
    %v315 = vrot.slane %v223, 6
    %v317 = vsel %vm228, %v313, %v315
    %v318 = vadd.f32 %v317, %v230
    %v319 = vsel %vm79, 1, 0
    %vm320 = vcmp.eq.s32.totalorder %v319, 1
    %v321 = vsel %vm320, %v231, %v318
    %322 = vst [vmem:[#allocation2] sm:$0x3] %v321
    %v323 = vsel %vm320, %v236, %v312
    %324 = vst [vmem:[#allocation2 + $0x2] sm:$0x3] %v323
    %v325 = vsel %vm320, %v242, %v306
    %326 = vst [vmem:[#allocation2 + $0x4] sm:$0x3] %v325
    %v327 = vsel %vm320, %v248, %v300
    %328 = vst [vmem:[#allocation2 + $0x6] sm:$0x3] %v327
    %v329 = vsel %vm320, %v254, %v294
    %330 = vst [vmem:[#allocation2 + $0x8] sm:$0x3] %v329
    %v331 = vsel %vm320, %v260, %v288
    %332 = vst [vmem:[#allocation2 + $0xa] sm:$0x3] %v331
    %v333 = vsel %vm320, %v266, %v282
    %334 = vst [vmem:[#allocation2 + $0xc] sm:$0x3] %v333
    %v335 = vsel %vm320, %v272, %v277
    %336 = vst [vmem:[#allocation2 + $0xe] sm:$0x3] %v335
    %v337 = vsel %vm320, %v277, %v272
    %338 = vst [vmem:[#allocation2 + $0x10] sm:$0x3] %v337
    %v339 = vsel %vm320, %v282, %v266
    %340 = vst [vmem:[#allocation2 + $0x12] sm:$0x3] %v339
    %v341 = vsel %vm320, %v288, %v260
    %342 = vst [vmem:[#allocation2 + $0x14] sm:$0x3] %v341
    %v343 = vsel %vm320, %v294, %v254
    %344 = vst [vmem:[#allocation2 + $0x16] sm:$0x3] %v343
    %v345 = vsel %vm320, %v300, %v248
    %346 = vst [vmem:[#allocation2 + $0x18] sm:$0x3] %v345
    %v347 = vsel %vm320, %v306, %v242
    %348 = vst [vmem:[#allocation2 + $0x1a] sm:$0x3] %v347
    %v349 = vsel %vm320, %v312, %v236
    %350 = vst [vmem:[#allocation2 + $0x1c] sm:$0x3] %v349
    %v351 = vsel %vm320, %v318, %v231
    %352 = vst [vmem:[#allocation2 + $0x1e] sm:$0x3] %v351
    %v353 = vld [vmem:[#allocation2] sm:$0x3]
    %v358 = vunpack.c.l.b16 %v87
    %v359 = vunpack.c.l.b16 %v88
    %v360 = vunpack.c.l.b16 %v89
    %v361 = vunpack.c.l.b16 %v90
    %v362 = vpack.c.b16 %v359, %v358
    %v363 = vpack.c.b16 %v361, %v360
    %vm366 = vcmask 261120
    %v368 = vsel %vm366, 0, 0
    %370 = vmatpush.bf16.msra.mxu0 0
    %371 = vmatpush.bf16.msra.mxu0 0
    %372 = vmatpush.bf16.msra.mxu0 0
    %373 = vmatpush.bf16.msra.mxu0 0
    %374 = vmatpush.bf16.msra.mxu0 0
    %375 = vmatpush.bf16.msra.mxu0 0
    %376 = vmatpush.bf16.msra.mxu0 %v363
    %377 = vmatpush.bf16.msra.mxu0 %v362
    %378 = vmatmul.bf16.gmra.mxu0 %v368
    %v379 = vpop.f32.mrf.mxu0
    %v380 = vadd.f32 0.0, %v379
    %v381 = vpop.f32.mrf.mxu0
    %382 = vdwg.mxu0
    %v383 = vadd.f32 %v353, %v380
    %v384 = vxor.u32 %v383, 2147483648
    %v385 = vmul.f32 %v384, 1.442695
    %v386 = vpow.pop %v385
    %v387 = vadd.f32 %v386, 1.0
    %v388 = vrcp.pop %v387
    %v389 = vmul.f32 %v387, %v388
    %v390 = vsub.f32 1.0, %v389
    %v391 = vmul.f32 %v388, %v390
    %v392 = vadd.f32 %v388, %v391
    %vm393 = vweird.f32 %v387
    %vm394 = vweird.f32 %v388
    %vm395 = vmor %vm393, %vm394
    %v396 = vsel %vm395, %v388, %v392
    %v397 = vand.u32 2147483647, %v387
    %vm398 = vcmp.eq.f32.partialorder %v397, 8.507059e+37
    %v399 = vand.u32 %v387, 2147483648
    %v400 = vor.u32 1.1754944e-38, %v399
    %v401 = vsel %vm398, %v400, %v396
    %v402 = vmul.f32 1.0, %v401
    %v403 = vtanh.pop %v383
    %v404 = vmul.f32 %v402, 0.0
    %406 = vrot.lane.b32.xlu0 %v403, 64
    %v407 = vpop.permute.xlu0 %406
    %v409 = vmul.f32 %v402, %v407
    %411 = vrot.lane.b32.xlu0 %v409, 32
    %v412 = vpop.permute.xlu0 %411
    %v414 = vadd.f32 %v404, %v412
    %v415 = vtanh.pop %v414
    %417 = vrot.lane.b32.xlu0 %v415, 64
    %v418 = vpop.permute.xlu0 %417
    %v420 = vmul.f32 %v402, %v418
    %422 = vrot.lane.b32.xlu0 %v420, 32
    %v423 = vpop.permute.xlu0 %422
    %vm425 = vcmask 123904
    %426 = vst.msk [vmem:[#allocation3] sm:$0x3] %vm425, %v423
    %vm427 = vcmask 255104
    %428 = vst.msk [vmem:[#allocation3 + $0x1e] sm:$0x3] %vm427, %v423
    %v429 = vld [vmem:[#allocation2 + $0x2] sm:$0x3]
    %v430 = vpack.c.bf16 %v420, %v420
    %432 = vrot.lane.b32.xlu0 %v430, 32
    %v433 = vpop.permute.xlu0 %432
    %v435 = vsel %vm366, %v433, 0
    %437 = vmatpush.bf16.msra.mxu0 0
    %438 = vmatpush.bf16.msra.mxu0 0
    %439 = vmatpush.bf16.msra.mxu0 0
    %440 = vmatpush.bf16.msra.mxu0 0
    %441 = vmatpush.bf16.msra.mxu0 0
    %442 = vmatpush.bf16.msra.mxu0 0
    %443 = vmatpush.bf16.msra.mxu0 %v363
    %444 = vmatpush.bf16.msra.mxu0 %v362
    %445 = vmatmul.bf16.gmra.mxu0 %v435
    %v446 = vpop.f32.mrf.mxu0
    %v447 = vadd.f32 0.0, %v446
    %v448 = vpop.f32.mrf.mxu0
    %449 = vdwg.mxu0
    %v450 = vadd.f32 %v429, %v447
    %v451 = vxor.u32 %v450, 2147483648
    %v452 = vmul.f32 %v451, 1.442695
    %v453 = vpow.pop %v452
    %v454 = vadd.f32 %v453, 1.0
    %v455 = vrcp.pop %v454
    %v456 = vmul.f32 %v454, %v455
    %v457 = vsub.f32 1.0, %v456
    %v458 = vmul.f32 %v455, %v457
    %v459 = vadd.f32 %v455, %v458
    %vm460 = vweird.f32 %v454
    %vm461 = vweird.f32 %v455
    %vm462 = vmor %vm460, %vm461
    %v463 = vsel %vm462, %v455, %v459
    %v464 = vand.u32 2147483647, %v454
    %vm465 = vcmp.eq.f32.partialorder %v464, 8.507059e+37
    %v466 = vand.u32 %v454, 2147483648
    %v467 = vor.u32 1.1754944e-38, %v466
    %v468 = vsel %vm465, %v467, %v463
    %v469 = vmul.f32 1.0, %v468
    %v470 = vtanh.pop %v450
    %v471 = vmul.f32 %v469, %v414
    %473 = vrot.lane.b32.xlu0 %v470, 64
    %v474 = vpop.permute.xlu0 %473
    %v476 = vmul.f32 %v469, %v474
    %478 = vrot.lane.b32.xlu0 %v476, 32
    %v479 = vpop.permute.xlu0 %478
    %v481 = vadd.f32 %v471, %v479
    %v482 = vtanh.pop %v481
    %484 = vrot.lane.b32.xlu0 %v482, 64
    %v485 = vpop.permute.xlu0 %484
    %v487 = vmul.f32 %v469, %v485
    %489 = vrot.lane.b32.xlu0 %v487, 32
    %v490 = vpop.permute.xlu0 %489
    %492 = vst.msk [vmem:[#allocation3 + $0x2] sm:$0x3] %vm425, %v490
    %493 = vst.msk [vmem:[#allocation3 + $0x1c] sm:$0x3] %vm427, %v490
    %v494 = vld [vmem:[#allocation2 + $0x4] sm:$0x3]
    %v495 = vpack.c.bf16 %v487, %v487
    %497 = vrot.lane.b32.xlu0 %v495, 32
    %v498 = vpop.permute.xlu0 %497
    %v500 = vsel %vm366, %v498, 0
    %502 = vmatpush.bf16.msra.mxu0 0
    %503 = vmatpush.bf16.msra.mxu0 0
    %504 = vmatpush.bf16.msra.mxu0 0
    %505 = vmatpush.bf16.msra.mxu0 0
    %506 = vmatpush.bf16.msra.mxu0 0
    %507 = vmatpush.bf16.msra.mxu0 0
    %508 = vmatpush.bf16.msra.mxu0 %v363
    %509 = vmatpush.bf16.msra.mxu0 %v362
    %510 = vmatmul.bf16.gmra.mxu0 %v500
    %v511 = vpop.f32.mrf.mxu0
    %v512 = vadd.f32 0.0, %v511
    %v513 = vpop.f32.mrf.mxu0
    %514 = vdwg.mxu0
    %v515 = vadd.f32 %v494, %v512
    %v516 = vxor.u32 %v515, 2147483648
    %v517 = vmul.f32 %v516, 1.442695
    %v518 = vpow.pop %v517
    %v519 = vadd.f32 %v518, 1.0
    %v520 = vrcp.pop %v519
    %v521 = vmul.f32 %v519, %v520
    %v522 = vsub.f32 1.0, %v521
    %v523 = vmul.f32 %v520, %v522
    %v524 = vadd.f32 %v520, %v523
    %vm525 = vweird.f32 %v519
    %vm526 = vweird.f32 %v520
    %vm527 = vmor %vm525, %vm526
    %v528 = vsel %vm527, %v520, %v524
    %v529 = vand.u32 2147483647, %v519
    %vm530 = vcmp.eq.f32.partialorder %v529, 8.507059e+37
    %v531 = vand.u32 %v519, 2147483648
    %v532 = vor.u32 1.1754944e-38, %v531
    %v533 = vsel %vm530, %v532, %v528
    %v534 = vmul.f32 1.0, %v533
    %v535 = vtanh.pop %v515
    %v536 = vmul.f32 %v534, %v481
    %538 = vrot.lane.b32.xlu0 %v535, 64
    %v539 = vpop.permute.xlu0 %538
    %v541 = vmul.f32 %v534, %v539
    %543 = vrot.lane.b32.xlu0 %v541, 32
    %v544 = vpop.permute.xlu0 %543
    %v546 = vadd.f32 %v536, %v544
    %v547 = vtanh.pop %v546
    %549 = vrot.lane.b32.xlu0 %v547, 64
    %v550 = vpop.permute.xlu0 %549
    %v552 = vmul.f32 %v534, %v550
    %554 = vrot.lane.b32.xlu0 %v552, 32
    %v555 = vpop.permute.xlu0 %554
    %557 = vst.msk [vmem:[#allocation3 + $0x4] sm:$0x3] %vm425, %v555
    %558 = vst.msk [vmem:[#allocation3 + $0x1a] sm:$0x3] %vm427, %v555
    %v559 = vld [vmem:[#allocation2 + $0x6] sm:$0x3]
    %v560 = vpack.c.bf16 %v552, %v552
    %562 = vrot.lane.b32.xlu0 %v560, 32
    %v563 = vpop.permute.xlu0 %562
    %v565 = vsel %vm366, %v563, 0
    %567 = vmatpush.bf16.msra.mxu0 0
    %568 = vmatpush.bf16.msra.mxu0 0
    %569 = vmatpush.bf16.msra.mxu0 0
    %570 = vmatpush.bf16.msra.mxu0 0
    %571 = vmatpush.bf16.msra.mxu0 0
    %572 = vmatpush.bf16.msra.mxu0 0
    %573 = vmatpush.bf16.msra.mxu0 %v363
    %574 = vmatpush.bf16.msra.mxu0 %v362
    %575 = vmatmul.bf16.gmra.mxu0 %v565
    %v576 = vpop.f32.mrf.mxu0
    %v577 = vadd.f32 0.0, %v576
    %v578 = vpop.f32.mrf.mxu0
    %579 = vdwg.mxu0
    %v580 = vadd.f32 %v559, %v577
    %v581 = vxor.u32 %v580, 2147483648
    %v582 = vmul.f32 %v581, 1.442695
    %v583 = vpow.pop %v582
    %v584 = vadd.f32 %v583, 1.0
    %v585 = vrcp.pop %v584
    %v586 = vmul.f32 %v584, %v585
    %v587 = vsub.f32 1.0, %v586
    %v588 = vmul.f32 %v585, %v587
    %v589 = vadd.f32 %v585, %v588
    %vm590 = vweird.f32 %v584
    %vm591 = vweird.f32 %v585
    %vm592 = vmor %vm590, %vm591
    %v593 = vsel %vm592, %v585, %v589
    %v594 = vand.u32 2147483647, %v584
    %vm595 = vcmp.eq.f32.partialorder %v594, 8.507059e+37
    %v596 = vand.u32 %v584, 2147483648
    %v597 = vor.u32 1.1754944e-38, %v596
    %v598 = vsel %vm595, %v597, %v593
    %v599 = vmul.f32 1.0, %v598
    %v600 = vtanh.pop %v580
    %v601 = vmul.f32 %v599, %v546
    %603 = vrot.lane.b32.xlu0 %v600, 64
    %v604 = vpop.permute.xlu0 %603
    %v606 = vmul.f32 %v599, %v604
    %608 = vrot.lane.b32.xlu0 %v606, 32
    %v609 = vpop.permute.xlu0 %608
    %v611 = vadd.f32 %v601, %v609
    %v612 = vtanh.pop %v611
    %614 = vrot.lane.b32.xlu0 %v612, 64
    %v615 = vpop.permute.xlu0 %614
    %v617 = vmul.f32 %v599, %v615
    %619 = vrot.lane.b32.xlu0 %v617, 32
    %v620 = vpop.permute.xlu0 %619
    %622 = vst.msk [vmem:[#allocation3 + $0x6] sm:$0x3] %vm425, %v620
    %623 = vst.msk [vmem:[#allocation3 + $0x18] sm:$0x3] %vm427, %v620
    %v624 = vld [vmem:[#allocation2 + $0x8] sm:$0x3]
    %v625 = vpack.c.bf16 %v617, %v617
    %627 = vrot.lane.b32.xlu0 %v625, 32
    %v628 = vpop.permute.xlu0 %627
    %v630 = vsel %vm366, %v628, 0
    %632 = vmatpush.bf16.msra.mxu0 0
    %633 = vmatpush.bf16.msra.mxu0 0
    %634 = vmatpush.bf16.msra.mxu0 0
    %635 = vmatpush.bf16.msra.mxu0 0
    %636 = vmatpush.bf16.msra.mxu0 0
    %637 = vmatpush.bf16.msra.mxu0 0
    %638 = vmatpush.bf16.msra.mxu0 %v363
    %639 = vmatpush.bf16.msra.mxu0 %v362
    %640 = vmatmul.bf16.gmra.mxu0 %v630
    %v641 = vpop.f32.mrf.mxu0
    %v642 = vadd.f32 0.0, %v641
    %v643 = vpop.f32.mrf.mxu0
    %644 = vdwg.mxu0
    %v645 = vadd.f32 %v624, %v642
    %v646 = vxor.u32 %v645, 2147483648
    %v647 = vmul.f32 %v646, 1.442695
    %v648 = vpow.pop %v647
    %v649 = vadd.f32 %v648, 1.0
    %v650 = vrcp.pop %v649
    %v651 = vmul.f32 %v649, %v650
    %v652 = vsub.f32 1.0, %v651
    %v653 = vmul.f32 %v650, %v652
    %v654 = vadd.f32 %v650, %v653
    %vm655 = vweird.f32 %v649
    %vm656 = vweird.f32 %v650
    %vm657 = vmor %vm655, %vm656
    %v658 = vsel %vm657, %v650, %v654
    %v659 = vand.u32 2147483647, %v649
    %vm660 = vcmp.eq.f32.partialorder %v659, 8.507059e+37
    %v661 = vand.u32 %v649, 2147483648
    %v662 = vor.u32 1.1754944e-38, %v661
    %v663 = vsel %vm660, %v662, %v658
    %v664 = vmul.f32 1.0, %v663
    %v665 = vtanh.pop %v645
    %v666 = vmul.f32 %v664, %v611
    %668 = vrot.lane.b32.xlu0 %v665, 64
    %v669 = vpop.permute.xlu0 %668
    %v671 = vmul.f32 %v664, %v669
    %673 = vrot.lane.b32.xlu0 %v671, 32
    %v674 = vpop.permute.xlu0 %673
    %v676 = vadd.f32 %v666, %v674
    %v677 = vtanh.pop %v676
    %679 = vrot.lane.b32.xlu0 %v677, 64
    %v680 = vpop.permute.xlu0 %679
    %v682 = vmul.f32 %v664, %v680
    %684 = vrot.lane.b32.xlu0 %v682, 32
    %v685 = vpop.permute.xlu0 %684
    %687 = vst.msk [vmem:[#allocation3 + $0x8] sm:$0x3] %vm425, %v685
    %688 = vst.msk [vmem:[#allocation3 + $0x16] sm:$0x3] %vm427, %v685
    %v689 = vld [vmem:[#allocation2 + $0xa] sm:$0x3]
    %v690 = vpack.c.bf16 %v682, %v682
    %692 = vrot.lane.b32.xlu0 %v690, 32
    %v693 = vpop.permute.xlu0 %692
    %v695 = vsel %vm366, %v693, 0
    %697 = vmatpush.bf16.msra.mxu0 0
    %698 = vmatpush.bf16.msra.mxu0 0
    %699 = vmatpush.bf16.msra.mxu0 0
    %700 = vmatpush.bf16.msra.mxu0 0
    %701 = vmatpush.bf16.msra.mxu0 0
    %702 = vmatpush.bf16.msra.mxu0 0
    %703 = vmatpush.bf16.msra.mxu0 %v363
    %704 = vmatpush.bf16.msra.mxu0 %v362
    %705 = vmatmul.bf16.gmra.mxu0 %v695
    %v706 = vpop.f32.mrf.mxu0
    %v707 = vadd.f32 0.0, %v706
    %v708 = vpop.f32.mrf.mxu0
    %709 = vdwg.mxu0
    %v710 = vadd.f32 %v689, %v707
    %v711 = vxor.u32 %v710, 2147483648
    %v712 = vmul.f32 %v711, 1.442695
    %v713 = vpow.pop %v712
    %v714 = vadd.f32 %v713, 1.0
    %v715 = vrcp.pop %v714
    %v716 = vmul.f32 %v714, %v715
    %v717 = vsub.f32 1.0, %v716
    %v718 = vmul.f32 %v715, %v717
    %v719 = vadd.f32 %v715, %v718
    %vm720 = vweird.f32 %v714
    %vm721 = vweird.f32 %v715
    %vm722 = vmor %vm720, %vm721
    %v723 = vsel %vm722, %v715, %v719
    %v724 = vand.u32 2147483647, %v714
    %vm725 = vcmp.eq.f32.partialorder %v724, 8.507059e+37
    %v726 = vand.u32 %v714, 2147483648
    %v727 = vor.u32 1.1754944e-38, %v726
    %v728 = vsel %vm725, %v727, %v723
    %v729 = vmul.f32 1.0, %v728
    %v730 = vtanh.pop %v710
    %v731 = vmul.f32 %v729, %v676
    %733 = vrot.lane.b32.xlu0 %v730, 64
    %v734 = vpop.permute.xlu0 %733
    %v736 = vmul.f32 %v729, %v734
    %738 = vrot.lane.b32.xlu0 %v736, 32
    %v739 = vpop.permute.xlu0 %738
    %v741 = vadd.f32 %v731, %v739
    %v742 = vtanh.pop %v741
    %744 = vrot.lane.b32.xlu0 %v742, 64
    %v745 = vpop.permute.xlu0 %744
    %v747 = vmul.f32 %v729, %v745
    %749 = vrot.lane.b32.xlu0 %v747, 32
    %v750 = vpop.permute.xlu0 %749
    %752 = vst.msk [vmem:[#allocation3 + $0xa] sm:$0x3] %vm425, %v750
    %753 = vst.msk [vmem:[#allocation3 + $0x14] sm:$0x3] %vm427, %v750
    %v754 = vld [vmem:[#allocation2 + $0xc] sm:$0x3]
    %v755 = vpack.c.bf16 %v747, %v747
    %757 = vrot.lane.b32.xlu0 %v755, 32
    %v758 = vpop.permute.xlu0 %757
    %v760 = vsel %vm366, %v758, 0
    %762 = vmatpush.bf16.msra.mxu0 0
    %763 = vmatpush.bf16.msra.mxu0 0
    %764 = vmatpush.bf16.msra.mxu0 0
    %765 = vmatpush.bf16.msra.mxu0 0
    %766 = vmatpush.bf16.msra.mxu0 0
    %767 = vmatpush.bf16.msra.mxu0 0
    %768 = vmatpush.bf16.msra.mxu0 %v363
    %769 = vmatpush.bf16.msra.mxu0 %v362
    %770 = vmatmul.bf16.gmra.mxu0 %v760
    %v771 = vpop.f32.mrf.mxu0
    %v772 = vadd.f32 0.0, %v771
    %v773 = vpop.f32.mrf.mxu0
    %774 = vdwg.mxu0
    %v775 = vadd.f32 %v754, %v772
    %v776 = vxor.u32 %v775, 2147483648
    %v777 = vmul.f32 %v776, 1.442695
    %v778 = vpow.pop %v777
    %v779 = vadd.f32 %v778, 1.0
    %v780 = vrcp.pop %v779
    %v781 = vmul.f32 %v779, %v780
    %v782 = vsub.f32 1.0, %v781
    %v783 = vmul.f32 %v780, %v782
    %v784 = vadd.f32 %v780, %v783
    %vm785 = vweird.f32 %v779
    %vm786 = vweird.f32 %v780
    %vm787 = vmor %vm785, %vm786
    %v788 = vsel %vm787, %v780, %v784
    %v789 = vand.u32 2147483647, %v779
    %vm790 = vcmp.eq.f32.partialorder %v789, 8.507059e+37
    %v791 = vand.u32 %v779, 2147483648
    %v792 = vor.u32 1.1754944e-38, %v791
    %v793 = vsel %vm790, %v792, %v788
    %v794 = vmul.f32 1.0, %v793
    %v795 = vtanh.pop %v775
    %v796 = vmul.f32 %v794, %v741
    %798 = vrot.lane.b32.xlu0 %v795, 64
    %v799 = vpop.permute.xlu0 %798
    %v801 = vmul.f32 %v794, %v799
    %803 = vrot.lane.b32.xlu0 %v801, 32
    %v804 = vpop.permute.xlu0 %803
    %v806 = vadd.f32 %v796, %v804
    %v807 = vtanh.pop %v806
    %809 = vrot.lane.b32.xlu0 %v807, 64
    %v810 = vpop.permute.xlu0 %809
    %v812 = vmul.f32 %v794, %v810
    %814 = vrot.lane.b32.xlu0 %v812, 32
    %v815 = vpop.permute.xlu0 %814
    %817 = vst.msk [vmem:[#allocation3 + $0xc] sm:$0x3] %vm425, %v815
    %818 = vst.msk [vmem:[#allocation3 + $0x12] sm:$0x3] %vm427, %v815
    %v819 = vld [vmem:[#allocation2 + $0xe] sm:$0x3]
    %v820 = vpack.c.bf16 %v812, %v812
    %822 = vrot.lane.b32.xlu0 %v820, 32
    %v823 = vpop.permute.xlu0 %822
    %v825 = vsel %vm366, %v823, 0
    %827 = vmatpush.bf16.msra.mxu0 0
    %828 = vmatpush.bf16.msra.mxu0 0
    %829 = vmatpush.bf16.msra.mxu0 0
    %830 = vmatpush.bf16.msra.mxu0 0
    %831 = vmatpush.bf16.msra.mxu0 0
    %832 = vmatpush.bf16.msra.mxu0 0
    %833 = vmatpush.bf16.msra.mxu0 %v363
    %834 = vmatpush.bf16.msra.mxu0 %v362
    %835 = vmatmul.bf16.gmra.mxu0 %v825
    %v836 = vpop.f32.mrf.mxu0
    %v837 = vadd.f32 0.0, %v836
    %v838 = vpop.f32.mrf.mxu0
    %839 = vdwg.mxu0
    %v840 = vadd.f32 %v819, %v837
    %v841 = vxor.u32 %v840, 2147483648
    %v842 = vmul.f32 %v841, 1.442695
    %v843 = vpow.pop %v842
    %v844 = vadd.f32 %v843, 1.0
    %v845 = vrcp.pop %v844
    %v846 = vmul.f32 %v844, %v845
    %v847 = vsub.f32 1.0, %v846
    %v848 = vmul.f32 %v845, %v847
    %v849 = vadd.f32 %v845, %v848
    %vm850 = vweird.f32 %v844
    %vm851 = vweird.f32 %v845
    %vm852 = vmor %vm850, %vm851
    %v853 = vsel %vm852, %v845, %v849
    %v854 = vand.u32 2147483647, %v844
    %vm855 = vcmp.eq.f32.partialorder %v854, 8.507059e+37
    %v856 = vand.u32 %v844, 2147483648
    %v857 = vor.u32 1.1754944e-38, %v856
    %v858 = vsel %vm855, %v857, %v853
    %v859 = vmul.f32 1.0, %v858
    %v860 = vtanh.pop %v840
    %v861 = vmul.f32 %v859, %v806
    %863 = vrot.lane.b32.xlu0 %v860, 64
    %v864 = vpop.permute.xlu0 %863
    %v866 = vmul.f32 %v859, %v864
    %868 = vrot.lane.b32.xlu0 %v866, 32
    %v869 = vpop.permute.xlu0 %868
    %v871 = vadd.f32 %v861, %v869
    %v872 = vtanh.pop %v871
    %874 = vrot.lane.b32.xlu0 %v872, 64
    %v875 = vpop.permute.xlu0 %874
    %v877 = vmul.f32 %v859, %v875
    %879 = vrot.lane.b32.xlu0 %v877, 32
    %v880 = vpop.permute.xlu0 %879
    %882 = vst.msk [vmem:[#allocation3 + $0xe] sm:$0x3] %vm425, %v880
    %883 = vst.msk [vmem:[#allocation3 + $0x10] sm:$0x3] %vm427, %v880
    %v884 = vld [vmem:[#allocation2 + $0x10] sm:$0x3]
    %v885 = vpack.c.bf16 %v877, %v877
    %887 = vrot.lane.b32.xlu0 %v885, 32
    %v888 = vpop.permute.xlu0 %887
    %v890 = vsel %vm366, %v888, 0
    %892 = vmatpush.bf16.msra.mxu0 0
    %893 = vmatpush.bf16.msra.mxu0 0
    %894 = vmatpush.bf16.msra.mxu0 0
    %895 = vmatpush.bf16.msra.mxu0 0
    %896 = vmatpush.bf16.msra.mxu0 0
    %897 = vmatpush.bf16.msra.mxu0 0
    %898 = vmatpush.bf16.msra.mxu0 %v363
    %899 = vmatpush.bf16.msra.mxu0 %v362
    %900 = vmatmul.bf16.gmra.mxu0 %v890
    %v901 = vpop.f32.mrf.mxu0
    %v902 = vadd.f32 0.0, %v901
    %v903 = vpop.f32.mrf.mxu0
    %904 = vdwg.mxu0
    %v905 = vadd.f32 %v884, %v902
    %v906 = vxor.u32 %v905, 2147483648
    %v907 = vmul.f32 %v906, 1.442695
    %v908 = vpow.pop %v907
    %v909 = vadd.f32 %v908, 1.0
    %v910 = vrcp.pop %v909
    %v911 = vmul.f32 %v909, %v910
    %v912 = vsub.f32 1.0, %v911
    %v913 = vmul.f32 %v910, %v912
    %v914 = vadd.f32 %v910, %v913
    %vm915 = vweird.f32 %v909
    %vm916 = vweird.f32 %v910
    %vm917 = vmor %vm915, %vm916
    %v918 = vsel %vm917, %v910, %v914
    %v919 = vand.u32 2147483647, %v909
    %vm920 = vcmp.eq.f32.partialorder %v919, 8.507059e+37
    %v921 = vand.u32 %v909, 2147483648
    %v922 = vor.u32 1.1754944e-38, %v921
    %v923 = vsel %vm920, %v922, %v918
    %v924 = vmul.f32 1.0, %v923
    %v925 = vtanh.pop %v905
    %v926 = vmul.f32 %v924, %v871
    %928 = vrot.lane.b32.xlu0 %v925, 64
    %v929 = vpop.permute.xlu0 %928
    %v931 = vmul.f32 %v924, %v929
    %933 = vrot.lane.b32.xlu0 %v931, 32
    %v934 = vpop.permute.xlu0 %933
    %v936 = vadd.f32 %v926, %v934
    %v937 = vtanh.pop %v936
    %939 = vrot.lane.b32.xlu0 %v937, 64
    %v940 = vpop.permute.xlu0 %939
    %v942 = vmul.f32 %v924, %v940
    %944 = vrot.lane.b32.xlu0 %v942, 32
    %v945 = vpop.permute.xlu0 %944
    %947 = vst.msk [vmem:[#allocation3 + $0x10] sm:$0x3] %vm425, %v945
    %948 = vst.msk [vmem:[#allocation3 + $0xe] sm:$0x3] %vm427, %v945
    %v949 = vld [vmem:[#allocation2 + $0x12] sm:$0x3]
    %v950 = vpack.c.bf16 %v942, %v942
    %952 = vrot.lane.b32.xlu0 %v950, 32
    %v953 = vpop.permute.xlu0 %952
    %v955 = vsel %vm366, %v953, 0
    %957 = vmatpush.bf16.msra.mxu0 0
    %958 = vmatpush.bf16.msra.mxu0 0
    %959 = vmatpush.bf16.msra.mxu0 0
    %960 = vmatpush.bf16.msra.mxu0 0
    %961 = vmatpush.bf16.msra.mxu0 0
    %962 = vmatpush.bf16.msra.mxu0 0
    %963 = vmatpush.bf16.msra.mxu0 %v363
    %964 = vmatpush.bf16.msra.mxu0 %v362
    %965 = vmatmul.bf16.gmra.mxu0 %v955
    %v966 = vpop.f32.mrf.mxu0
    %v967 = vadd.f32 0.0, %v966
    %v968 = vpop.f32.mrf.mxu0
    %969 = vdwg.mxu0
    %v970 = vadd.f32 %v949, %v967
    %v971 = vxor.u32 %v970, 2147483648
    %v972 = vmul.f32 %v971, 1.442695
    %v973 = vpow.pop %v972
    %v974 = vadd.f32 %v973, 1.0
    %v975 = vrcp.pop %v974
    %v976 = vmul.f32 %v974, %v975
    %v977 = vsub.f32 1.0, %v976
    %v978 = vmul.f32 %v975, %v977
    %v979 = vadd.f32 %v975, %v978
    %vm980 = vweird.f32 %v974
    %vm981 = vweird.f32 %v975
    %vm982 = vmor %vm980, %vm981
    %v983 = vsel %vm982, %v975, %v979
    %v984 = vand.u32 2147483647, %v974
    %vm985 = vcmp.eq.f32.partialorder %v984, 8.507059e+37
    %v986 = vand.u32 %v974, 2147483648
    %v987 = vor.u32 1.1754944e-38, %v986
    %v988 = vsel %vm985, %v987, %v983
    %v989 = vmul.f32 1.0, %v988
    %v990 = vtanh.pop %v970
    %v991 = vmul.f32 %v989, %v936
    %993 = vrot.lane.b32.xlu0 %v990, 64
    %v994 = vpop.permute.xlu0 %993
    %v996 = vmul.f32 %v989, %v994
    %998 = vrot.lane.b32.xlu0 %v996, 32
    %v999 = vpop.permute.xlu0 %998
    %v1001 = vadd.f32 %v991, %v999
    %v1002 = vtanh.pop %v1001
    %1004 = vrot.lane.b32.xlu0 %v1002, 64
    %v1005 = vpop.permute.xlu0 %1004
    %v1007 = vmul.f32 %v989, %v1005
    %1009 = vrot.lane.b32.xlu0 %v1007, 32
    %v1010 = vpop.permute.xlu0 %1009
    %1012 = vst.msk [vmem:[#allocation3 + $0x12] sm:$0x3] %vm425, %v1010
    %1013 = vst.msk [vmem:[#allocation3 + $0xc] sm:$0x3] %vm427, %v1010
    %v1014 = vld [vmem:[#allocation2 + $0x14] sm:$0x3]
    %v1015 = vpack.c.bf16 %v1007, %v1007
    %1017 = vrot.lane.b32.xlu0 %v1015, 32
    %v1018 = vpop.permute.xlu0 %1017
    %v1020 = vsel %vm366, %v1018, 0
    %1022 = vmatpush.bf16.msra.mxu0 0
    %1023 = vmatpush.bf16.msra.mxu0 0
    %1024 = vmatpush.bf16.msra.mxu0 0
    %1025 = vmatpush.bf16.msra.mxu0 0
    %1026 = vmatpush.bf16.msra.mxu0 0
    %1027 = vmatpush.bf16.msra.mxu0 0
    %1028 = vmatpush.bf16.msra.mxu0 %v363
    %1029 = vmatpush.bf16.msra.mxu0 %v362
    %1030 = vmatmul.bf16.gmra.mxu0 %v1020
    %v1031 = vpop.f32.mrf.mxu0
    %v1032 = vadd.f32 0.0, %v1031
    %v1033 = vpop.f32.mrf.mxu0
    %1034 = vdwg.mxu0
    %v1035 = vadd.f32 %v1014, %v1032
    %v1036 = vxor.u32 %v1035, 2147483648
    %v1037 = vmul.f32 %v1036, 1.442695
    %v1038 = vpow.pop %v1037
    %v1039 = vadd.f32 %v1038, 1.0
    %v1040 = vrcp.pop %v1039
    %v1041 = vmul.f32 %v1039, %v1040
    %v1042 = vsub.f32 1.0, %v1041
    %v1043 = vmul.f32 %v1040, %v1042
    %v1044 = vadd.f32 %v1040, %v1043
    %vm1045 = vweird.f32 %v1039
    %vm1046 = vweird.f32 %v1040
    %vm1047 = vmor %vm1045, %vm1046
    %v1048 = vsel %vm1047, %v1040, %v1044
    %v1049 = vand.u32 2147483647, %v1039
    %vm1050 = vcmp.eq.f32.partialorder %v1049, 8.507059e+37
    %v1051 = vand.u32 %v1039, 2147483648
    %v1052 = vor.u32 1.1754944e-38, %v1051
    %v1053 = vsel %vm1050, %v1052, %v1048
    %v1054 = vmul.f32 1.0, %v1053
    %v1055 = vtanh.pop %v1035
    %v1056 = vmul.f32 %v1054, %v1001
    %1058 = vrot.lane.b32.xlu0 %v1055, 64
    %v1059 = vpop.permute.xlu0 %1058
    %v1061 = vmul.f32 %v1054, %v1059
    %1063 = vrot.lane.b32.xlu0 %v1061, 32
    %v1064 = vpop.permute.xlu0 %1063
    %v1066 = vadd.f32 %v1056, %v1064
    %v1067 = vtanh.pop %v1066
    %1069 = vrot.lane.b32.xlu0 %v1067, 64
    %v1070 = vpop.permute.xlu0 %1069
    %v1072 = vmul.f32 %v1054, %v1070
    %1074 = vrot.lane.b32.xlu0 %v1072, 32
    %v1075 = vpop.permute.xlu0 %1074
    %1077 = vst.msk [vmem:[#allocation3 + $0x14] sm:$0x3] %vm425, %v1075
    %1078 = vst.msk [vmem:[#allocation3 + $0xa] sm:$0x3] %vm427, %v1075
    %v1079 = vld [vmem:[#allocation2 + $0x16] sm:$0x3]
    %v1080 = vpack.c.bf16 %v1072, %v1072
    %1082 = vrot.lane.b32.xlu0 %v1080, 32
    %v1083 = vpop.permute.xlu0 %1082
    %v1085 = vsel %vm366, %v1083, 0
    %1087 = vmatpush.bf16.msra.mxu0 0
    %1088 = vmatpush.bf16.msra.mxu0 0
    %1089 = vmatpush.bf16.msra.mxu0 0
    %1090 = vmatpush.bf16.msra.mxu0 0
    %1091 = vmatpush.bf16.msra.mxu0 0
    %1092 = vmatpush.bf16.msra.mxu0 0
    %1093 = vmatpush.bf16.msra.mxu0 %v363
    %1094 = vmatpush.bf16.msra.mxu0 %v362
    %1095 = vmatmul.bf16.gmra.mxu0 %v1085
    %v1096 = vpop.f32.mrf.mxu0
    %v1097 = vadd.f32 0.0, %v1096
    %v1098 = vpop.f32.mrf.mxu0
    %1099 = vdwg.mxu0
    %v1100 = vadd.f32 %v1079, %v1097
    %v1101 = vxor.u32 %v1100, 2147483648
    %v1102 = vmul.f32 %v1101, 1.442695
    %v1103 = vpow.pop %v1102
    %v1104 = vadd.f32 %v1103, 1.0
    %v1105 = vrcp.pop %v1104
    %v1106 = vmul.f32 %v1104, %v1105
    %v1107 = vsub.f32 1.0, %v1106
    %v1108 = vmul.f32 %v1105, %v1107
    %v1109 = vadd.f32 %v1105, %v1108
    %vm1110 = vweird.f32 %v1104
    %vm1111 = vweird.f32 %v1105
    %vm1112 = vmor %vm1110, %vm1111
    %v1113 = vsel %vm1112, %v1105, %v1109
    %v1114 = vand.u32 2147483647, %v1104
    %vm1115 = vcmp.eq.f32.partialorder %v1114, 8.507059e+37
    %v1116 = vand.u32 %v1104, 2147483648
    %v1117 = vor.u32 1.1754944e-38, %v1116
    %v1118 = vsel %vm1115, %v1117, %v1113
    %v1119 = vmul.f32 1.0, %v1118
    %v1120 = vtanh.pop %v1100
    %v1121 = vmul.f32 %v1119, %v1066
    %1123 = vrot.lane.b32.xlu0 %v1120, 64
    %v1124 = vpop.permute.xlu0 %1123
    %v1126 = vmul.f32 %v1119, %v1124
    %1128 = vrot.lane.b32.xlu0 %v1126, 32
    %v1129 = vpop.permute.xlu0 %1128
    %v1131 = vadd.f32 %v1121, %v1129
    %v1132 = vtanh.pop %v1131
    %1134 = vrot.lane.b32.xlu0 %v1132, 64
    %v1135 = vpop.permute.xlu0 %1134
    %v1137 = vmul.f32 %v1119, %v1135
    %1139 = vrot.lane.b32.xlu0 %v1137, 32
    %v1140 = vpop.permute.xlu0 %1139
    %1142 = vst.msk [vmem:[#allocation3 + $0x16] sm:$0x3] %vm425, %v1140
    %1143 = vst.msk [vmem:[#allocation3 + $0x8] sm:$0x3] %vm427, %v1140
    %v1144 = vld [vmem:[#allocation2 + $0x18] sm:$0x3]
    %v1145 = vpack.c.bf16 %v1137, %v1137
    %1147 = vrot.lane.b32.xlu0 %v1145, 32
    %v1148 = vpop.permute.xlu0 %1147
    %v1150 = vsel %vm366, %v1148, 0
    %1152 = vmatpush.bf16.msra.mxu0 0
    %1153 = vmatpush.bf16.msra.mxu0 0
    %1154 = vmatpush.bf16.msra.mxu0 0
    %1155 = vmatpush.bf16.msra.mxu0 0
    %1156 = vmatpush.bf16.msra.mxu0 0
    %1157 = vmatpush.bf16.msra.mxu0 0
    %1158 = vmatpush.bf16.msra.mxu0 %v363
    %1159 = vmatpush.bf16.msra.mxu0 %v362
    %1160 = vmatmul.bf16.gmra.mxu0 %v1150
    %v1161 = vpop.f32.mrf.mxu0
    %v1162 = vadd.f32 0.0, %v1161
    %v1163 = vpop.f32.mrf.mxu0
    %1164 = vdwg.mxu0
    %v1165 = vadd.f32 %v1144, %v1162
    %v1166 = vxor.u32 %v1165, 2147483648
    %v1167 = vmul.f32 %v1166, 1.442695
    %v1168 = vpow.pop %v1167
    %v1169 = vadd.f32 %v1168, 1.0
    %v1170 = vrcp.pop %v1169
    %v1171 = vmul.f32 %v1169, %v1170
    %v1172 = vsub.f32 1.0, %v1171
    %v1173 = vmul.f32 %v1170, %v1172
    %v1174 = vadd.f32 %v1170, %v1173
    %vm1175 = vweird.f32 %v1169
    %vm1176 = vweird.f32 %v1170
    %vm1177 = vmor %vm1175, %vm1176
    %v1178 = vsel %vm1177, %v1170, %v1174
    %v1179 = vand.u32 2147483647, %v1169
    %vm1180 = vcmp.eq.f32.partialorder %v1179, 8.507059e+37
    %v1181 = vand.u32 %v1169, 2147483648
    %v1182 = vor.u32 1.1754944e-38, %v1181
    %v1183 = vsel %vm1180, %v1182, %v1178
    %v1184 = vmul.f32 1.0, %v1183
    %v1185 = vtanh.pop %v1165
    %v1186 = vmul.f32 %v1184, %v1131
    %1188 = vrot.lane.b32.xlu0 %v1185, 64
    %v1189 = vpop.permute.xlu0 %1188
    %v1191 = vmul.f32 %v1184, %v1189
    %1193 = vrot.lane.b32.xlu0 %v1191, 32
    %v1194 = vpop.permute.xlu0 %1193
    %v1196 = vadd.f32 %v1186, %v1194
    %v1197 = vtanh.pop %v1196
    %1199 = vrot.lane.b32.xlu0 %v1197, 64
    %v1200 = vpop.permute.xlu0 %1199
    %v1202 = vmul.f32 %v1184, %v1200
    %1204 = vrot.lane.b32.xlu0 %v1202, 32
    %v1205 = vpop.permute.xlu0 %1204
    %1207 = vst.msk [vmem:[#allocation3 + $0x18] sm:$0x3] %vm425, %v1205
    %1208 = vst.msk [vmem:[#allocation3 + $0x6] sm:$0x3] %vm427, %v1205
    %v1209 = vld [vmem:[#allocation2 + $0x1a] sm:$0x3]
    %v1210 = vpack.c.bf16 %v1202, %v1202
    %1212 = vrot.lane.b32.xlu0 %v1210, 32
    %v1213 = vpop.permute.xlu0 %1212
    %v1215 = vsel %vm366, %v1213, 0
    %1217 = vmatpush.bf16.msra.mxu0 0
    %1218 = vmatpush.bf16.msra.mxu0 0
    %1219 = vmatpush.bf16.msra.mxu0 0
    %1220 = vmatpush.bf16.msra.mxu0 0
    %1221 = vmatpush.bf16.msra.mxu0 0
    %1222 = vmatpush.bf16.msra.mxu0 0
    %1223 = vmatpush.bf16.msra.mxu0 %v363
    %1224 = vmatpush.bf16.msra.mxu0 %v362
    %1225 = vmatmul.bf16.gmra.mxu0 %v1215
    %v1226 = vpop.f32.mrf.mxu0
    %v1227 = vadd.f32 0.0, %v1226
    %v1228 = vpop.f32.mrf.mxu0
    %1229 = vdwg.mxu0
    %v1230 = vadd.f32 %v1209, %v1227
    %v1231 = vxor.u32 %v1230, 2147483648
    %v1232 = vmul.f32 %v1231, 1.442695
    %v1233 = vpow.pop %v1232
    %v1234 = vadd.f32 %v1233, 1.0
    %v1235 = vrcp.pop %v1234
    %v1236 = vmul.f32 %v1234, %v1235
    %v1237 = vsub.f32 1.0, %v1236
    %v1238 = vmul.f32 %v1235, %v1237
    %v1239 = vadd.f32 %v1235, %v1238
    %vm1240 = vweird.f32 %v1234
    %vm1241 = vweird.f32 %v1235
    %vm1242 = vmor %vm1240, %vm1241
    %v1243 = vsel %vm1242, %v1235, %v1239
    %v1244 = vand.u32 2147483647, %v1234
    %vm1245 = vcmp.eq.f32.partialorder %v1244, 8.507059e+37
    %v1246 = vand.u32 %v1234, 2147483648
    %v1247 = vor.u32 1.1754944e-38, %v1246
    %v1248 = vsel %vm1245, %v1247, %v1243
    %v1249 = vmul.f32 1.0, %v1248
    %v1250 = vtanh.pop %v1230
    %v1251 = vmul.f32 %v1249, %v1196
    %1253 = vrot.lane.b32.xlu0 %v1250, 64
    %v1254 = vpop.permute.xlu0 %1253
    %v1256 = vmul.f32 %v1249, %v1254
    %1258 = vrot.lane.b32.xlu0 %v1256, 32
    %v1259 = vpop.permute.xlu0 %1258
    %v1261 = vadd.f32 %v1251, %v1259
    %v1262 = vtanh.pop %v1261
    %1264 = vrot.lane.b32.xlu0 %v1262, 64
    %v1265 = vpop.permute.xlu0 %1264
    %v1267 = vmul.f32 %v1249, %v1265
    %1269 = vrot.lane.b32.xlu0 %v1267, 32
    %v1270 = vpop.permute.xlu0 %1269
    %1272 = vst.msk [vmem:[#allocation3 + $0x1a] sm:$0x3] %vm425, %v1270
    %1273 = vst.msk [vmem:[#allocation3 + $0x4] sm:$0x3] %vm427, %v1270
    %v1274 = vld [vmem:[#allocation2 + $0x1c] sm:$0x3]
    %v1275 = vpack.c.bf16 %v1267, %v1267
    %1277 = vrot.lane.b32.xlu0 %v1275, 32
    %v1278 = vpop.permute.xlu0 %1277
    %v1280 = vsel %vm366, %v1278, 0
    %1282 = vmatpush.bf16.msra.mxu0 0
    %1283 = vmatpush.bf16.msra.mxu0 0
    %1284 = vmatpush.bf16.msra.mxu0 0
    %1285 = vmatpush.bf16.msra.mxu0 0
    %1286 = vmatpush.bf16.msra.mxu0 0
    %1287 = vmatpush.bf16.msra.mxu0 0
    %1288 = vmatpush.bf16.msra.mxu0 %v363
    %1289 = vmatpush.bf16.msra.mxu0 %v362
    %1290 = vmatmul.bf16.gmra.mxu0 %v1280
    %v1291 = vpop.f32.mrf.mxu0
    %v1292 = vadd.f32 0.0, %v1291
    %v1293 = vpop.f32.mrf.mxu0
    %1294 = vdwg.mxu0
    %v1295 = vadd.f32 %v1274, %v1292
    %v1296 = vxor.u32 %v1295, 2147483648
    %v1297 = vmul.f32 %v1296, 1.442695
    %v1298 = vpow.pop %v1297
    %v1299 = vadd.f32 %v1298, 1.0
    %v1300 = vrcp.pop %v1299
    %v1301 = vmul.f32 %v1299, %v1300
    %v1302 = vsub.f32 1.0, %v1301
    %v1303 = vmul.f32 %v1300, %v1302
    %v1304 = vadd.f32 %v1300, %v1303
    %vm1305 = vweird.f32 %v1299
    %vm1306 = vweird.f32 %v1300
    %vm1307 = vmor %vm1305, %vm1306
    %v1308 = vsel %vm1307, %v1300, %v1304
    %v1309 = vand.u32 2147483647, %v1299
    %vm1310 = vcmp.eq.f32.partialorder %v1309, 8.507059e+37
    %v1311 = vand.u32 %v1299, 2147483648
    %v1312 = vor.u32 1.1754944e-38, %v1311
    %v1313 = vsel %vm1310, %v1312, %v1308
    %v1314 = vmul.f32 1.0, %v1313
    %v1315 = vtanh.pop %v1295
    %v1316 = vmul.f32 %v1314, %v1261
    %1318 = vrot.lane.b32.xlu0 %v1315, 64
    %v1319 = vpop.permute.xlu0 %1318
    %v1321 = vmul.f32 %v1314, %v1319
    %1323 = vrot.lane.b32.xlu0 %v1321, 32
    %v1324 = vpop.permute.xlu0 %1323
    %v1326 = vadd.f32 %v1316, %v1324
    %v1327 = vtanh.pop %v1326
    %1329 = vrot.lane.b32.xlu0 %v1327, 64
    %v1330 = vpop.permute.xlu0 %1329
    %v1332 = vmul.f32 %v1314, %v1330
    %1334 = vrot.lane.b32.xlu0 %v1332, 32
    %v1335 = vpop.permute.xlu0 %1334
    %1337 = vst.msk [vmem:[#allocation3 + $0x1c] sm:$0x3] %vm425, %v1335
    %1338 = vst.msk [vmem:[#allocation3 + $0x2] sm:$0x3] %vm427, %v1335
    %v1339 = vld [vmem:[#allocation2 + $0x1e] sm:$0x3]
    %v1340 = vpack.c.bf16 %v1332, %v1332
    %1342 = vrot.lane.b32.xlu0 %v1340, 32
    %v1343 = vpop.permute.xlu0 %1342
    %v1345 = vsel %vm366, %v1343, 0
    %1347 = vmatpush.bf16.msra.mxu0 0
    %1348 = vmatpush.bf16.msra.mxu0 0
    %1349 = vmatpush.bf16.msra.mxu0 0
    %1350 = vmatpush.bf16.msra.mxu0 0
    %1351 = vmatpush.bf16.msra.mxu0 0
    %1352 = vmatpush.bf16.msra.mxu0 0
    %1353 = vmatpush.bf16.msra.mxu0 %v363
    %1354 = vmatpush.bf16.msra.mxu0 %v362
    %1355 = vmatmul.bf16.gmra.mxu0 %v1345
    %v1356 = vpop.f32.mrf.mxu0
    %v1357 = vadd.f32 0.0, %v1356
    %v1358 = vpop.f32.mrf.mxu0
    %1359 = vdwg.mxu0
    %v1360 = vadd.f32 %v1339, %v1357
    %v1361 = vxor.u32 %v1360, 2147483648
    %v1362 = vmul.f32 %v1361, 1.442695
    %v1363 = vpow.pop %v1362
    %v1364 = vadd.f32 %v1363, 1.0
    %v1365 = vrcp.pop %v1364
    %v1366 = vmul.f32 %v1364, %v1365
    %v1367 = vsub.f32 1.0, %v1366
    %v1368 = vmul.f32 %v1365, %v1367
    %v1369 = vadd.f32 %v1365, %v1368
    %vm1370 = vweird.f32 %v1364
    %vm1371 = vweird.f32 %v1365
    %vm1372 = vmor %vm1370, %vm1371
    %v1373 = vsel %vm1372, %v1365, %v1369
    %v1374 = vand.u32 2147483647, %v1364
    %vm1375 = vcmp.eq.f32.partialorder %v1374, 8.507059e+37
    %v1376 = vand.u32 %v1364, 2147483648
    %v1377 = vor.u32 1.1754944e-38, %v1376
    %v1378 = vsel %vm1375, %v1377, %v1373
    %v1379 = vmul.f32 1.0, %v1378
    %v1380 = vtanh.pop %v1360
    %v1381 = vmul.f32 %v1379, %v1326
    %1383 = vrot.lane.b32.xlu0 %v1380, 64
    %v1384 = vpop.permute.xlu0 %1383
    %v1386 = vmul.f32 %v1379, %v1384
    %1388 = vrot.lane.b32.xlu0 %v1386, 32
    %v1389 = vpop.permute.xlu0 %1388
    %v1391 = vadd.f32 %v1381, %v1389
    %v1392 = vtanh.pop %v1391
    %1394 = vrot.lane.b32.xlu0 %v1392, 64
    %v1395 = vpop.permute.xlu0 %1394
    %v1397 = vmul.f32 %v1379, %v1395
    %1399 = vrot.lane.b32.xlu0 %v1397, 32
    %v1400 = vpop.permute.xlu0 %1399
    %1402 = vst.msk [vmem:[#allocation3 + $0x1e] sm:$0x3] %vm425, %v1400
    %1403 = vst.msk [vmem:[#allocation3] sm:$0x3] %vm427, %v1400
    %v1404 = vld [vmem:[#allocation3] sm:$0xff]
    %v1405 = vld [vmem:[#allocation3 + $0x8] sm:$0xff]
    %v1406 = vld [vmem:[#allocation3 + $0x10] sm:$0xff]
    %v1407 = vld [vmem:[#allocation3 + $0x18] sm:$0xff]
    %v1408 = vperm.slane %v86, 0
    %v1410 = vsel %vm366, %v1404, 0
    %v1413 = vsel %vm366, %v1405, 0
    %v1416 = vsel %vm366, %v1406, 0
    %v1419 = vsel %vm366, %v1407, 0
    %1421 = vmatpush.msra.mxu0 0.0
    %1422 = vmatpush.msra.mxu0 0.0
    %1423 = vmatpush.msra.mxu0 0.0
    %1424 = vmatpush.msra.mxu0 0.0
    %1425 = vmatpush.msra.mxu0 0.0
    %1426 = vmatpush.msra.mxu0 0.0
    %1427 = vmatpush.msra.mxu0 0.0
    %1428 = vmatpush.msra.mxu0 0.0
    %1429 = vmatpush.msra.mxu0 0.0
    %1430 = vmatpush.msra.mxu0 0.0
    %1431 = vmatpush.msra.mxu0 0.0
    %1432 = vmatpush.msra.mxu0 0.0
    %1433 = vmatpush.msra.mxu0 %v84
    %1434 = vmatpush.msra.mxu0 %v83
    %1435 = vmatpush.msra.mxu0 %v82
    %1436 = vmatpush.msra.mxu0 %v81
    %1437 = vmatmul.f32.gmra.mxu0 %v1410
    %v1438 = vpop.f32.mrf.mxu0
    %v1439 = vadd.f32 %v1408, %v1438
    %1440 = vmatmul.f32.gmra.mxu0 %v1413
    %v1441 = vpop.f32.mrf.mxu0
    %v1442 = vadd.f32 %v1408, %v1441
    %1443 = vmatmul.f32.gmra.mxu0 %v1416
    %v1444 = vpop.f32.mrf.mxu0
    %v1445 = vadd.f32 %v1408, %v1444
    %1446 = vmatmul.f32.gmra.mxu0 %v1419
    %v1447 = vpop.f32.mrf.mxu0
    %v1448 = vadd.f32 %v1408, %v1447
    %1449 = vdwg.mxu0
    %v1451 = vrot.slane %v1448, 6
    %v1453 = vsel %vm320, %v1439, %v1451
    %1454 = vst [vmem:[#allocation2] sm:$0x3] %v1453
    %v1455 = vrot.slane %v1448, 2
    %v1457 = vsel %vm320, %v1439, %v1455
    %1458 = vst [vmem:[#allocation2] sm:$0xc] %v1457
    %1459 = vst [vmem:[#allocation2] sm:$0x30] %v1453
    %1460 = vst [vmem:[#allocation2] sm:$0xc0] %v1457
    %v1462 = vrot.slane %v1445, 6
    %v1464 = vsel %vm320, %v1442, %v1462
    %1465 = vst [vmem:[#allocation2 + $0x8] sm:$0x3] %v1464
    %v1466 = vrot.slane %v1445, 2
    %v1468 = vsel %vm320, %v1442, %v1466
    %1469 = vst [vmem:[#allocation2 + $0x8] sm:$0xc] %v1468
    %1470 = vst [vmem:[#allocation2 + $0x8] sm:$0x30] %v1464
    %1471 = vst [vmem:[#allocation2 + $0x8] sm:$0xc0] %v1468
    %v1473 = vrot.slane %v1442, 6
    %v1475 = vsel %vm320, %v1445, %v1473
    %1476 = vst [vmem:[#allocation2 + $0x10] sm:$0x3] %v1475
    %v1477 = vrot.slane %v1442, 2
    %v1479 = vsel %vm320, %v1445, %v1477
    %1480 = vst [vmem:[#allocation2 + $0x10] sm:$0xc] %v1479
    %1481 = vst [vmem:[#allocation2 + $0x10] sm:$0x30] %v1475
    %1482 = vst [vmem:[#allocation2 + $0x10] sm:$0xc0] %v1479
    %v1484 = vrot.slane %v1439, 6
    %v1486 = vsel %vm320, %v1448, %v1484
    %1487 = vst [vmem:[#allocation2 + $0x18] sm:$0x3] %v1486
    %v1488 = vrot.slane %v1439, 2
    %v1490 = vsel %vm320, %v1448, %v1488
    %1491 = vst [vmem:[#allocation2 + $0x18] sm:$0xc] %v1490
    %1492 = vst [vmem:[#allocation2 + $0x18] sm:$0x30] %v1486
    %1493 = vst [vmem:[#allocation2 + $0x18] sm:$0xc0] %v1490
    %v1494 = vld [vmem:[#allocation2] sm:$0x3]
    %v1499 = vunpack.c.l.b16 %v91
    %v1500 = vunpack.c.l.b16 %v92
    %v1501 = vunpack.c.l.b16 %v93
    %v1502 = vunpack.c.l.b16 %v94
    %v1503 = vpack.c.b16 %v1500, %v1499
    %v1504 = vpack.c.b16 %v1502, %v1501
    %1507 = vmatpush.bf16.msra.mxu0 0
    %1508 = vmatpush.bf16.msra.mxu0 0
    %1509 = vmatpush.bf16.msra.mxu0 0
    %1510 = vmatpush.bf16.msra.mxu0 0
    %1511 = vmatpush.bf16.msra.mxu0 0
    %1512 = vmatpush.bf16.msra.mxu0 0
    %1513 = vmatpush.bf16.msra.mxu0 %v1504
    %1514 = vmatpush.bf16.msra.mxu0 %v1503
    %1515 = vmatmul.bf16.gmra.mxu0 %v368
    %v1516 = vpop.f32.mrf.mxu0
    %v1517 = vadd.f32 0.0, %v1516
    %v1518 = vpop.f32.mrf.mxu0
    %1519 = vdwg.mxu0
    %v1520 = vadd.f32 %v1494, %v1517
    %v1521 = vxor.u32 %v1520, 2147483648
    %v1522 = vmul.f32 %v1521, 1.442695
    %v1523 = vpow.pop %v1522
    %v1524 = vadd.f32 %v1523, 1.0
    %v1525 = vrcp.pop %v1524
    %v1526 = vmul.f32 %v1524, %v1525
    %v1527 = vsub.f32 1.0, %v1526
    %v1528 = vmul.f32 %v1525, %v1527
    %v1529 = vadd.f32 %v1525, %v1528
    %vm1530 = vweird.f32 %v1524
    %vm1531 = vweird.f32 %v1525
    %vm1532 = vmor %vm1530, %vm1531
    %v1533 = vsel %vm1532, %v1525, %v1529
    %v1534 = vand.u32 2147483647, %v1524
    %vm1535 = vcmp.eq.f32.partialorder %v1534, 8.507059e+37
    %v1536 = vand.u32 %v1524, 2147483648
    %v1537 = vor.u32 1.1754944e-38, %v1536
    %v1538 = vsel %vm1535, %v1537, %v1533
    %v1539 = vmul.f32 1.0, %v1538
    %v1540 = vtanh.pop %v1520
    %v1541 = vmul.f32 %v1539, 0.0
    %1543 = vrot.lane.b32.xlu0 %v1540, 64
    %v1544 = vpop.permute.xlu0 %1543
    %v1546 = vmul.f32 %v1539, %v1544
    %1548 = vrot.lane.b32.xlu0 %v1546, 32
    %v1549 = vpop.permute.xlu0 %1548
    %v1551 = vadd.f32 %v1541, %v1549
    %v1552 = vtanh.pop %v1551
    %1554 = vrot.lane.b32.xlu0 %v1552, 64
    %v1555 = vpop.permute.xlu0 %1554
    %v1557 = vmul.f32 %v1539, %v1555
    %1559 = vrot.lane.b32.xlu0 %v1557, 32
    %v1560 = vpop.permute.xlu0 %1559
    %1562 = vst.msk [vmem:[#allocation3] sm:$0x3] %vm425, %v1560
    %1563 = vst.msk [vmem:[#allocation3 + $0x1e] sm:$0x3] %vm427, %v1560
    %v1564 = vld [vmem:[#allocation2 + $0x2] sm:$0x3]
    %v1565 = vpack.c.bf16 %v1557, %v1557
    %1567 = vrot.lane.b32.xlu0 %v1565, 32
    %v1568 = vpop.permute.xlu0 %1567
    %v1570 = vsel %vm366, %v1568, 0
    %1572 = vmatpush.bf16.msra.mxu0 0
    %1573 = vmatpush.bf16.msra.mxu0 0
    %1574 = vmatpush.bf16.msra.mxu0 0
    %1575 = vmatpush.bf16.msra.mxu0 0
    %1576 = vmatpush.bf16.msra.mxu0 0
    %1577 = vmatpush.bf16.msra.mxu0 0
    %1578 = vmatpush.bf16.msra.mxu0 %v1504
    %1579 = vmatpush.bf16.msra.mxu0 %v1503
    %1580 = vmatmul.bf16.gmra.mxu0 %v1570
    %v1581 = vpop.f32.mrf.mxu0
    %v1582 = vadd.f32 0.0, %v1581
    %v1583 = vpop.f32.mrf.mxu0
    %1584 = vdwg.mxu0
    %v1585 = vadd.f32 %v1564, %v1582
    %v1586 = vxor.u32 %v1585, 2147483648
    %v1587 = vmul.f32 %v1586, 1.442695
    %v1588 = vpow.pop %v1587
    %v1589 = vadd.f32 %v1588, 1.0
    %v1590 = vrcp.pop %v1589
    %v1591 = vmul.f32 %v1589, %v1590
    %v1592 = vsub.f32 1.0, %v1591
    %v1593 = vmul.f32 %v1590, %v1592
    %v1594 = vadd.f32 %v1590, %v1593
    %vm1595 = vweird.f32 %v1589
    %vm1596 = vweird.f32 %v1590
    %vm1597 = vmor %vm1595, %vm1596
    %v1598 = vsel %vm1597, %v1590, %v1594
    %v1599 = vand.u32 2147483647, %v1589
    %vm1600 = vcmp.eq.f32.partialorder %v1599, 8.507059e+37
    %v1601 = vand.u32 %v1589, 2147483648
    %v1602 = vor.u32 1.1754944e-38, %v1601
    %v1603 = vsel %vm1600, %v1602, %v1598
    %v1604 = vmul.f32 1.0, %v1603
    %v1605 = vtanh.pop %v1585
    %v1606 = vmul.f32 %v1604, %v1551
    %1608 = vrot.lane.b32.xlu0 %v1605, 64
    %v1609 = vpop.permute.xlu0 %1608
    %v1611 = vmul.f32 %v1604, %v1609
    %1613 = vrot.lane.b32.xlu0 %v1611, 32
    %v1614 = vpop.permute.xlu0 %1613
    %v1616 = vadd.f32 %v1606, %v1614
    %v1617 = vtanh.pop %v1616
    %1619 = vrot.lane.b32.xlu0 %v1617, 64
    %v1620 = vpop.permute.xlu0 %1619
    %v1622 = vmul.f32 %v1604, %v1620
    %1624 = vrot.lane.b32.xlu0 %v1622, 32
    %v1625 = vpop.permute.xlu0 %1624
    %1627 = vst.msk [vmem:[#allocation3 + $0x2] sm:$0x3] %vm425, %v1625
    %1628 = vst.msk [vmem:[#allocation3 + $0x1c] sm:$0x3] %vm427, %v1625
    %v1629 = vld [vmem:[#allocation2 + $0x4] sm:$0x3]
    %v1630 = vpack.c.bf16 %v1622, %v1622
    %1632 = vrot.lane.b32.xlu0 %v1630, 32
    %v1633 = vpop.permute.xlu0 %1632
    %v1635 = vsel %vm366, %v1633, 0
    %1637 = vmatpush.bf16.msra.mxu0 0
    %1638 = vmatpush.bf16.msra.mxu0 0
    %1639 = vmatpush.bf16.msra.mxu0 0
    %1640 = vmatpush.bf16.msra.mxu0 0
    %1641 = vmatpush.bf16.msra.mxu0 0
    %1642 = vmatpush.bf16.msra.mxu0 0
    %1643 = vmatpush.bf16.msra.mxu0 %v1504
    %1644 = vmatpush.bf16.msra.mxu0 %v1503
    %1645 = vmatmul.bf16.gmra.mxu0 %v1635
    %v1646 = vpop.f32.mrf.mxu0
    %v1647 = vadd.f32 0.0, %v1646
    %v1648 = vpop.f32.mrf.mxu0
    %1649 = vdwg.mxu0
    %v1650 = vadd.f32 %v1629, %v1647
    %v1651 = vxor.u32 %v1650, 2147483648
    %v1652 = vmul.f32 %v1651, 1.442695
    %v1653 = vpow.pop %v1652
    %v1654 = vadd.f32 %v1653, 1.0
    %v1655 = vrcp.pop %v1654
    %v1656 = vmul.f32 %v1654, %v1655
    %v1657 = vsub.f32 1.0, %v1656
    %v1658 = vmul.f32 %v1655, %v1657
    %v1659 = vadd.f32 %v1655, %v1658
    %vm1660 = vweird.f32 %v1654
    %vm1661 = vweird.f32 %v1655
    %vm1662 = vmor %vm1660, %vm1661
    %v1663 = vsel %vm1662, %v1655, %v1659
    %v1664 = vand.u32 2147483647, %v1654
    %vm1665 = vcmp.eq.f32.partialorder %v1664, 8.507059e+37
    %v1666 = vand.u32 %v1654, 2147483648
    %v1667 = vor.u32 1.1754944e-38, %v1666
    %v1668 = vsel %vm1665, %v1667, %v1663
    %v1669 = vmul.f32 1.0, %v1668
    %v1670 = vtanh.pop %v1650
    %v1671 = vmul.f32 %v1669, %v1616
    %1673 = vrot.lane.b32.xlu0 %v1670, 64
    %v1674 = vpop.permute.xlu0 %1673
    %v1676 = vmul.f32 %v1669, %v1674
    %1678 = vrot.lane.b32.xlu0 %v1676, 32
    %v1679 = vpop.permute.xlu0 %1678
    %v1681 = vadd.f32 %v1671, %v1679
    %v1682 = vtanh.pop %v1681
    %1684 = vrot.lane.b32.xlu0 %v1682, 64
    %v1685 = vpop.permute.xlu0 %1684
    %v1687 = vmul.f32 %v1669, %v1685
    %1689 = vrot.lane.b32.xlu0 %v1687, 32
    %v1690 = vpop.permute.xlu0 %1689
    %1692 = vst.msk [vmem:[#allocation3 + $0x4] sm:$0x3] %vm425, %v1690
    %1693 = vst.msk [vmem:[#allocation3 + $0x1a] sm:$0x3] %vm427, %v1690
    %v1694 = vld [vmem:[#allocation2 + $0x6] sm:$0x3]
    %v1695 = vpack.c.bf16 %v1687, %v1687
    %1697 = vrot.lane.b32.xlu0 %v1695, 32
    %v1698 = vpop.permute.xlu0 %1697
    %v1700 = vsel %vm366, %v1698, 0
    %1702 = vmatpush.bf16.msra.mxu0 0
    %1703 = vmatpush.bf16.msra.mxu0 0
    %1704 = vmatpush.bf16.msra.mxu0 0
    %1705 = vmatpush.bf16.msra.mxu0 0
    %1706 = vmatpush.bf16.msra.mxu0 0
    %1707 = vmatpush.bf16.msra.mxu0 0
    %1708 = vmatpush.bf16.msra.mxu0 %v1504
    %1709 = vmatpush.bf16.msra.mxu0 %v1503
    %1710 = vmatmul.bf16.gmra.mxu0 %v1700
    %v1711 = vpop.f32.mrf.mxu0
    %v1712 = vadd.f32 0.0, %v1711
    %v1713 = vpop.f32.mrf.mxu0
    %1714 = vdwg.mxu0
    %v1715 = vadd.f32 %v1694, %v1712
    %v1716 = vxor.u32 %v1715, 2147483648
    %v1717 = vmul.f32 %v1716, 1.442695
    %v1718 = vpow.pop %v1717
    %v1719 = vadd.f32 %v1718, 1.0
    %v1720 = vrcp.pop %v1719
    %v1721 = vmul.f32 %v1719, %v1720
    %v1722 = vsub.f32 1.0, %v1721
    %v1723 = vmul.f32 %v1720, %v1722
    %v1724 = vadd.f32 %v1720, %v1723
    %vm1725 = vweird.f32 %v1719
    %vm1726 = vweird.f32 %v1720
    %vm1727 = vmor %vm1725, %vm1726
    %v1728 = vsel %vm1727, %v1720, %v1724
    %v1729 = vand.u32 2147483647, %v1719
    %vm1730 = vcmp.eq.f32.partialorder %v1729, 8.507059e+37
    %v1731 = vand.u32 %v1719, 2147483648
    %v1732 = vor.u32 1.1754944e-38, %v1731
    %v1733 = vsel %vm1730, %v1732, %v1728
    %v1734 = vmul.f32 1.0, %v1733
    %v1735 = vtanh.pop %v1715
    %v1736 = vmul.f32 %v1734, %v1681
    %1738 = vrot.lane.b32.xlu0 %v1735, 64
    %v1739 = vpop.permute.xlu0 %1738
    %v1741 = vmul.f32 %v1734, %v1739
    %1743 = vrot.lane.b32.xlu0 %v1741, 32
    %v1744 = vpop.permute.xlu0 %1743
    %v1746 = vadd.f32 %v1736, %v1744
    %v1747 = vtanh.pop %v1746
    %1749 = vrot.lane.b32.xlu0 %v1747, 64
    %v1750 = vpop.permute.xlu0 %1749
    %v1752 = vmul.f32 %v1734, %v1750
    %1754 = vrot.lane.b32.xlu0 %v1752, 32
    %v1755 = vpop.permute.xlu0 %1754
    %1757 = vst.msk [vmem:[#allocation3 + $0x6] sm:$0x3] %vm425, %v1755
    %1758 = vst.msk [vmem:[#allocation3 + $0x18] sm:$0x3] %vm427, %v1755
    %v1759 = vld [vmem:[#allocation2 + $0x8] sm:$0x3]
    %v1760 = vpack.c.bf16 %v1752, %v1752
    %1762 = vrot.lane.b32.xlu0 %v1760, 32
    %v1763 = vpop.permute.xlu0 %1762
    %v1765 = vsel %vm366, %v1763, 0
    %1767 = vmatpush.bf16.msra.mxu0 0
    %1768 = vmatpush.bf16.msra.mxu0 0
    %1769 = vmatpush.bf16.msra.mxu0 0
    %1770 = vmatpush.bf16.msra.mxu0 0
    %1771 = vmatpush.bf16.msra.mxu0 0
    %1772 = vmatpush.bf16.msra.mxu0 0
    %1773 = vmatpush.bf16.msra.mxu0 %v1504
    %1774 = vmatpush.bf16.msra.mxu0 %v1503
    %1775 = vmatmul.bf16.gmra.mxu0 %v1765
    %v1776 = vpop.f32.mrf.mxu0
    %v1777 = vadd.f32 0.0, %v1776
    %v1778 = vpop.f32.mrf.mxu0
    %1779 = vdwg.mxu0
    %v1780 = vadd.f32 %v1759, %v1777
    %v1781 = vxor.u32 %v1780, 2147483648
    %v1782 = vmul.f32 %v1781, 1.442695
    %v1783 = vpow.pop %v1782
    %v1784 = vadd.f32 %v1783, 1.0
    %v1785 = vrcp.pop %v1784
    %v1786 = vmul.f32 %v1784, %v1785
    %v1787 = vsub.f32 1.0, %v1786
    %v1788 = vmul.f32 %v1785, %v1787
    %v1789 = vadd.f32 %v1785, %v1788
    %vm1790 = vweird.f32 %v1784
    %vm1791 = vweird.f32 %v1785
    %vm1792 = vmor %vm1790, %vm1791
    %v1793 = vsel %vm1792, %v1785, %v1789
    %v1794 = vand.u32 2147483647, %v1784
    %vm1795 = vcmp.eq.f32.partialorder %v1794, 8.507059e+37
    %v1796 = vand.u32 %v1784, 2147483648
    %v1797 = vor.u32 1.1754944e-38, %v1796
    %v1798 = vsel %vm1795, %v1797, %v1793
    %v1799 = vmul.f32 1.0, %v1798
    %v1800 = vtanh.pop %v1780
    %v1801 = vmul.f32 %v1799, %v1746
    %1803 = vrot.lane.b32.xlu0 %v1800, 64
    %v1804 = vpop.permute.xlu0 %1803
    %v1806 = vmul.f32 %v1799, %v1804
    %1808 = vrot.lane.b32.xlu0 %v1806, 32
    %v1809 = vpop.permute.xlu0 %1808
    %v1811 = vadd.f32 %v1801, %v1809
    %v1812 = vtanh.pop %v1811
    %1814 = vrot.lane.b32.xlu0 %v1812, 64
    %v1815 = vpop.permute.xlu0 %1814
    %v1817 = vmul.f32 %v1799, %v1815
    %1819 = vrot.lane.b32.xlu0 %v1817, 32
    %v1820 = vpop.permute.xlu0 %1819
    %1822 = vst.msk [vmem:[#allocation3 + $0x8] sm:$0x3] %vm425, %v1820
    %1823 = vst.msk [vmem:[#allocation3 + $0x16] sm:$0x3] %vm427, %v1820
    %v1824 = vld [vmem:[#allocation2 + $0xa] sm:$0x3]
    %v1825 = vpack.c.bf16 %v1817, %v1817
    %1827 = vrot.lane.b32.xlu0 %v1825, 32
    %v1828 = vpop.permute.xlu0 %1827
    %v1830 = vsel %vm366, %v1828, 0
    %1832 = vmatpush.bf16.msra.mxu0 0
    %1833 = vmatpush.bf16.msra.mxu0 0
    %1834 = vmatpush.bf16.msra.mxu0 0
    %1835 = vmatpush.bf16.msra.mxu0 0
    %1836 = vmatpush.bf16.msra.mxu0 0
    %1837 = vmatpush.bf16.msra.mxu0 0
    %1838 = vmatpush.bf16.msra.mxu0 %v1504
    %1839 = vmatpush.bf16.msra.mxu0 %v1503
    %1840 = vmatmul.bf16.gmra.mxu0 %v1830
    %v1841 = vpop.f32.mrf.mxu0
    %v1842 = vadd.f32 0.0, %v1841
    %v1843 = vpop.f32.mrf.mxu0
    %1844 = vdwg.mxu0
    %v1845 = vadd.f32 %v1824, %v1842
    %v1846 = vxor.u32 %v1845, 2147483648
    %v1847 = vmul.f32 %v1846, 1.442695
    %v1848 = vpow.pop %v1847
    %v1849 = vadd.f32 %v1848, 1.0
    %v1850 = vrcp.pop %v1849
    %v1851 = vmul.f32 %v1849, %v1850
    %v1852 = vsub.f32 1.0, %v1851
    %v1853 = vmul.f32 %v1850, %v1852
    %v1854 = vadd.f32 %v1850, %v1853
    %vm1855 = vweird.f32 %v1849
    %vm1856 = vweird.f32 %v1850
    %vm1857 = vmor %vm1855, %vm1856
    %v1858 = vsel %vm1857, %v1850, %v1854
    %v1859 = vand.u32 2147483647, %v1849
    %vm1860 = vcmp.eq.f32.partialorder %v1859, 8.507059e+37
    %v1861 = vand.u32 %v1849, 2147483648
    %v1862 = vor.u32 1.1754944e-38, %v1861
    %v1863 = vsel %vm1860, %v1862, %v1858
    %v1864 = vmul.f32 1.0, %v1863
    %v1865 = vtanh.pop %v1845
    %v1866 = vmul.f32 %v1864, %v1811
    %1868 = vrot.lane.b32.xlu0 %v1865, 64
    %v1869 = vpop.permute.xlu0 %1868
    %v1871 = vmul.f32 %v1864, %v1869
    %1873 = vrot.lane.b32.xlu0 %v1871, 32
    %v1874 = vpop.permute.xlu0 %1873
    %v1876 = vadd.f32 %v1866, %v1874
    %v1877 = vtanh.pop %v1876
    %1879 = vrot.lane.b32.xlu0 %v1877, 64
    %v1880 = vpop.permute.xlu0 %1879
    %v1882 = vmul.f32 %v1864, %v1880
    %1884 = vrot.lane.b32.xlu0 %v1882, 32
    %v1885 = vpop.permute.xlu0 %1884
    %1887 = vst.msk [vmem:[#allocation3 + $0xa] sm:$0x3] %vm425, %v1885
    %1888 = vst.msk [vmem:[#allocation3 + $0x14] sm:$0x3] %vm427, %v1885
    %v1889 = vld [vmem:[#allocation2 + $0xc] sm:$0x3]
    %v1890 = vpack.c.bf16 %v1882, %v1882
    %1892 = vrot.lane.b32.xlu0 %v1890, 32
    %v1893 = vpop.permute.xlu0 %1892
    %v1895 = vsel %vm366, %v1893, 0
    %1897 = vmatpush.bf16.msra.mxu0 0
    %1898 = vmatpush.bf16.msra.mxu0 0
    %1899 = vmatpush.bf16.msra.mxu0 0
    %1900 = vmatpush.bf16.msra.mxu0 0
    %1901 = vmatpush.bf16.msra.mxu0 0
    %1902 = vmatpush.bf16.msra.mxu0 0
    %1903 = vmatpush.bf16.msra.mxu0 %v1504
    %1904 = vmatpush.bf16.msra.mxu0 %v1503
    %1905 = vmatmul.bf16.gmra.mxu0 %v1895
    %v1906 = vpop.f32.mrf.mxu0
    %v1907 = vadd.f32 0.0, %v1906
    %v1908 = vpop.f32.mrf.mxu0
    %1909 = vdwg.mxu0
    %v1910 = vadd.f32 %v1889, %v1907
    %v1911 = vxor.u32 %v1910, 2147483648
    %v1912 = vmul.f32 %v1911, 1.442695
    %v1913 = vpow.pop %v1912
    %v1914 = vadd.f32 %v1913, 1.0
    %v1915 = vrcp.pop %v1914
    %v1916 = vmul.f32 %v1914, %v1915
    %v1917 = vsub.f32 1.0, %v1916
    %v1918 = vmul.f32 %v1915, %v1917
    %v1919 = vadd.f32 %v1915, %v1918
    %vm1920 = vweird.f32 %v1914
    %vm1921 = vweird.f32 %v1915
    %vm1922 = vmor %vm1920, %vm1921
    %v1923 = vsel %vm1922, %v1915, %v1919
    %v1924 = vand.u32 2147483647, %v1914
    %vm1925 = vcmp.eq.f32.partialorder %v1924, 8.507059e+37
    %v1926 = vand.u32 %v1914, 2147483648
    %v1927 = vor.u32 1.1754944e-38, %v1926
    %v1928 = vsel %vm1925, %v1927, %v1923
    %v1929 = vmul.f32 1.0, %v1928
    %v1930 = vtanh.pop %v1910
    %v1931 = vmul.f32 %v1929, %v1876
    %1933 = vrot.lane.b32.xlu0 %v1930, 64
    %v1934 = vpop.permute.xlu0 %1933
    %v1936 = vmul.f32 %v1929, %v1934
    %1938 = vrot.lane.b32.xlu0 %v1936, 32
    %v1939 = vpop.permute.xlu0 %1938
    %v1941 = vadd.f32 %v1931, %v1939
    %v1942 = vtanh.pop %v1941
    %1944 = vrot.lane.b32.xlu0 %v1942, 64
    %v1945 = vpop.permute.xlu0 %1944
    %v1947 = vmul.f32 %v1929, %v1945
    %1949 = vrot.lane.b32.xlu0 %v1947, 32
    %v1950 = vpop.permute.xlu0 %1949
    %1952 = vst.msk [vmem:[#allocation3 + $0xc] sm:$0x3] %vm425, %v1950
    %1953 = vst.msk [vmem:[#allocation3 + $0x12] sm:$0x3] %vm427, %v1950
    %v1954 = vld [vmem:[#allocation2 + $0xe] sm:$0x3]
    %v1955 = vpack.c.bf16 %v1947, %v1947
    %1957 = vrot.lane.b32.xlu0 %v1955, 32
    %v1958 = vpop.permute.xlu0 %1957
    %v1960 = vsel %vm366, %v1958, 0
    %1962 = vmatpush.bf16.msra.mxu0 0
    %1963 = vmatpush.bf16.msra.mxu0 0
    %1964 = vmatpush.bf16.msra.mxu0 0
    %1965 = vmatpush.bf16.msra.mxu0 0
    %1966 = vmatpush.bf16.msra.mxu0 0
    %1967 = vmatpush.bf16.msra.mxu0 0
    %1968 = vmatpush.bf16.msra.mxu0 %v1504
    %1969 = vmatpush.bf16.msra.mxu0 %v1503
    %1970 = vmatmul.bf16.gmra.mxu0 %v1960
    %v1971 = vpop.f32.mrf.mxu0
    %v1972 = vadd.f32 0.0, %v1971
    %v1973 = vpop.f32.mrf.mxu0
    %1974 = vdwg.mxu0
    %v1975 = vadd.f32 %v1954, %v1972
    %v1976 = vxor.u32 %v1975, 2147483648
    %v1977 = vmul.f32 %v1976, 1.442695
    %v1978 = vpow.pop %v1977
    %v1979 = vadd.f32 %v1978, 1.0
    %v1980 = vrcp.pop %v1979
    %v1981 = vmul.f32 %v1979, %v1980
    %v1982 = vsub.f32 1.0, %v1981
    %v1983 = vmul.f32 %v1980, %v1982
    %v1984 = vadd.f32 %v1980, %v1983
    %vm1985 = vweird.f32 %v1979
    %vm1986 = vweird.f32 %v1980
    %vm1987 = vmor %vm1985, %vm1986
    %v1988 = vsel %vm1987, %v1980, %v1984
    %v1989 = vand.u32 2147483647, %v1979
    %vm1990 = vcmp.eq.f32.partialorder %v1989, 8.507059e+37
    %v1991 = vand.u32 %v1979, 2147483648
    %v1992 = vor.u32 1.1754944e-38, %v1991
    %v1993 = vsel %vm1990, %v1992, %v1988
    %v1994 = vmul.f32 1.0, %v1993
    %v1995 = vtanh.pop %v1975
    %v1996 = vmul.f32 %v1994, %v1941
    %1998 = vrot.lane.b32.xlu0 %v1995, 64
    %v1999 = vpop.permute.xlu0 %1998
    %v2001 = vmul.f32 %v1994, %v1999
    %2003 = vrot.lane.b32.xlu0 %v2001, 32
    %v2004 = vpop.permute.xlu0 %2003
    %v2006 = vadd.f32 %v1996, %v2004
    %v2007 = vtanh.pop %v2006
    %2009 = vrot.lane.b32.xlu0 %v2007, 64
    %v2010 = vpop.permute.xlu0 %2009
    %v2012 = vmul.f32 %v1994, %v2010
    %2014 = vrot.lane.b32.xlu0 %v2012, 32
    %v2015 = vpop.permute.xlu0 %2014
    %2017 = vst.msk [vmem:[#allocation3 + $0xe] sm:$0x3] %vm425, %v2015
    %2018 = vst.msk [vmem:[#allocation3 + $0x10] sm:$0x3] %vm427, %v2015
    %v2019 = vld [vmem:[#allocation2 + $0x10] sm:$0x3]
    %v2020 = vpack.c.bf16 %v2012, %v2012
    %2022 = vrot.lane.b32.xlu0 %v2020, 32
    %v2023 = vpop.permute.xlu0 %2022
    %v2025 = vsel %vm366, %v2023, 0
    %2027 = vmatpush.bf16.msra.mxu0 0
    %2028 = vmatpush.bf16.msra.mxu0 0
    %2029 = vmatpush.bf16.msra.mxu0 0
    %2030 = vmatpush.bf16.msra.mxu0 0
    %2031 = vmatpush.bf16.msra.mxu0 0
    %2032 = vmatpush.bf16.msra.mxu0 0
    %2033 = vmatpush.bf16.msra.mxu0 %v1504
    %2034 = vmatpush.bf16.msra.mxu0 %v1503
    %2035 = vmatmul.bf16.gmra.mxu0 %v2025
    %v2036 = vpop.f32.mrf.mxu0
    %v2037 = vadd.f32 0.0, %v2036
    %v2038 = vpop.f32.mrf.mxu0
    %2039 = vdwg.mxu0
    %v2040 = vadd.f32 %v2019, %v2037
    %v2041 = vxor.u32 %v2040, 2147483648
    %v2042 = vmul.f32 %v2041, 1.442695
    %v2043 = vpow.pop %v2042
    %v2044 = vadd.f32 %v2043, 1.0
    %v2045 = vrcp.pop %v2044
    %v2046 = vmul.f32 %v2044, %v2045
    %v2047 = vsub.f32 1.0, %v2046
    %v2048 = vmul.f32 %v2045, %v2047
    %v2049 = vadd.f32 %v2045, %v2048
    %vm2050 = vweird.f32 %v2044
    %vm2051 = vweird.f32 %v2045
    %vm2052 = vmor %vm2050, %vm2051
    %v2053 = vsel %vm2052, %v2045, %v2049
    %v2054 = vand.u32 2147483647, %v2044
    %vm2055 = vcmp.eq.f32.partialorder %v2054, 8.507059e+37
    %v2056 = vand.u32 %v2044, 2147483648
    %v2057 = vor.u32 1.1754944e-38, %v2056
    %v2058 = vsel %vm2055, %v2057, %v2053
    %v2059 = vmul.f32 1.0, %v2058
    %v2060 = vtanh.pop %v2040
    %v2061 = vmul.f32 %v2059, %v2006
    %2063 = vrot.lane.b32.xlu0 %v2060, 64
    %v2064 = vpop.permute.xlu0 %2063
    %v2066 = vmul.f32 %v2059, %v2064
    %2068 = vrot.lane.b32.xlu0 %v2066, 32
    %v2069 = vpop.permute.xlu0 %2068
    %v2071 = vadd.f32 %v2061, %v2069
    %v2072 = vtanh.pop %v2071
    %2074 = vrot.lane.b32.xlu0 %v2072, 64
    %v2075 = vpop.permute.xlu0 %2074
    %v2077 = vmul.f32 %v2059, %v2075
    %2079 = vrot.lane.b32.xlu0 %v2077, 32
    %v2080 = vpop.permute.xlu0 %2079
    %2082 = vst.msk [vmem:[#allocation3 + $0x10] sm:$0x3] %vm425, %v2080
    %2083 = vst.msk [vmem:[#allocation3 + $0xe] sm:$0x3] %vm427, %v2080
    %v2084 = vld [vmem:[#allocation2 + $0x12] sm:$0x3]
    %v2085 = vpack.c.bf16 %v2077, %v2077
    %2087 = vrot.lane.b32.xlu0 %v2085, 32
    %v2088 = vpop.permute.xlu0 %2087
    %v2090 = vsel %vm366, %v2088, 0
    %2092 = vmatpush.bf16.msra.mxu0 0
    %2093 = vmatpush.bf16.msra.mxu0 0
    %2094 = vmatpush.bf16.msra.mxu0 0
    %2095 = vmatpush.bf16.msra.mxu0 0
    %2096 = vmatpush.bf16.msra.mxu0 0
    %2097 = vmatpush.bf16.msra.mxu0 0
    %2098 = vmatpush.bf16.msra.mxu0 %v1504
    %2099 = vmatpush.bf16.msra.mxu0 %v1503
    %2100 = vmatmul.bf16.gmra.mxu0 %v2090
    %v2101 = vpop.f32.mrf.mxu0
    %v2102 = vadd.f32 0.0, %v2101
    %v2103 = vpop.f32.mrf.mxu0
    %2104 = vdwg.mxu0
    %v2105 = vadd.f32 %v2084, %v2102
    %v2106 = vxor.u32 %v2105, 2147483648
    %v2107 = vmul.f32 %v2106, 1.442695
    %v2108 = vpow.pop %v2107
    %v2109 = vadd.f32 %v2108, 1.0
    %v2110 = vrcp.pop %v2109
    %v2111 = vmul.f32 %v2109, %v2110
    %v2112 = vsub.f32 1.0, %v2111
    %v2113 = vmul.f32 %v2110, %v2112
    %v2114 = vadd.f32 %v2110, %v2113
    %vm2115 = vweird.f32 %v2109
    %vm2116 = vweird.f32 %v2110
    %vm2117 = vmor %vm2115, %vm2116
    %v2118 = vsel %vm2117, %v2110, %v2114
    %v2119 = vand.u32 2147483647, %v2109
    %vm2120 = vcmp.eq.f32.partialorder %v2119, 8.507059e+37
    %v2121 = vand.u32 %v2109, 2147483648
    %v2122 = vor.u32 1.1754944e-38, %v2121
    %v2123 = vsel %vm2120, %v2122, %v2118
    %v2124 = vmul.f32 1.0, %v2123
    %v2125 = vtanh.pop %v2105
    %v2126 = vmul.f32 %v2124, %v2071
    %2128 = vrot.lane.b32.xlu0 %v2125, 64
    %v2129 = vpop.permute.xlu0 %2128
    %v2131 = vmul.f32 %v2124, %v2129
    %2133 = vrot.lane.b32.xlu0 %v2131, 32
    %v2134 = vpop.permute.xlu0 %2133
    %v2136 = vadd.f32 %v2126, %v2134
    %v2137 = vtanh.pop %v2136
    %2139 = vrot.lane.b32.xlu0 %v2137, 64
    %v2140 = vpop.permute.xlu0 %2139
    %v2142 = vmul.f32 %v2124, %v2140
    %2144 = vrot.lane.b32.xlu0 %v2142, 32
    %v2145 = vpop.permute.xlu0 %2144
    %2147 = vst.msk [vmem:[#allocation3 + $0x12] sm:$0x3] %vm425, %v2145
    %2148 = vst.msk [vmem:[#allocation3 + $0xc] sm:$0x3] %vm427, %v2145
    %v2149 = vld [vmem:[#allocation2 + $0x14] sm:$0x3]
    %v2150 = vpack.c.bf16 %v2142, %v2142
    %2152 = vrot.lane.b32.xlu0 %v2150, 32
    %v2153 = vpop.permute.xlu0 %2152
    %v2155 = vsel %vm366, %v2153, 0
    %2157 = vmatpush.bf16.msra.mxu0 0
    %2158 = vmatpush.bf16.msra.mxu0 0
    %2159 = vmatpush.bf16.msra.mxu0 0
    %2160 = vmatpush.bf16.msra.mxu0 0
    %2161 = vmatpush.bf16.msra.mxu0 0
    %2162 = vmatpush.bf16.msra.mxu0 0
    %2163 = vmatpush.bf16.msra.mxu0 %v1504
    %2164 = vmatpush.bf16.msra.mxu0 %v1503
    %2165 = vmatmul.bf16.gmra.mxu0 %v2155
    %v2166 = vpop.f32.mrf.mxu0
    %v2167 = vadd.f32 0.0, %v2166
    %v2168 = vpop.f32.mrf.mxu0
    %2169 = vdwg.mxu0
    %v2170 = vadd.f32 %v2149, %v2167
    %v2171 = vxor.u32 %v2170, 2147483648
    %v2172 = vmul.f32 %v2171, 1.442695
    %v2173 = vpow.pop %v2172
    %v2174 = vadd.f32 %v2173, 1.0
    %v2175 = vrcp.pop %v2174
    %v2176 = vmul.f32 %v2174, %v2175
    %v2177 = vsub.f32 1.0, %v2176
    %v2178 = vmul.f32 %v2175, %v2177
    %v2179 = vadd.f32 %v2175, %v2178
    %vm2180 = vweird.f32 %v2174
    %vm2181 = vweird.f32 %v2175
    %vm2182 = vmor %vm2180, %vm2181
    %v2183 = vsel %vm2182, %v2175, %v2179
    %v2184 = vand.u32 2147483647, %v2174
    %vm2185 = vcmp.eq.f32.partialorder %v2184, 8.507059e+37
    %v2186 = vand.u32 %v2174, 2147483648
    %v2187 = vor.u32 1.1754944e-38, %v2186
    %v2188 = vsel %vm2185, %v2187, %v2183
    %v2189 = vmul.f32 1.0, %v2188
    %v2190 = vtanh.pop %v2170
    %v2191 = vmul.f32 %v2189, %v2136
    %2193 = vrot.lane.b32.xlu0 %v2190, 64
    %v2194 = vpop.permute.xlu0 %2193
    %v2196 = vmul.f32 %v2189, %v2194
    %2198 = vrot.lane.b32.xlu0 %v2196, 32
    %v2199 = vpop.permute.xlu0 %2198
    %v2201 = vadd.f32 %v2191, %v2199
    %v2202 = vtanh.pop %v2201
    %2204 = vrot.lane.b32.xlu0 %v2202, 64
    %v2205 = vpop.permute.xlu0 %2204
    %v2207 = vmul.f32 %v2189, %v2205
    %2209 = vrot.lane.b32.xlu0 %v2207, 32
    %v2210 = vpop.permute.xlu0 %2209
    %2212 = vst.msk [vmem:[#allocation3 + $0x14] sm:$0x3] %vm425, %v2210
    %2213 = vst.msk [vmem:[#allocation3 + $0xa] sm:$0x3] %vm427, %v2210
    %v2214 = vld [vmem:[#allocation2 + $0x16] sm:$0x3]
    %v2215 = vpack.c.bf16 %v2207, %v2207
    %2217 = vrot.lane.b32.xlu0 %v2215, 32
    %v2218 = vpop.permute.xlu0 %2217
    %v2220 = vsel %vm366, %v2218, 0
    %2222 = vmatpush.bf16.msra.mxu0 0
    %2223 = vmatpush.bf16.msra.mxu0 0
    %2224 = vmatpush.bf16.msra.mxu0 0
    %2225 = vmatpush.bf16.msra.mxu0 0
    %2226 = vmatpush.bf16.msra.mxu0 0
    %2227 = vmatpush.bf16.msra.mxu0 0
    %2228 = vmatpush.bf16.msra.mxu0 %v1504
    %2229 = vmatpush.bf16.msra.mxu0 %v1503
    %2230 = vmatmul.bf16.gmra.mxu0 %v2220
    %v2231 = vpop.f32.mrf.mxu0
    %v2232 = vadd.f32 0.0, %v2231
    %v2233 = vpop.f32.mrf.mxu0
    %2234 = vdwg.mxu0
    %v2235 = vadd.f32 %v2214, %v2232
    %v2236 = vxor.u32 %v2235, 2147483648
    %v2237 = vmul.f32 %v2236, 1.442695
    %v2238 = vpow.pop %v2237
    %v2239 = vadd.f32 %v2238, 1.0
    %v2240 = vrcp.pop %v2239
    %v2241 = vmul.f32 %v2239, %v2240
    %v2242 = vsub.f32 1.0, %v2241
    %v2243 = vmul.f32 %v2240, %v2242
    %v2244 = vadd.f32 %v2240, %v2243
    %vm2245 = vweird.f32 %v2239
    %vm2246 = vweird.f32 %v2240
    %vm2247 = vmor %vm2245, %vm2246
    %v2248 = vsel %vm2247, %v2240, %v2244
    %v2249 = vand.u32 2147483647, %v2239
    %vm2250 = vcmp.eq.f32.partialorder %v2249, 8.507059e+37
    %v2251 = vand.u32 %v2239, 2147483648
    %v2252 = vor.u32 1.1754944e-38, %v2251
    %v2253 = vsel %vm2250, %v2252, %v2248
    %v2254 = vmul.f32 1.0, %v2253
    %v2255 = vtanh.pop %v2235
    %v2256 = vmul.f32 %v2254, %v2201
    %2258 = vrot.lane.b32.xlu0 %v2255, 64
    %v2259 = vpop.permute.xlu0 %2258
    %v2261 = vmul.f32 %v2254, %v2259
    %2263 = vrot.lane.b32.xlu0 %v2261, 32
    %v2264 = vpop.permute.xlu0 %2263
    %v2266 = vadd.f32 %v2256, %v2264
    %v2267 = vtanh.pop %v2266
    %2269 = vrot.lane.b32.xlu0 %v2267, 64
    %v2270 = vpop.permute.xlu0 %2269
    %v2272 = vmul.f32 %v2254, %v2270
    %2274 = vrot.lane.b32.xlu0 %v2272, 32
    %v2275 = vpop.permute.xlu0 %2274
    %2277 = vst.msk [vmem:[#allocation3 + $0x16] sm:$0x3] %vm425, %v2275
    %2278 = vst.msk [vmem:[#allocation3 + $0x8] sm:$0x3] %vm427, %v2275
    %v2279 = vld [vmem:[#allocation2 + $0x18] sm:$0x3]
    %v2280 = vpack.c.bf16 %v2272, %v2272
    %2282 = vrot.lane.b32.xlu0 %v2280, 32
    %v2283 = vpop.permute.xlu0 %2282
    %v2285 = vsel %vm366, %v2283, 0
    %2287 = vmatpush.bf16.msra.mxu0 0
    %2288 = vmatpush.bf16.msra.mxu0 0
    %2289 = vmatpush.bf16.msra.mxu0 0
    %2290 = vmatpush.bf16.msra.mxu0 0
    %2291 = vmatpush.bf16.msra.mxu0 0
    %2292 = vmatpush.bf16.msra.mxu0 0
    %2293 = vmatpush.bf16.msra.mxu0 %v1504
    %2294 = vmatpush.bf16.msra.mxu0 %v1503
    %2295 = vmatmul.bf16.gmra.mxu0 %v2285
    %v2296 = vpop.f32.mrf.mxu0
    %v2297 = vadd.f32 0.0, %v2296
    %v2298 = vpop.f32.mrf.mxu0
    %2299 = vdwg.mxu0
    %v2300 = vadd.f32 %v2279, %v2297
    %v2301 = vxor.u32 %v2300, 2147483648
    %v2302 = vmul.f32 %v2301, 1.442695
    %v2303 = vpow.pop %v2302
    %v2304 = vadd.f32 %v2303, 1.0
    %v2305 = vrcp.pop %v2304
    %v2306 = vmul.f32 %v2304, %v2305
    %v2307 = vsub.f32 1.0, %v2306
    %v2308 = vmul.f32 %v2305, %v2307
    %v2309 = vadd.f32 %v2305, %v2308
    %vm2310 = vweird.f32 %v2304
    %vm2311 = vweird.f32 %v2305
    %vm2312 = vmor %vm2310, %vm2311
    %v2313 = vsel %vm2312, %v2305, %v2309
    %v2314 = vand.u32 2147483647, %v2304
    %vm2315 = vcmp.eq.f32.partialorder %v2314, 8.507059e+37
    %v2316 = vand.u32 %v2304, 2147483648
    %v2317 = vor.u32 1.1754944e-38, %v2316
    %v2318 = vsel %vm2315, %v2317, %v2313
    %v2319 = vmul.f32 1.0, %v2318
    %v2320 = vtanh.pop %v2300
    %v2321 = vmul.f32 %v2319, %v2266
    %2323 = vrot.lane.b32.xlu0 %v2320, 64
    %v2324 = vpop.permute.xlu0 %2323
    %v2326 = vmul.f32 %v2319, %v2324
    %2328 = vrot.lane.b32.xlu0 %v2326, 32
    %v2329 = vpop.permute.xlu0 %2328
    %v2331 = vadd.f32 %v2321, %v2329
    %v2332 = vtanh.pop %v2331
    %2334 = vrot.lane.b32.xlu0 %v2332, 64
    %v2335 = vpop.permute.xlu0 %2334
    %v2337 = vmul.f32 %v2319, %v2335
    %2339 = vrot.lane.b32.xlu0 %v2337, 32
    %v2340 = vpop.permute.xlu0 %2339
    %2342 = vst.msk [vmem:[#allocation3 + $0x18] sm:$0x3] %vm425, %v2340
    %2343 = vst.msk [vmem:[#allocation3 + $0x6] sm:$0x3] %vm427, %v2340
    %v2344 = vld [vmem:[#allocation2 + $0x1a] sm:$0x3]
    %v2345 = vpack.c.bf16 %v2337, %v2337
    %2347 = vrot.lane.b32.xlu0 %v2345, 32
    %v2348 = vpop.permute.xlu0 %2347
    %v2350 = vsel %vm366, %v2348, 0
    %2352 = vmatpush.bf16.msra.mxu0 0
    %2353 = vmatpush.bf16.msra.mxu0 0
    %2354 = vmatpush.bf16.msra.mxu0 0
    %2355 = vmatpush.bf16.msra.mxu0 0
    %2356 = vmatpush.bf16.msra.mxu0 0
    %2357 = vmatpush.bf16.msra.mxu0 0
    %2358 = vmatpush.bf16.msra.mxu0 %v1504
    %2359 = vmatpush.bf16.msra.mxu0 %v1503
    %2360 = vmatmul.bf16.gmra.mxu0 %v2350
    %v2361 = vpop.f32.mrf.mxu0
    %v2362 = vadd.f32 0.0, %v2361
    %v2363 = vpop.f32.mrf.mxu0
    %2364 = vdwg.mxu0
    %v2365 = vadd.f32 %v2344, %v2362
    %v2366 = vxor.u32 %v2365, 2147483648
    %v2367 = vmul.f32 %v2366, 1.442695
    %v2368 = vpow.pop %v2367
    %v2369 = vadd.f32 %v2368, 1.0
    %v2370 = vrcp.pop %v2369
    %v2371 = vmul.f32 %v2369, %v2370
    %v2372 = vsub.f32 1.0, %v2371
    %v2373 = vmul.f32 %v2370, %v2372
    %v2374 = vadd.f32 %v2370, %v2373
    %vm2375 = vweird.f32 %v2369
    %vm2376 = vweird.f32 %v2370
    %vm2377 = vmor %vm2375, %vm2376
    %v2378 = vsel %vm2377, %v2370, %v2374
    %v2379 = vand.u32 2147483647, %v2369
    %vm2380 = vcmp.eq.f32.partialorder %v2379, 8.507059e+37
    %v2381 = vand.u32 %v2369, 2147483648
    %v2382 = vor.u32 1.1754944e-38, %v2381
    %v2383 = vsel %vm2380, %v2382, %v2378
    %v2384 = vmul.f32 1.0, %v2383
    %v2385 = vtanh.pop %v2365
    %v2386 = vmul.f32 %v2384, %v2331
    %2388 = vrot.lane.b32.xlu0 %v2385, 64
    %v2389 = vpop.permute.xlu0 %2388
    %v2391 = vmul.f32 %v2384, %v2389
    %2393 = vrot.lane.b32.xlu0 %v2391, 32
    %v2394 = vpop.permute.xlu0 %2393
    %v2396 = vadd.f32 %v2386, %v2394
    %v2397 = vtanh.pop %v2396
    %2399 = vrot.lane.b32.xlu0 %v2397, 64
    %v2400 = vpop.permute.xlu0 %2399
    %v2402 = vmul.f32 %v2384, %v2400
    %2404 = vrot.lane.b32.xlu0 %v2402, 32
    %v2405 = vpop.permute.xlu0 %2404
    %2407 = vst.msk [vmem:[#allocation3 + $0x1a] sm:$0x3] %vm425, %v2405
    %2408 = vst.msk [vmem:[#allocation3 + $0x4] sm:$0x3] %vm427, %v2405
    %v2409 = vld [vmem:[#allocation2 + $0x1c] sm:$0x3]
    %v2410 = vpack.c.bf16 %v2402, %v2402
    %2412 = vrot.lane.b32.xlu0 %v2410, 32
    %v2413 = vpop.permute.xlu0 %2412
    %v2415 = vsel %vm366, %v2413, 0
    %2417 = vmatpush.bf16.msra.mxu0 0
    %2418 = vmatpush.bf16.msra.mxu0 0
    %2419 = vmatpush.bf16.msra.mxu0 0
    %2420 = vmatpush.bf16.msra.mxu0 0
    %2421 = vmatpush.bf16.msra.mxu0 0
    %2422 = vmatpush.bf16.msra.mxu0 0
    %2423 = vmatpush.bf16.msra.mxu0 %v1504
    %2424 = vmatpush.bf16.msra.mxu0 %v1503
    %2425 = vmatmul.bf16.gmra.mxu0 %v2415
    %v2426 = vpop.f32.mrf.mxu0
    %v2427 = vadd.f32 0.0, %v2426
    %v2428 = vpop.f32.mrf.mxu0
    %2429 = vdwg.mxu0
    %v2430 = vadd.f32 %v2409, %v2427
    %v2431 = vxor.u32 %v2430, 2147483648
    %v2432 = vmul.f32 %v2431, 1.442695
    %v2433 = vpow.pop %v2432
    %v2434 = vadd.f32 %v2433, 1.0
    %v2435 = vrcp.pop %v2434
    %v2436 = vmul.f32 %v2434, %v2435
    %v2437 = vsub.f32 1.0, %v2436
    %v2438 = vmul.f32 %v2435, %v2437
    %v2439 = vadd.f32 %v2435, %v2438
    %vm2440 = vweird.f32 %v2434
    %vm2441 = vweird.f32 %v2435
    %vm2442 = vmor %vm2440, %vm2441
    %v2443 = vsel %vm2442, %v2435, %v2439
    %v2444 = vand.u32 2147483647, %v2434
    %vm2445 = vcmp.eq.f32.partialorder %v2444, 8.507059e+37
    %v2446 = vand.u32 %v2434, 2147483648
    %v2447 = vor.u32 1.1754944e-38, %v2446
    %v2448 = vsel %vm2445, %v2447, %v2443
    %v2449 = vmul.f32 1.0, %v2448
    %v2450 = vtanh.pop %v2430
    %v2451 = vmul.f32 %v2449, %v2396
    %2453 = vrot.lane.b32.xlu0 %v2450, 64
    %v2454 = vpop.permute.xlu0 %2453
    %v2456 = vmul.f32 %v2449, %v2454
    %2458 = vrot.lane.b32.xlu0 %v2456, 32
    %v2459 = vpop.permute.xlu0 %2458
    %v2461 = vadd.f32 %v2451, %v2459
    %v2462 = vtanh.pop %v2461
    %2464 = vrot.lane.b32.xlu0 %v2462, 64
    %v2465 = vpop.permute.xlu0 %2464
    %v2467 = vmul.f32 %v2449, %v2465
    %2469 = vrot.lane.b32.xlu0 %v2467, 32
    %v2470 = vpop.permute.xlu0 %2469
    %2472 = vst.msk [vmem:[#allocation3 + $0x1c] sm:$0x3] %vm425, %v2470
    %2473 = vst.msk [vmem:[#allocation3 + $0x2] sm:$0x3] %vm427, %v2470
    %v2474 = vld [vmem:[#allocation2 + $0x1e] sm:$0x3]
    %v2475 = vpack.c.bf16 %v2467, %v2467
    %2477 = vrot.lane.b32.xlu0 %v2475, 32
    %v2478 = vpop.permute.xlu0 %2477
    %v2480 = vsel %vm366, %v2478, 0
    %2482 = vmatpush.bf16.msra.mxu0 0
    %2483 = vmatpush.bf16.msra.mxu0 0
    %2484 = vmatpush.bf16.msra.mxu0 0
    %2485 = vmatpush.bf16.msra.mxu0 0
    %2486 = vmatpush.bf16.msra.mxu0 0
    %2487 = vmatpush.bf16.msra.mxu0 0
    %2488 = vmatpush.bf16.msra.mxu0 %v1504
    %2489 = vmatpush.bf16.msra.mxu0 %v1503
    %2490 = vmatmul.bf16.gmra.mxu0 %v2480
    %v2491 = vpop.f32.mrf.mxu0
    %v2492 = vadd.f32 0.0, %v2491
    %v2493 = vpop.f32.mrf.mxu0
    %2494 = vdwg.mxu0
    %v2495 = vadd.f32 %v2474, %v2492
    %v2496 = vxor.u32 %v2495, 2147483648
    %v2497 = vmul.f32 %v2496, 1.442695
    %v2498 = vpow.pop %v2497
    %v2499 = vadd.f32 %v2498, 1.0
    %v2500 = vrcp.pop %v2499
    %v2501 = vmul.f32 %v2499, %v2500
    %v2502 = vsub.f32 1.0, %v2501
    %v2503 = vmul.f32 %v2500, %v2502
    %v2504 = vadd.f32 %v2500, %v2503
    %vm2505 = vweird.f32 %v2499
    %vm2506 = vweird.f32 %v2500
    %vm2507 = vmor %vm2505, %vm2506
    %v2508 = vsel %vm2507, %v2500, %v2504
    %v2509 = vand.u32 2147483647, %v2499
    %vm2510 = vcmp.eq.f32.partialorder %v2509, 8.507059e+37
    %v2511 = vand.u32 %v2499, 2147483648
    %v2512 = vor.u32 1.1754944e-38, %v2511
    %v2513 = vsel %vm2510, %v2512, %v2508
    %v2514 = vmul.f32 1.0, %v2513
    %v2515 = vtanh.pop %v2495
    %v2516 = vmul.f32 %v2514, %v2461
    %2518 = vrot.lane.b32.xlu0 %v2515, 64
    %v2519 = vpop.permute.xlu0 %2518
    %v2521 = vmul.f32 %v2514, %v2519
    %2523 = vrot.lane.b32.xlu0 %v2521, 32
    %v2524 = vpop.permute.xlu0 %2523
    %v2526 = vadd.f32 %v2516, %v2524
    %v2527 = vtanh.pop %v2526
    %2529 = vrot.lane.b32.xlu0 %v2527, 64
    %v2530 = vpop.permute.xlu0 %2529
    %v2532 = vmul.f32 %v2514, %v2530
    %2534 = vrot.lane.b32.xlu0 %v2532, 32
    %v2535 = vpop.permute.xlu0 %2534
    %2537 = vst.msk [vmem:[#allocation3 + $0x1e] sm:$0x3] %vm425, %v2535
    %2538 = vst.msk [vmem:[#allocation3] sm:$0x3] %vm427, %v2535
    %v2539 = vld [vmem:[#allocation9 + $0x2a] sm:$0x3]
    %v2540 = vld [vmem:[#allocation9 + $0x2c] sm:$0x3]
    %v2541 = vld [vmem:[#allocation9 + $0x2e] sm:$0x3]
    %v2542 = vld [vmem:[#allocation9 + $0x30] sm:$0x1]
    %v2543 = vld [vmem:[#allocation9 + $0x31] sm:$0x7]
    %v2544 = vld [vmem:[#allocation9 + $0x34] sm:$0x7]
    %v2545 = vld [vmem:[#allocation3] ss:$2 sm:$0xff]
    %s2546 = scalar_lea.vmem [#allocation3], 16
    %v2547 = vld [vmem:[%s2546] ss:$2 sm:$0xff]
    %2549 = vset.pattern.permute.xlu0 0
    %2550 = vperm.xlu0 %2549, %v2541
    %v2551 = vpop.permute.xlu0 %2550
    %v2554 = vsel %vm366, %v2539, 0
    %v2557 = vsel %vm366, %v2545, 0
    %v2560 = vsel %vm366, %v2547, 0
    %2562 = vmatpush.xpose.msra.mxu0 0.0
    %2563 = vmatpush.xpose.msra.mxu0 0.0
    %2564 = vmatpush.xpose.msra.mxu0 0.0
    %2565 = vmatpush.xpose.msra.mxu0 0.0
    %2566 = vmatpush.xpose.msra.mxu0 0.0
    %2567 = vmatpush.xpose.msra.mxu0 0.0
    %2568 = vmatpush.xpose.msra.mxu0 0.0
    %2569 = vmatpush.xpose.msra.mxu0 0.0
    %2570 = vmatpush.xpose.msra.mxu0 0.0
    %2571 = vmatpush.xpose.msra.mxu0 0.0
    %2572 = vmatpush.xpose.msra.mxu0 0.0
    %2573 = vmatpush.xpose.msra.mxu0 0.0
    %2574 = vmatpush.xpose.msra.mxu0 0.0
    %2575 = vmatpush.xpose.msra.mxu0 0.0
    %2576 = vmatpush.xpose.msra.mxu0 %v2560
    %2577 = vmatpush.xpose.msra.mxu0 %v2557
    %2578 = vmatmul.f32.gmra.mxu0 %v2554
    %v2579 = vpop.f32.mrf.mxu0
    %v2580 = vadd.f32 %v2551, %v2579
    %2581 = vdwg.mxu0
    %v2582 = vperm.slane %v2542, 0
    %vm2583 = vcmask 130048
    %v2585 = vsel %vm2583, %v2580, 0
    %v2588 = vsel %vm2583, %v2540, 0
    %2590 = vmatpush.xpose.msra.mxu0 0.0
    %2591 = vmatpush.xpose.msra.mxu0 0.0
    %2592 = vmatpush.xpose.msra.mxu0 0.0
    %2593 = vmatpush.xpose.msra.mxu0 0.0
    %2594 = vmatpush.xpose.msra.mxu0 0.0
    %2595 = vmatpush.xpose.msra.mxu0 0.0
    %2596 = vmatpush.xpose.msra.mxu0 0.0
    %2597 = vmatpush.xpose.msra.mxu0 0.0
    %2598 = vmatpush.xpose.msra.mxu0 0.0
    %2599 = vmatpush.xpose.msra.mxu0 0.0
    %2600 = vmatpush.xpose.msra.mxu0 0.0
    %2601 = vmatpush.xpose.msra.mxu0 0.0
    %2602 = vmatpush.xpose.msra.mxu0 0.0
    %2603 = vmatpush.xpose.msra.mxu0 0.0
    %2604 = vmatpush.xpose.msra.mxu0 0.0
    %2605 = vmatpush.xpose.msra.mxu0 %v2588
    %2606 = vmatmul.f32.gmra.mxu0 %v2585
    %v2607 = vpop.f32.mrf.mxu0
    %v2608 = vadd.f32 %v2582, %v2607
    %2609 = vdwg.mxu0
    %v2610 = vxor.u32 %v2608, 2147483648
    %v2611 = vmul.f32 %v2610, 1.442695
    %v2612 = vpow.pop %v2611
    %v2613 = vadd.f32 %v2612, 1.0
    %v2614 = vrcp.pop %v2613
    %v2615 = vmul.f32 %v2613, %v2614
    %v2616 = vsub.f32 1.0, %v2615
    %v2617 = vmul.f32 %v2614, %v2616
    %v2618 = vadd.f32 %v2614, %v2617
    %vm2619 = vweird.f32 %v2613
    %vm2620 = vweird.f32 %v2614
    %vm2621 = vmor %vm2619, %vm2620
    %v2622 = vsel %vm2621, %v2614, %v2618
    %v2623 = vand.u32 2147483647, %v2613
    %vm2624 = vcmp.eq.f32.partialorder %v2623, 8.507059e+37
    %v2625 = vand.u32 %v2613, 2147483648
    %v2626 = vor.u32 1.1754944e-38, %v2625
    %v2627 = vsel %vm2624, %v2626, %v2622
    %v2628 = vmul.f32 1.0, %v2627
    %vm2629 = vcmask 9216
    %2630 = vst.msk [vmem:[#allocation10] sm:$0x3] %vm2629, %v2628
    %2632 = vset.pattern.permute.xlu0 0
    %2633 = vperm.xlu0 %2632, %v2544
    %v2634 = vpop.permute.xlu0 %2633
    %v2637 = vsel %vm366, %v2543, 0
    %2639 = vmatpush.xpose.msra.mxu0 0.0
    %2640 = vmatpush.xpose.msra.mxu0 0.0
    %2641 = vmatpush.xpose.msra.mxu0 0.0
    %2642 = vmatpush.xpose.msra.mxu0 0.0
    %2643 = vmatpush.xpose.msra.mxu0 0.0
    %2644 = vmatpush.xpose.msra.mxu0 0.0
    %2645 = vmatpush.xpose.msra.mxu0 0.0
    %2646 = vmatpush.xpose.msra.mxu0 0.0
    %2647 = vmatpush.xpose.msra.mxu0 0.0
    %2648 = vmatpush.xpose.msra.mxu0 0.0
    %2649 = vmatpush.xpose.msra.mxu0 0.0
    %2650 = vmatpush.xpose.msra.mxu0 0.0
    %2651 = vmatpush.xpose.msra.mxu0 0.0
    %2652 = vmatpush.xpose.msra.mxu0 0.0
    %2653 = vmatpush.xpose.msra.mxu0 %v2560
    %2654 = vmatpush.xpose.msra.mxu0 %v2557
    %2655 = vmatmul.f32.gmra.mxu0 %v2637
    %v2656 = vpop.f32.mrf.mxu0
    %v2657 = vadd.f32 %v2634, %v2656
    %2658 = vdwg.mxu0
    %vm2659 = vcmask 124928
    %2660 = vst.msk [vmem:[%s4] sm:$0x7] %vm2659, %v2657
    %s2661 = scalar_lea.vmem [#allocation3], 1
    %v2662 = vld [vmem:[%s2661] ss:$2 sm:$0xff]
    %s2663 = scalar_lea.vmem [#allocation3], 17
    %v2664 = vld [vmem:[%s2663] ss:$2 sm:$0xff]
    %v2666 = vsel %vm366, %v2662, 0
    %v2669 = vsel %vm366, %v2664, 0
    %2671 = vmatpush.xpose.msra.mxu0 0.0
    %2672 = vmatpush.xpose.msra.mxu0 0.0
    %2673 = vmatpush.xpose.msra.mxu0 0.0
    %2674 = vmatpush.xpose.msra.mxu0 0.0
    %2675 = vmatpush.xpose.msra.mxu0 0.0
    %2676 = vmatpush.xpose.msra.mxu0 0.0
    %2677 = vmatpush.xpose.msra.mxu0 0.0
    %2678 = vmatpush.xpose.msra.mxu0 0.0
    %2679 = vmatpush.xpose.msra.mxu0 0.0
    %2680 = vmatpush.xpose.msra.mxu0 0.0
    %2681 = vmatpush.xpose.msra.mxu0 0.0
    %2682 = vmatpush.xpose.msra.mxu0 0.0
    %2683 = vmatpush.xpose.msra.mxu0 0.0
    %2684 = vmatpush.xpose.msra.mxu0 0.0
    %2685 = vmatpush.xpose.msra.mxu0 %v2669
    %2686 = vmatpush.xpose.msra.mxu0 %v2666
    %2687 = vmatmul.f32.gmra.mxu0 %v2554
    %v2688 = vpop.f32.mrf.mxu0
    %v2689 = vadd.f32 %v2551, %v2688
    %2690 = vdwg.mxu0
    %v2692 = vsel %vm2583, %v2689, 0
    %2694 = vmatpush.xpose.msra.mxu0 0.0
    %2695 = vmatpush.xpose.msra.mxu0 0.0
    %2696 = vmatpush.xpose.msra.mxu0 0.0
    %2697 = vmatpush.xpose.msra.mxu0 0.0
    %2698 = vmatpush.xpose.msra.mxu0 0.0
    %2699 = vmatpush.xpose.msra.mxu0 0.0
    %2700 = vmatpush.xpose.msra.mxu0 0.0
    %2701 = vmatpush.xpose.msra.mxu0 0.0
    %2702 = vmatpush.xpose.msra.mxu0 0.0
    %2703 = vmatpush.xpose.msra.mxu0 0.0
    %2704 = vmatpush.xpose.msra.mxu0 0.0
    %2705 = vmatpush.xpose.msra.mxu0 0.0
    %2706 = vmatpush.xpose.msra.mxu0 0.0
    %2707 = vmatpush.xpose.msra.mxu0 0.0
    %2708 = vmatpush.xpose.msra.mxu0 0.0
    %2709 = vmatpush.xpose.msra.mxu0 %v2588
    %2710 = vmatmul.f32.gmra.mxu0 %v2692
    %v2711 = vpop.f32.mrf.mxu0
    %v2712 = vadd.f32 %v2582, %v2711
    %2713 = vdwg.mxu0
    %v2714 = vxor.u32 %v2712, 2147483648
    %v2715 = vmul.f32 %v2714, 1.442695
    %v2716 = vpow.pop %v2715
    %v2717 = vadd.f32 %v2716, 1.0
    %v2718 = vrcp.pop %v2717
    %v2719 = vmul.f32 %v2717, %v2718
    %v2720 = vsub.f32 1.0, %v2719
    %v2721 = vmul.f32 %v2718, %v2720
    %v2722 = vadd.f32 %v2718, %v2721
    %vm2723 = vweird.f32 %v2717
    %vm2724 = vweird.f32 %v2718
    %vm2725 = vmor %vm2723, %vm2724
    %v2726 = vsel %vm2725, %v2718, %v2722
    %v2727 = vand.u32 2147483647, %v2717
    %vm2728 = vcmp.eq.f32.partialorder %v2727, 8.507059e+37
    %v2729 = vand.u32 %v2717, 2147483648
    %v2730 = vor.u32 1.1754944e-38, %v2729
    %v2731 = vsel %vm2728, %v2730, %v2726
    %v2732 = vmul.f32 1.0, %v2731
    %s2733 = scalar_lea.vmem [#allocation10], 2
    %2734 = vst.msk [vmem:[%s2733] sm:$0x3] %vm2629, %v2732
    %2735 = vmatpush.xpose.msra.mxu0 0.0
    %2736 = vmatpush.xpose.msra.mxu0 0.0
    %2737 = vmatpush.xpose.msra.mxu0 0.0
    %2738 = vmatpush.xpose.msra.mxu0 0.0
    %2739 = vmatpush.xpose.msra.mxu0 0.0
    %2740 = vmatpush.xpose.msra.mxu0 0.0
    %2741 = vmatpush.xpose.msra.mxu0 0.0
    %2742 = vmatpush.xpose.msra.mxu0 0.0
    %2743 = vmatpush.xpose.msra.mxu0 0.0
    %2744 = vmatpush.xpose.msra.mxu0 0.0
    %2745 = vmatpush.xpose.msra.mxu0 0.0
    %2746 = vmatpush.xpose.msra.mxu0 0.0
    %2747 = vmatpush.xpose.msra.mxu0 0.0
    %2748 = vmatpush.xpose.msra.mxu0 0.0
    %2749 = vmatpush.xpose.msra.mxu0 %v2669
    %2750 = vmatpush.xpose.msra.mxu0 %v2666
    %2751 = vmatmul.f32.gmra.mxu0 %v2637
    %v2752 = vpop.f32.mrf.mxu0
    %v2753 = vadd.f32 %v2634, %v2752
    %2754 = vdwg.mxu0
    %s2755 = scalar_lea.vmem %s4, 4
    %2756 = vst.msk [vmem:[%s2755] sm:$0x7] %vm2659, %v2753
    // Predicated region
    $region26: #{lstm_classifier_reg_forward.1} parent=1 // pred_check
      _
    $region27: #{lstm_classifier_reg_forward.1} parent=1 // pred_check_branch
      %2758 = sbr.rel (0) target = $region29
    $region28: #{lstm_classifier_reg_forward.1} parent=1 // pred_region
      %2760 = vsyncadd [#allocation6], 0
      %s2761 = sshll.u32 [#allocation10], 4
      %s2762 = int_to_ptr.vmem [resolvable:$true] %s2761
      %s2763 = sshll.u32 %s3, 4
      %s2764 = int_to_ptr.hbm [resolvable:$true] %s2763
      %2769 = dma.vmem_to_hbm [thread:$0]  %s2762, 64, %s2764, [#allocation6], 32, 32, 2
    $region29: #{lstm_classifier_reg_forward.1} parent=1 // pred_fallthru
      _
    // Predicated region
    $region30: #{lstm_classifier_reg_forward.1} parent=1 // pred_check
      _
    $region31: #{lstm_classifier_reg_forward.1} parent=1 // pred_check_branch
      %2771 = sbr.rel (0) target = $region33
    $region32: #{lstm_classifier_reg_forward.1} parent=1 // pred_region
      _
    $region33: #{lstm_classifier_reg_forward.1} parent=1 // pred_fallthru
      _
    // Predicated region
    $region34: #{lstm_classifier_reg_forward.1} parent=1 // pred_check
      _
    $region35: #{lstm_classifier_reg_forward.1} parent=1 // pred_check_branch
      %2773 = sbr.rel (0) target = $region37
    $region36: #{lstm_classifier_reg_forward.1} parent=1 // pred_region
      %2775 = dma.done [#allocation6], 64
    $region37: #{lstm_classifier_reg_forward.1} parent=1 // pred_fallthru
      _
    // Predicated region
    $region38: #{lstm_classifier_reg_forward.1} parent=1 // pred_check
      _
    $region39: #{lstm_classifier_reg_forward.1} parent=1 // pred_check_branch
      %2777 = sbr.rel (0) target = $region41
    $region40: #{lstm_classifier_reg_forward.1} parent=1 // pred_region
      _
    $region41: #{lstm_classifier_reg_forward.1} parent=1 // pred_fallthru
      _
    %2778 = vsyncpa [#allocation5], 1
    %2779 = vsyncpa [#allocation8], 1
    %2780 = vsyncpa [#allocation6], 1

</llo_original>
